<compile_context>
chip_gen: v7x
topology: tpu7x:2x2x1
jax: 0.10.0
libtpu: 0.0.40
codegen_flags: <defaults>
</compile_context>

<pallas_src>
import functools

import jax
import jax.numpy as jnp
from jax.experimental import pallas as pl
from jax.experimental.pallas import tpu as pltpu


def lstm_fc_kernel(T, B,
                   x_ref, w_ih_ref, b_ref,
                   whh_i_ref, whh_f_ref, whh_g_ref, whh_o_ref,
                   w_fc_ref, b_fc_ref,
                   out_ref,
                   xg_i_ref, xg_f_ref, xg_g_ref, xg_o_ref):
    # x_ref:     (T*B, I)  row t*B + b holds x[b, t, :]
    # w_ih_ref:  (I, 4H)   (= weight_ih_l0.T), gate order [i, f, g, o]
    # b_ref:     (1, 4H)   (= bias_ih_l0 + bias_hh_l0)
    # whh_*_ref: (H, H)    per-gate slice of weight_hh_l0, transposed
    # w_fc_ref:  (1, H)    (= fc.weight)
    # b_fc_ref:  (1, 1)    (= fc.bias)
    # out_ref:   (B, 1)
    # xg_*_ref:  (T*B, H)  VMEM scratch: precomputed x-side gate pre-activations
    H = whh_i_ref.shape[0]
    I = x_ref.shape[1]

    # ---------- one-off precompute (outside the serial recurrence) ----------
    if I == 1:
        # degenerate K=1 "matmul" -> pure VPU broadcast multiply
        xg_all = x_ref[...] * w_ih_ref[...] + b_ref[...]          # (T*B, 4H)
    else:
        xg_all = (jnp.dot(x_ref[...], w_ih_ref[...],
                          preferred_element_type=jnp.float32)
                  + b_ref[...])
    # per-gate lane slices happen exactly once, not per time step
    xg_i_ref[...] = xg_all[:, 0 * H:1 * H]
    xg_f_ref[...] = xg_all[:, 1 * H:2 * H]
    xg_g_ref[...] = xg_all[:, 2 * H:3 * H]
    xg_o_ref[...] = xg_all[:, 3 * H:4 * H]

    # loop-invariant recurrent weights (4 x (H,H) f32 = 16 vregs, fits easily)
    whh_i = whh_i_ref[...]
    whh_f = whh_f_ref[...]
    whh_g = whh_g_ref[...]
    whh_o = whh_o_ref[...]

    h0 = jnp.zeros((B, H), jnp.float32)
    c0 = jnp.zeros((B, H), jnp.float32)

    def step(t, carry):
        h, c = carry
        row = pl.multiple_of(t * B, B)
        i_pre = xg_i_ref[pl.ds(row, B), :] + jnp.dot(
            h, whh_i, preferred_element_type=jnp.float32)
        f_pre = xg_f_ref[pl.ds(row, B), :] + jnp.dot(
            h, whh_f, preferred_element_type=jnp.float32)
        g_pre = xg_g_ref[pl.ds(row, B), :] + jnp.dot(
            h, whh_g, preferred_element_type=jnp.float32)
        o_pre = xg_o_ref[pl.ds(row, B), :] + jnp.dot(
            h, whh_o, preferred_element_type=jnp.float32)
        i_g = jax.nn.sigmoid(i_pre)
        f_g = jax.nn.sigmoid(f_pre)
        g_g = jnp.tanh(g_pre)
        o_g = jax.nn.sigmoid(o_pre)
        c_new = f_g * c + i_g * g_g
        h_new = o_g * jnp.tanh(c_new)
        return (h_new, c_new)

    # T is small & static -> fully unroll so the scheduler sees across steps
    h_last, _ = jax.lax.fori_loop(0, T, step, (h0, c0), unroll=True)

    # FC: (B,H) x (H,) -> (B,1) as a VPU multiply + lane reduce
    out_ref[...] = (jnp.sum(h_last * w_fc_ref[...], axis=-1, keepdims=True)
                    + b_fc_ref[...])


def lstm_model_forward(x, params):
    """x: (B, T, I) float32.  Returns (B, 1) float32 — same as LSTMModel.forward."""
    w_ih, w_hh, b_ih, b_hh, fc_w, fc_b = (
        params["w_ih"], params["w_hh"], params["b_ih"],
        params["b_hh"], params["fc_w"], params["fc_b"],
    )
    B, T, I = x.shape
    H = w_hh.shape[1]

    # lane-flat x: row t*B + b = x[b, t, :]
    x_flat = jnp.transpose(x, (1, 0, 2)).reshape(T * B, I).astype(jnp.float32)
    w_ih_t = w_ih.T.astype(jnp.float32)                            # (I, 4H)
    b = (b_ih + b_hh).reshape(1, 4 * H).astype(jnp.float32)        # (1, 4H)
    # per-gate recurrent weights (PyTorch gate order [i, f, g, o]), transposed
    whh_i = w_hh[0 * H:1 * H, :].T.astype(jnp.float32)             # (H, H)
    whh_f = w_hh[1 * H:2 * H, :].T.astype(jnp.float32)
    whh_g = w_hh[2 * H:3 * H, :].T.astype(jnp.float32)
    whh_o = w_hh[3 * H:4 * H, :].T.astype(jnp.float32)
    w_fc = fc_w.astype(jnp.float32)                                # (1, H)
    b_fc = fc_b.reshape(1, 1).astype(jnp.float32)                  # (1, 1)

    kernel = functools.partial(lstm_fc_kernel, T, B)

    out = pl.pallas_call(
        kernel,
        out_shape=jax.ShapeDtypeStruct((B, 1), jnp.float32),
        grid=(1,),
        in_specs=[
            pl.BlockSpec((T * B, I), lambda i: (0, 0)),
            pl.BlockSpec((I, 4 * H), lambda i: (0, 0)),
            pl.BlockSpec((1, 4 * H), lambda i: (0, 0)),
            pl.BlockSpec((H, H), lambda i: (0, 0)),
            pl.BlockSpec((H, H), lambda i: (0, 0)),
            pl.BlockSpec((H, H), lambda i: (0, 0)),
            pl.BlockSpec((H, H), lambda i: (0, 0)),
            pl.BlockSpec((1, H), lambda i: (0, 0)),
            pl.BlockSpec((1, 1), lambda i: (0, 0)),
        ],
        out_specs=pl.BlockSpec((B, 1), lambda i: (0, 0)),
        scratch_shapes=[
            pltpu.VMEM((T * B, H), jnp.float32),   # x-side gate i
            pltpu.VMEM((T * B, H), jnp.float32),   # x-side gate f
            pltpu.VMEM((T * B, H), jnp.float32),   # x-side gate g
            pltpu.VMEM((T * B, H), jnp.float32),   # x-side gate o
        ],
        compiler_params=pltpu.CompilerParams(
            dimension_semantics=("arbitrary",)),
    )(x_flat, w_ih_t, b, whh_i, whh_f, whh_g, whh_o, w_fc, b_fc)
    return out


def lstm_model_reference(x, params):
    """Pure-JAX reference matching PyTorch nn.LSTM + nn.Linear semantics."""
    w_ih, w_hh, b_ih, b_hh, fc_w, fc_b = (
        params["w_ih"], params["w_hh"], params["b_ih"],
        params["b_hh"], params["fc_w"], params["fc_b"],
    )
    B, T, I = x.shape
    H = w_hh.shape[1]
    h = jnp.zeros((B, H), jnp.float32)
    c = jnp.zeros((B, H), jnp.float32)
    for t in range(T):
        gates = x[:, t, :] @ w_ih.T + h @ w_hh.T + b_ih + b_hh
        i_g = jax.nn.sigmoid(gates[:, 0:H])
        f_g = jax.nn.sigmoid(gates[:, H:2 * H])
        g_g = jnp.tanh(gates[:, 2 * H:3 * H])
        o_g = jax.nn.sigmoid(gates[:, 3 * H:4 * H])
        c = f_g * c + i_g * g_g
        h = o_g * jnp.tanh(c)
    return h @ fc_w.T + fc_b


def init_params(key, input_size=1, hidden_size=64):
    """Deterministic init mimicking PyTorch's uniform(-1/sqrt(H), 1/sqrt(H))."""
    k = 1.0 / jnp.sqrt(hidden_size)
    keys = jax.random.split(key, 6)
    u = lambda kk, shape: jax.random.uniform(kk, shape, jnp.float32, -k, k)
    return {
        "w_ih": u(keys[0], (4 * hidden_size, input_size)),
        "w_hh": u(keys[1], (4 * hidden_size, hidden_size)),
        "b_ih": u(keys[2], (4 * hidden_size,)),
        "b_hh": u(keys[3], (4 * hidden_size,)),
        "fc_w": u(keys[4], (1, hidden_size)),
        "fc_b": u(keys[5], (1,)),
    }


if __name__ == "__main__":
    B, T, I, H = 8, 8, 1, 64
    key = jax.random.PRNGKey(0)
    k_x, k_p = jax.random.split(key)
    x = jax.random.normal(k_x, (B, T, I), jnp.float32)
    params = init_params(k_p, input_size=I, hidden_size=H)

    out = lstm_model_forward(x, params)
    out = jax.block_until_ready(out)

    ref = lstm_model_reference(x, params)
    assert out.shape == (B, 1), out.shape
    assert jnp.allclose(out, ref, rtol=1e-4, atol=1e-4), (out, ref)

    print("KERNEL_OK")
</pallas_src>

<mosaic_0001>
module attributes {stable_mosaic.version = 11 : i64} {
  func.func @lstm_fc_kernel(%arg0: i32, %arg1: memref<64x1xf32, #tpu.memory_space<vmem>>, %arg2: memref<1x256xf32, #tpu.memory_space<vmem>>, %arg3: memref<1x256xf32, #tpu.memory_space<vmem>>, %arg4: memref<64x64xf32, #tpu.memory_space<vmem>>, %arg5: memref<64x64xf32, #tpu.memory_space<vmem>>, %arg6: memref<64x64xf32, #tpu.memory_space<vmem>>, %arg7: memref<64x64xf32, #tpu.memory_space<vmem>>, %arg8: memref<1x64xf32, #tpu.memory_space<vmem>>, %arg9: memref<1x1xf32, #tpu.memory_space<vmem>>, %arg10: memref<8x1xf32, #tpu.memory_space<vmem>>, %arg11: memref<64x64xf32, #tpu.memory_space<vmem>>, %arg12: memref<64x64xf32, #tpu.memory_space<vmem>>, %arg13: memref<64x64xf32, #tpu.memory_space<vmem>>, %arg14: memref<64x64xf32, #tpu.memory_space<vmem>>) attributes {dimension_semantics = [#tpu.dimension_semantics<arbitrary>], iteration_bounds = array<i64: 1>, scalar_prefetch = 0 : i64, scratch_operands = 4 : i64, tpu.core_type = #tpu.core_type<tc>, window_params = [{pipeline_mode = #tpu.pipeline_mode<synchronous>, transform_indices = @transform_0, window_bounds = array<i64: 64, 1>}, {pipeline_mode = #tpu.pipeline_mode<synchronous>, transform_indices = @transform_1, window_bounds = array<i64: 1, 256>}, {pipeline_mode = #tpu.pipeline_mode<synchronous>, transform_indices = @transform_2, window_bounds = array<i64: 1, 256>}, {pipeline_mode = #tpu.pipeline_mode<synchronous>, transform_indices = @transform_3, window_bounds = array<i64: 64, 64>}, {pipeline_mode = #tpu.pipeline_mode<synchronous>, transform_indices = @transform_4, window_bounds = array<i64: 64, 64>}, {pipeline_mode = #tpu.pipeline_mode<synchronous>, transform_indices = @transform_5, window_bounds = array<i64: 64, 64>}, {pipeline_mode = #tpu.pipeline_mode<synchronous>, transform_indices = @transform_6, window_bounds = array<i64: 64, 64>}, {pipeline_mode = #tpu.pipeline_mode<synchronous>, transform_indices = @transform_7, window_bounds = array<i64: 1, 64>}, {pipeline_mode = #tpu.pipeline_mode<synchronous>, transform_indices = @transform_8, window_bounds = array<i64: 1, 1>}, {pipeline_mode = #tpu.pipeline_mode<synchronous>, transform_indices = @transform_9, window_bounds = array<i64: 8, 1>}]} {
    %c0 = arith.constant 0 : index
    %c0_0 = arith.constant 0 : index
    %0 = vector.load %arg1[%c0, %c0_0] : memref<64x1xf32, #tpu.memory_space<vmem>>, vector<64x1xf32>
    %c0_1 = arith.constant 0 : index
    %c0_2 = arith.constant 0 : index
    %1 = vector.load %arg2[%c0_1, %c0_2] : memref<1x256xf32, #tpu.memory_space<vmem>>, vector<1x256xf32>
    %2 = vector.broadcast %0 : vector<64x1xf32> to vector<64x256xf32>
    %3 = vector.broadcast %1 : vector<1x256xf32> to vector<64x256xf32>
    %4 = arith.mulf %2, %3 : vector<64x256xf32>
    %c0_3 = arith.constant 0 : index
    %c0_4 = arith.constant 0 : index
    %5 = vector.load %arg3[%c0_3, %c0_4] : memref<1x256xf32, #tpu.memory_space<vmem>>, vector<1x256xf32>
    %6 = vector.broadcast %5 : vector<1x256xf32> to vector<64x256xf32>
    %7 = arith.addf %4, %6 : vector<64x256xf32>
    %8 = vector.extract_strided_slice %7 {offsets = [0, 0], sizes = [64, 64], strides = [1, 1]} : vector<64x256xf32> to vector<64x64xf32>
    %c0_5 = arith.constant 0 : index
    %c0_6 = arith.constant 0 : index
    %9 = vector.load %arg11[%c0_5, %c0_6] : memref<64x64xf32, #tpu.memory_space<vmem>>, vector<64x64xf32>
    tpu.vector_store %arg11[%c0_5, %c0_6], %8 {strides = array<i32>} : memref<64x64xf32, #tpu.memory_space<vmem>>, vector<64x64xf32>,
    %10 = vector.extract_strided_slice %7 {offsets = [0, 64], sizes = [64, 64], strides = [1, 1]} : vector<64x256xf32> to vector<64x64xf32>
    %c0_7 = arith.constant 0 : index
    %c0_8 = arith.constant 0 : index
    %11 = vector.load %arg12[%c0_7, %c0_8] : memref<64x64xf32, #tpu.memory_space<vmem>>, vector<64x64xf32>
    tpu.vector_store %arg12[%c0_7, %c0_8], %10 {strides = array<i32>} : memref<64x64xf32, #tpu.memory_space<vmem>>, vector<64x64xf32>,
    %12 = vector.extract_strided_slice %7 {offsets = [0, 128], sizes = [64, 64], strides = [1, 1]} : vector<64x256xf32> to vector<64x64xf32>
    %c0_9 = arith.constant 0 : index
    %c0_10 = arith.constant 0 : index
    %13 = vector.load %arg13[%c0_9, %c0_10] : memref<64x64xf32, #tpu.memory_space<vmem>>, vector<64x64xf32>
    tpu.vector_store %arg13[%c0_9, %c0_10], %12 {strides = array<i32>} : memref<64x64xf32, #tpu.memory_space<vmem>>, vector<64x64xf32>,
    %14 = vector.extract_strided_slice %7 {offsets = [0, 192], sizes = [64, 64], strides = [1, 1]} : vector<64x256xf32> to vector<64x64xf32>
    %c0_11 = arith.constant 0 : index
    %c0_12 = arith.constant 0 : index
    %15 = vector.load %arg14[%c0_11, %c0_12] : memref<64x64xf32, #tpu.memory_space<vmem>>, vector<64x64xf32>
    tpu.vector_store %arg14[%c0_11, %c0_12], %14 {strides = array<i32>} : memref<64x64xf32, #tpu.memory_space<vmem>>, vector<64x64xf32>,
    %c0_13 = arith.constant 0 : index
    %c0_14 = arith.constant 0 : index
    %16 = vector.load %arg4[%c0_13, %c0_14] : memref<64x64xf32, #tpu.memory_space<vmem>>, vector<64x64xf32>
    %c0_15 = arith.constant 0 : index
    %c0_16 = arith.constant 0 : index
    %17 = vector.load %arg5[%c0_15, %c0_16] : memref<64x64xf32, #tpu.memory_space<vmem>>, vector<64x64xf32>
    %c0_17 = arith.constant 0 : index
    %c0_18 = arith.constant 0 : index
    %18 = vector.load %arg6[%c0_17, %c0_18] : memref<64x64xf32, #tpu.memory_space<vmem>>, vector<64x64xf32>
    %c0_19 = arith.constant 0 : index
    %c0_20 = arith.constant 0 : index
    %19 = vector.load %arg7[%c0_19, %c0_20] : memref<64x64xf32, #tpu.memory_space<vmem>>, vector<64x64xf32>
    %cst = arith.constant 0.000000e+00 : f32
    %20 = vector.broadcast %cst : f32 to vector<8x64xf32>
    %cst_21 = arith.constant 0.000000e+00 : f32
    %21 = vector.broadcast %cst_21 : f32 to vector<8x64xf32>
    %c0_i32 = arith.constant 0 : i32
    %c8_i32 = arith.constant 8 : i32
    %22 = arith.muli %c0_i32, %c8_i32 : i32
    %23 = tpu.assume_multiple %22, 8 : i32
    %24 = arith.index_cast %23 : i32 to index
    %c0_22 = arith.constant 0 : index
    %25 = vector.load %arg11[%24, %c0_22] : memref<64x64xf32, #tpu.memory_space<vmem>>, vector<8x64xf32>
    %cst_23 = arith.constant dense<0.000000e+00> : vector<8x64xf32>
    %26 = tpu.matmul %20, %16, %cst_23 {dimension_numbers = #tpu.dot_dimension_numbers<[1], [0], [0], [1], [0, 0, 1, 1], [], []>} : vector<8x64xf32>, vector<64x64xf32>, vector<8x64xf32> -> vector<8x64xf32>
    %27 = arith.addf %25, %26 : vector<8x64xf32>
    %28 = arith.index_cast %23 : i32 to index
    %c0_24 = arith.constant 0 : index
    %29 = vector.load %arg12[%28, %c0_24] : memref<64x64xf32, #tpu.memory_space<vmem>>, vector<8x64xf32>
    %cst_25 = arith.constant dense<0.000000e+00> : vector<8x64xf32>
    %30 = tpu.matmul %20, %17, %cst_25 {dimension_numbers = #tpu.dot_dimension_numbers<[1], [0], [0], [1], [0, 0, 1, 1], [], []>} : vector<8x64xf32>, vector<64x64xf32>, vector<8x64xf32> -> vector<8x64xf32>
    %31 = arith.addf %29, %30 : vector<8x64xf32>
    %32 = arith.index_cast %23 : i32 to index
    %c0_26 = arith.constant 0 : index
    %33 = vector.load %arg13[%32, %c0_26] : memref<64x64xf32, #tpu.memory_space<vmem>>, vector<8x64xf32>
    %cst_27 = arith.constant dense<0.000000e+00> : vector<8x64xf32>
    %34 = tpu.matmul %20, %18, %cst_27 {dimension_numbers = #tpu.dot_dimension_numbers<[1], [0], [0], [1], [0, 0, 1, 1], [], []>} : vector<8x64xf32>, vector<64x64xf32>, vector<8x64xf32> -> vector<8x64xf32>
    %35 = arith.addf %33, %34 : vector<8x64xf32>
    %36 = arith.index_cast %23 : i32 to index
    %c0_28 = arith.constant 0 : index
    %37 = vector.load %arg14[%36, %c0_28] : memref<64x64xf32, #tpu.memory_space<vmem>>, vector<8x64xf32>
    %cst_29 = arith.constant dense<0.000000e+00> : vector<8x64xf32>
    %38 = tpu.matmul %20, %19, %cst_29 {dimension_numbers = #tpu.dot_dimension_numbers<[1], [0], [0], [1], [0, 0, 1, 1], [], []>} : vector<8x64xf32>, vector<64x64xf32>, vector<8x64xf32> -> vector<8x64xf32>
    %39 = arith.addf %37, %38 : vector<8x64xf32>
    %40 = arith.negf %27 : vector<8x64xf32>
    %41 = math.exp %40 : vector<8x64xf32>
    %cst_30 = arith.constant 1.000000e+00 : f32
    %42 = vector.broadcast %cst_30 : f32 to vector<8x64xf32>
    %43 = arith.addf %42, %41 : vector<8x64xf32>
    %44 = arith.divf %42, %43 : vector<8x64xf32>
    %45 = arith.negf %31 : vector<8x64xf32>
    %46 = math.exp %45 : vector<8x64xf32>
    %cst_31 = arith.constant 1.000000e+00 : f32
    %47 = vector.broadcast %cst_31 : f32 to vector<8x64xf32>
    %48 = arith.addf %47, %46 : vector<8x64xf32>
    %49 = arith.divf %47, %48 : vector<8x64xf32>
    %50 = math.tanh %35 : vector<8x64xf32>
    %51 = arith.negf %39 : vector<8x64xf32>
    %52 = math.exp %51 : vector<8x64xf32>
    %cst_32 = arith.constant 1.000000e+00 : f32
    %53 = vector.broadcast %cst_32 : f32 to vector<8x64xf32>
    %54 = arith.addf %53, %52 : vector<8x64xf32>
    %55 = arith.divf %53, %54 : vector<8x64xf32>
    %56 = arith.mulf %49, %21 : vector<8x64xf32>
    %57 = arith.mulf %44, %50 : vector<8x64xf32>
    %58 = arith.addf %56, %57 : vector<8x64xf32>
    %59 = math.tanh %58 : vector<8x64xf32>
    %60 = arith.mulf %55, %59 : vector<8x64xf32>
    %c1_i32 = arith.constant 1 : i32
    %c8_i32_33 = arith.constant 8 : i32
    %61 = arith.muli %c1_i32, %c8_i32_33 : i32
    %62 = tpu.assume_multiple %61, 8 : i32
    %63 = arith.index_cast %62 : i32 to index
    %c0_34 = arith.constant 0 : index
    %64 = vector.load %arg11[%63, %c0_34] : memref<64x64xf32, #tpu.memory_space<vmem>>, vector<8x64xf32>
    %cst_35 = arith.constant dense<0.000000e+00> : vector<8x64xf32>
    %65 = tpu.matmul %60, %16, %cst_35 {dimension_numbers = #tpu.dot_dimension_numbers<[1], [0], [0], [1], [0, 0, 1, 1], [], []>} : vector<8x64xf32>, vector<64x64xf32>, vector<8x64xf32> -> vector<8x64xf32>
    %66 = arith.addf %64, %65 : vector<8x64xf32>
    %67 = arith.index_cast %62 : i32 to index
    %c0_36 = arith.constant 0 : index
    %68 = vector.load %arg12[%67, %c0_36] : memref<64x64xf32, #tpu.memory_space<vmem>>, vector<8x64xf32>
    %cst_37 = arith.constant dense<0.000000e+00> : vector<8x64xf32>
    %69 = tpu.matmul %60, %17, %cst_37 {dimension_numbers = #tpu.dot_dimension_numbers<[1], [0], [0], [1], [0, 0, 1, 1], [], []>} : vector<8x64xf32>, vector<64x64xf32>, vector<8x64xf32> -> vector<8x64xf32>
    %70 = arith.addf %68, %69 : vector<8x64xf32>
    %71 = arith.index_cast %62 : i32 to index
    %c0_38 = arith.constant 0 : index
    %72 = vector.load %arg13[%71, %c0_38] : memref<64x64xf32, #tpu.memory_space<vmem>>, vector<8x64xf32>
    %cst_39 = arith.constant dense<0.000000e+00> : vector<8x64xf32>
    %73 = tpu.matmul %60, %18, %cst_39 {dimension_numbers = #tpu.dot_dimension_numbers<[1], [0], [0], [1], [0, 0, 1, 1], [], []>} : vector<8x64xf32>, vector<64x64xf32>, vector<8x64xf32> -> vector<8x64xf32>
    %74 = arith.addf %72, %73 : vector<8x64xf32>
    %75 = arith.index_cast %62 : i32 to index
    %c0_40 = arith.constant 0 : index
    %76 = vector.load %arg14[%75, %c0_40] : memref<64x64xf32, #tpu.memory_space<vmem>>, vector<8x64xf32>
    %cst_41 = arith.constant dense<0.000000e+00> : vector<8x64xf32>
    %77 = tpu.matmul %60, %19, %cst_41 {dimension_numbers = #tpu.dot_dimension_numbers<[1], [0], [0], [1], [0, 0, 1, 1], [], []>} : vector<8x64xf32>, vector<64x64xf32>, vector<8x64xf32> -> vector<8x64xf32>
    %78 = arith.addf %76, %77 : vector<8x64xf32>
    %79 = arith.negf %66 : vector<8x64xf32>
    %80 = math.exp %79 : vector<8x64xf32>
    %cst_42 = arith.constant 1.000000e+00 : f32
    %81 = vector.broadcast %cst_42 : f32 to vector<8x64xf32>
    %82 = arith.addf %81, %80 : vector<8x64xf32>
    %83 = arith.divf %81, %82 : vector<8x64xf32>
    %84 = arith.negf %70 : vector<8x64xf32>
    %85 = math.exp %84 : vector<8x64xf32>
    %cst_43 = arith.constant 1.000000e+00 : f32
    %86 = vector.broadcast %cst_43 : f32 to vector<8x64xf32>
    %87 = arith.addf %86, %85 : vector<8x64xf32>
    %88 = arith.divf %86, %87 : vector<8x64xf32>
    %89 = math.tanh %74 : vector<8x64xf32>
    %90 = arith.negf %78 : vector<8x64xf32>
    %91 = math.exp %90 : vector<8x64xf32>
    %cst_44 = arith.constant 1.000000e+00 : f32
    %92 = vector.broadcast %cst_44 : f32 to vector<8x64xf32>
    %93 = arith.addf %92, %91 : vector<8x64xf32>
    %94 = arith.divf %92, %93 : vector<8x64xf32>
    %95 = arith.mulf %88, %58 : vector<8x64xf32>
    %96 = arith.mulf %83, %89 : vector<8x64xf32>
    %97 = arith.addf %95, %96 : vector<8x64xf32>
    %98 = math.tanh %97 : vector<8x64xf32>
    %99 = arith.mulf %94, %98 : vector<8x64xf32>
    %c2_i32 = arith.constant 2 : i32
    %c8_i32_45 = arith.constant 8 : i32
    %100 = arith.muli %c2_i32, %c8_i32_45 : i32
    %101 = tpu.assume_multiple %100, 8 : i32
    %102 = arith.index_cast %101 : i32 to index
    %c0_46 = arith.constant 0 : index
    %103 = vector.load %arg11[%102, %c0_46] : memref<64x64xf32, #tpu.memory_space<vmem>>, vector<8x64xf32>
    %cst_47 = arith.constant dense<0.000000e+00> : vector<8x64xf32>
    %104 = tpu.matmul %99, %16, %cst_47 {dimension_numbers = #tpu.dot_dimension_numbers<[1], [0], [0], [1], [0, 0, 1, 1], [], []>} : vector<8x64xf32>, vector<64x64xf32>, vector<8x64xf32> -> vector<8x64xf32>
    %105 = arith.addf %103, %104 : vector<8x64xf32>
    %106 = arith.index_cast %101 : i32 to index
    %c0_48 = arith.constant 0 : index
    %107 = vector.load %arg12[%106, %c0_48] : memref<64x64xf32, #tpu.memory_space<vmem>>, vector<8x64xf32>
    %cst_49 = arith.constant dense<0.000000e+00> : vector<8x64xf32>
    %108 = tpu.matmul %99, %17, %cst_49 {dimension_numbers = #tpu.dot_dimension_numbers<[1], [0], [0], [1], [0, 0, 1, 1], [], []>} : vector<8x64xf32>, vector<64x64xf32>, vector<8x64xf32> -> vector<8x64xf32>
    %109 = arith.addf %107, %108 : vector<8x64xf32>
    %110 = arith.index_cast %101 : i32 to index
    %c0_50 = arith.constant 0 : index
    %111 = vector.load %arg13[%110, %c0_50] : memref<64x64xf32, #tpu.memory_space<vmem>>, vector<8x64xf32>
    %cst_51 = arith.constant dense<0.000000e+00> : vector<8x64xf32>
    %112 = tpu.matmul %99, %18, %cst_51 {dimension_numbers = #tpu.dot_dimension_numbers<[1], [0], [0], [1], [0, 0, 1, 1], [], []>} : vector<8x64xf32>, vector<64x64xf32>, vector<8x64xf32> -> vector<8x64xf32>
    %113 = arith.addf %111, %112 : vector<8x64xf32>
    %114 = arith.index_cast %101 : i32 to index
    %c0_52 = arith.constant 0 : index
    %115 = vector.load %arg14[%114, %c0_52] : memref<64x64xf32, #tpu.memory_space<vmem>>, vector<8x64xf32>
    %cst_53 = arith.constant dense<0.000000e+00> : vector<8x64xf32>
    %116 = tpu.matmul %99, %19, %cst_53 {dimension_numbers = #tpu.dot_dimension_numbers<[1], [0], [0], [1], [0, 0, 1, 1], [], []>} : vector<8x64xf32>, vector<64x64xf32>, vector<8x64xf32> -> vector<8x64xf32>
    %117 = arith.addf %115, %116 : vector<8x64xf32>
    %118 = arith.negf %105 : vector<8x64xf32>
    %119 = math.exp %118 : vector<8x64xf32>
    %cst_54 = arith.constant 1.000000e+00 : f32
    %120 = vector.broadcast %cst_54 : f32 to vector<8x64xf32>
    %121 = arith.addf %120, %119 : vector<8x64xf32>
    %122 = arith.divf %120, %121 : vector<8x64xf32>
    %123 = arith.negf %109 : vector<8x64xf32>
    %124 = math.exp %123 : vector<8x64xf32>
    %cst_55 = arith.constant 1.000000e+00 : f32
    %125 = vector.broadcast %cst_55 : f32 to vector<8x64xf32>
    %126 = arith.addf %125, %124 : vector<8x64xf32>
    %127 = arith.divf %125, %126 : vector<8x64xf32>
    %128 = math.tanh %113 : vector<8x64xf32>
    %129 = arith.negf %117 : vector<8x64xf32>
    %130 = math.exp %129 : vector<8x64xf32>
    %cst_56 = arith.constant 1.000000e+00 : f32
    %131 = vector.broadcast %cst_56 : f32 to vector<8x64xf32>
    %132 = arith.addf %131, %130 : vector<8x64xf32>
    %133 = arith.divf %131, %132 : vector<8x64xf32>
    %134 = arith.mulf %127, %97 : vector<8x64xf32>
    %135 = arith.mulf %122, %128 : vector<8x64xf32>
    %136 = arith.addf %134, %135 : vector<8x64xf32>
    %137 = math.tanh %136 : vector<8x64xf32>
    %138 = arith.mulf %133, %137 : vector<8x64xf32>
    %c3_i32 = arith.constant 3 : i32
    %c8_i32_57 = arith.constant 8 : i32
    %139 = arith.muli %c3_i32, %c8_i32_57 : i32
    %140 = tpu.assume_multiple %139, 8 : i32
    %141 = arith.index_cast %140 : i32 to index
    %c0_58 = arith.constant 0 : index
    %142 = vector.load %arg11[%141, %c0_58] : memref<64x64xf32, #tpu.memory_space<vmem>>, vector<8x64xf32>
    %cst_59 = arith.constant dense<0.000000e+00> : vector<8x64xf32>
    %143 = tpu.matmul %138, %16, %cst_59 {dimension_numbers = #tpu.dot_dimension_numbers<[1], [0], [0], [1], [0, 0, 1, 1], [], []>} : vector<8x64xf32>, vector<64x64xf32>, vector<8x64xf32> -> vector<8x64xf32>
    %144 = arith.addf %142, %143 : vector<8x64xf32>
    %145 = arith.index_cast %140 : i32 to index
    %c0_60 = arith.constant 0 : index
    %146 = vector.load %arg12[%145, %c0_60] : memref<64x64xf32, #tpu.memory_space<vmem>>, vector<8x64xf32>
    %cst_61 = arith.constant dense<0.000000e+00> : vector<8x64xf32>
    %147 = tpu.matmul %138, %17, %cst_61 {dimension_numbers = #tpu.dot_dimension_numbers<[1], [0], [0], [1], [0, 0, 1, 1], [], []>} : vector<8x64xf32>, vector<64x64xf32>, vector<8x64xf32> -> vector<8x64xf32>
    %148 = arith.addf %146, %147 : vector<8x64xf32>
    %149 = arith.index_cast %140 : i32 to index
    %c0_62 = arith.constant 0 : index
    %150 = vector.load %arg13[%149, %c0_62] : memref<64x64xf32, #tpu.memory_space<vmem>>, vector<8x64xf32>
    %cst_63 = arith.constant dense<0.000000e+00> : vector<8x64xf32>
    %151 = tpu.matmul %138, %18, %cst_63 {dimension_numbers = #tpu.dot_dimension_numbers<[1], [0], [0], [1], [0, 0, 1, 1], [], []>} : vector<8x64xf32>, vector<64x64xf32>, vector<8x64xf32> -> vector<8x64xf32>
    %152 = arith.addf %150, %151 : vector<8x64xf32>
    %153 = arith.index_cast %140 : i32 to index
    %c0_64 = arith.constant 0 : index
    %154 = vector.load %arg14[%153, %c0_64] : memref<64x64xf32, #tpu.memory_space<vmem>>, vector<8x64xf32>
    %cst_65 = arith.constant dense<0.000000e+00> : vector<8x64xf32>
    %155 = tpu.matmul %138, %19, %cst_65 {dimension_numbers = #tpu.dot_dimension_numbers<[1], [0], [0], [1], [0, 0, 1, 1], [], []>} : vector<8x64xf32>, vector<64x64xf32>, vector<8x64xf32> -> vector<8x64xf32>
    %156 = arith.addf %154, %155 : vector<8x64xf32>
    %157 = arith.negf %144 : vector<8x64xf32>
    %158 = math.exp %157 : vector<8x64xf32>
    %cst_66 = arith.constant 1.000000e+00 : f32
    %159 = vector.broadcast %cst_66 : f32 to vector<8x64xf32>
    %160 = arith.addf %159, %158 : vector<8x64xf32>
    %161 = arith.divf %159, %160 : vector<8x64xf32>
    %162 = arith.negf %148 : vector<8x64xf32>
    %163 = math.exp %162 : vector<8x64xf32>
    %cst_67 = arith.constant 1.000000e+00 : f32
    %164 = vector.broadcast %cst_67 : f32 to vector<8x64xf32>
    %165 = arith.addf %164, %163 : vector<8x64xf32>
    %166 = arith.divf %164, %165 : vector<8x64xf32>
    %167 = math.tanh %152 : vector<8x64xf32>
    %168 = arith.negf %156 : vector<8x64xf32>
    %169 = math.exp %168 : vector<8x64xf32>
    %cst_68 = arith.constant 1.000000e+00 : f32
    %170 = vector.broadcast %cst_68 : f32 to vector<8x64xf32>
    %171 = arith.addf %170, %169 : vector<8x64xf32>
    %172 = arith.divf %170, %171 : vector<8x64xf32>
    %173 = arith.mulf %166, %136 : vector<8x64xf32>
    %174 = arith.mulf %161, %167 : vector<8x64xf32>
    %175 = arith.addf %173, %174 : vector<8x64xf32>
    %176 = math.tanh %175 : vector<8x64xf32>
    %177 = arith.mulf %172, %176 : vector<8x64xf32>
    %c4_i32 = arith.constant 4 : i32
    %c8_i32_69 = arith.constant 8 : i32
    %178 = arith.muli %c4_i32, %c8_i32_69 : i32
    %179 = tpu.assume_multiple %178, 8 : i32
    %180 = arith.index_cast %179 : i32 to index
    %c0_70 = arith.constant 0 : index
    %181 = vector.load %arg11[%180, %c0_70] : memref<64x64xf32, #tpu.memory_space<vmem>>, vector<8x64xf32>
    %cst_71 = arith.constant dense<0.000000e+00> : vector<8x64xf32>
    %182 = tpu.matmul %177, %16, %cst_71 {dimension_numbers = #tpu.dot_dimension_numbers<[1], [0], [0], [1], [0, 0, 1, 1], [], []>} : vector<8x64xf32>, vector<64x64xf32>, vector<8x64xf32> -> vector<8x64xf32>
    %183 = arith.addf %181, %182 : vector<8x64xf32>
    %184 = arith.index_cast %179 : i32 to index
    %c0_72 = arith.constant 0 : index
    %185 = vector.load %arg12[%184, %c0_72] : memref<64x64xf32, #tpu.memory_space<vmem>>, vector<8x64xf32>
    %cst_73 = arith.constant dense<0.000000e+00> : vector<8x64xf32>
    %186 = tpu.matmul %177, %17, %cst_73 {dimension_numbers = #tpu.dot_dimension_numbers<[1], [0], [0], [1], [0, 0, 1, 1], [], []>} : vector<8x64xf32>, vector<64x64xf32>, vector<8x64xf32> -> vector<8x64xf32>
    %187 = arith.addf %185, %186 : vector<8x64xf32>
    %188 = arith.index_cast %179 : i32 to index
    %c0_74 = arith.constant 0 : index
    %189 = vector.load %arg13[%188, %c0_74] : memref<64x64xf32, #tpu.memory_space<vmem>>, vector<8x64xf32>
    %cst_75 = arith.constant dense<0.000000e+00> : vector<8x64xf32>
    %190 = tpu.matmul %177, %18, %cst_75 {dimension_numbers = #tpu.dot_dimension_numbers<[1], [0], [0], [1], [0, 0, 1, 1], [], []>} : vector<8x64xf32>, vector<64x64xf32>, vector<8x64xf32> -> vector<8x64xf32>
    %191 = arith.addf %189, %190 : vector<8x64xf32>
    %192 = arith.index_cast %179 : i32 to index
    %c0_76 = arith.constant 0 : index
    %193 = vector.load %arg14[%192, %c0_76] : memref<64x64xf32, #tpu.memory_space<vmem>>, vector<8x64xf32>
    %cst_77 = arith.constant dense<0.000000e+00> : vector<8x64xf32>
    %194 = tpu.matmul %177, %19, %cst_77 {dimension_numbers = #tpu.dot_dimension_numbers<[1], [0], [0], [1], [0, 0, 1, 1], [], []>} : vector<8x64xf32>, vector<64x64xf32>, vector<8x64xf32> -> vector<8x64xf32>
    %195 = arith.addf %193, %194 : vector<8x64xf32>
    %196 = arith.negf %183 : vector<8x64xf32>
    %197 = math.exp %196 : vector<8x64xf32>
    %cst_78 = arith.constant 1.000000e+00 : f32
    %198 = vector.broadcast %cst_78 : f32 to vector<8x64xf32>
    %199 = arith.addf %198, %197 : vector<8x64xf32>
    %200 = arith.divf %198, %199 : vector<8x64xf32>
    %201 = arith.negf %187 : vector<8x64xf32>
    %202 = math.exp %201 : vector<8x64xf32>
    %cst_79 = arith.constant 1.000000e+00 : f32
    %203 = vector.broadcast %cst_79 : f32 to vector<8x64xf32>
    %204 = arith.addf %203, %202 : vector<8x64xf32>
    %205 = arith.divf %203, %204 : vector<8x64xf32>
    %206 = math.tanh %191 : vector<8x64xf32>
    %207 = arith.negf %195 : vector<8x64xf32>
    %208 = math.exp %207 : vector<8x64xf32>
    %cst_80 = arith.constant 1.000000e+00 : f32
    %209 = vector.broadcast %cst_80 : f32 to vector<8x64xf32>
    %210 = arith.addf %209, %208 : vector<8x64xf32>
    %211 = arith.divf %209, %210 : vector<8x64xf32>
    %212 = arith.mulf %205, %175 : vector<8x64xf32>
    %213 = arith.mulf %200, %206 : vector<8x64xf32>
    %214 = arith.addf %212, %213 : vector<8x64xf32>
    %215 = math.tanh %214 : vector<8x64xf32>
    %216 = arith.mulf %211, %215 : vector<8x64xf32>
    %c5_i32 = arith.constant 5 : i32
    %c8_i32_81 = arith.constant 8 : i32
    %217 = arith.muli %c5_i32, %c8_i32_81 : i32
    %218 = tpu.assume_multiple %217, 8 : i32
    %219 = arith.index_cast %218 : i32 to index
    %c0_82 = arith.constant 0 : index
    %220 = vector.load %arg11[%219, %c0_82] : memref<64x64xf32, #tpu.memory_space<vmem>>, vector<8x64xf32>
    %cst_83 = arith.constant dense<0.000000e+00> : vector<8x64xf32>
    %221 = tpu.matmul %216, %16, %cst_83 {dimension_numbers = #tpu.dot_dimension_numbers<[1], [0], [0], [1], [0, 0, 1, 1], [], []>} : vector<8x64xf32>, vector<64x64xf32>, vector<8x64xf32> -> vector<8x64xf32>
    %222 = arith.addf %220, %221 : vector<8x64xf32>
    %223 = arith.index_cast %218 : i32 to index
    %c0_84 = arith.constant 0 : index
    %224 = vector.load %arg12[%223, %c0_84] : memref<64x64xf32, #tpu.memory_space<vmem>>, vector<8x64xf32>
    %cst_85 = arith.constant dense<0.000000e+00> : vector<8x64xf32>
    %225 = tpu.matmul %216, %17, %cst_85 {dimension_numbers = #tpu.dot_dimension_numbers<[1], [0], [0], [1], [0, 0, 1, 1], [], []>} : vector<8x64xf32>, vector<64x64xf32>, vector<8x64xf32> -> vector<8x64xf32>
    %226 = arith.addf %224, %225 : vector<8x64xf32>
    %227 = arith.index_cast %218 : i32 to index
    %c0_86 = arith.constant 0 : index
    %228 = vector.load %arg13[%227, %c0_86] : memref<64x64xf32, #tpu.memory_space<vmem>>, vector<8x64xf32>
    %cst_87 = arith.constant dense<0.000000e+00> : vector<8x64xf32>
    %229 = tpu.matmul %216, %18, %cst_87 {dimension_numbers = #tpu.dot_dimension_numbers<[1], [0], [0], [1], [0, 0, 1, 1], [], []>} : vector<8x64xf32>, vector<64x64xf32>, vector<8x64xf32> -> vector<8x64xf32>
    %230 = arith.addf %228, %229 : vector<8x64xf32>
    %231 = arith.index_cast %218 : i32 to index
    %c0_88 = arith.constant 0 : index
    %232 = vector.load %arg14[%231, %c0_88] : memref<64x64xf32, #tpu.memory_space<vmem>>, vector<8x64xf32>
    %cst_89 = arith.constant dense<0.000000e+00> : vector<8x64xf32>
    %233 = tpu.matmul %216, %19, %cst_89 {dimension_numbers = #tpu.dot_dimension_numbers<[1], [0], [0], [1], [0, 0, 1, 1], [], []>} : vector<8x64xf32>, vector<64x64xf32>, vector<8x64xf32> -> vector<8x64xf32>
    %234 = arith.addf %232, %233 : vector<8x64xf32>
    %235 = arith.negf %222 : vector<8x64xf32>
    %236 = math.exp %235 : vector<8x64xf32>
    %cst_90 = arith.constant 1.000000e+00 : f32
    %237 = vector.broadcast %cst_90 : f32 to vector<8x64xf32>
    %238 = arith.addf %237, %236 : vector<8x64xf32>
    %239 = arith.divf %237, %238 : vector<8x64xf32>
    %240 = arith.negf %226 : vector<8x64xf32>
    %241 = math.exp %240 : vector<8x64xf32>
    %cst_91 = arith.constant 1.000000e+00 : f32
    %242 = vector.broadcast %cst_91 : f32 to vector<8x64xf32>
    %243 = arith.addf %242, %241 : vector<8x64xf32>
    %244 = arith.divf %242, %243 : vector<8x64xf32>
    %245 = math.tanh %230 : vector<8x64xf32>
    %246 = arith.negf %234 : vector<8x64xf32>
    %247 = math.exp %246 : vector<8x64xf32>
    %cst_92 = arith.constant 1.000000e+00 : f32
    %248 = vector.broadcast %cst_92 : f32 to vector<8x64xf32>
    %249 = arith.addf %248, %247 : vector<8x64xf32>
    %250 = arith.divf %248, %249 : vector<8x64xf32>
    %251 = arith.mulf %244, %214 : vector<8x64xf32>
    %252 = arith.mulf %239, %245 : vector<8x64xf32>
    %253 = arith.addf %251, %252 : vector<8x64xf32>
    %254 = math.tanh %253 : vector<8x64xf32>
    %255 = arith.mulf %250, %254 : vector<8x64xf32>
    %c6_i32 = arith.constant 6 : i32
    %c8_i32_93 = arith.constant 8 : i32
    %256 = arith.muli %c6_i32, %c8_i32_93 : i32
    %257 = tpu.assume_multiple %256, 8 : i32
    %258 = arith.index_cast %257 : i32 to index
    %c0_94 = arith.constant 0 : index
    %259 = vector.load %arg11[%258, %c0_94] : memref<64x64xf32, #tpu.memory_space<vmem>>, vector<8x64xf32>
    %cst_95 = arith.constant dense<0.000000e+00> : vector<8x64xf32>
    %260 = tpu.matmul %255, %16, %cst_95 {dimension_numbers = #tpu.dot_dimension_numbers<[1], [0], [0], [1], [0, 0, 1, 1], [], []>} : vector<8x64xf32>, vector<64x64xf32>, vector<8x64xf32> -> vector<8x64xf32>
    %261 = arith.addf %259, %260 : vector<8x64xf32>
    %262 = arith.index_cast %257 : i32 to index
    %c0_96 = arith.constant 0 : index
    %263 = vector.load %arg12[%262, %c0_96] : memref<64x64xf32, #tpu.memory_space<vmem>>, vector<8x64xf32>
    %cst_97 = arith.constant dense<0.000000e+00> : vector<8x64xf32>
    %264 = tpu.matmul %255, %17, %cst_97 {dimension_numbers = #tpu.dot_dimension_numbers<[1], [0], [0], [1], [0, 0, 1, 1], [], []>} : vector<8x64xf32>, vector<64x64xf32>, vector<8x64xf32> -> vector<8x64xf32>
    %265 = arith.addf %263, %264 : vector<8x64xf32>
    %266 = arith.index_cast %257 : i32 to index
    %c0_98 = arith.constant 0 : index
    %267 = vector.load %arg13[%266, %c0_98] : memref<64x64xf32, #tpu.memory_space<vmem>>, vector<8x64xf32>
    %cst_99 = arith.constant dense<0.000000e+00> : vector<8x64xf32>
    %268 = tpu.matmul %255, %18, %cst_99 {dimension_numbers = #tpu.dot_dimension_numbers<[1], [0], [0], [1], [0, 0, 1, 1], [], []>} : vector<8x64xf32>, vector<64x64xf32>, vector<8x64xf32> -> vector<8x64xf32>
    %269 = arith.addf %267, %268 : vector<8x64xf32>
    %270 = arith.index_cast %257 : i32 to index
    %c0_100 = arith.constant 0 : index
    %271 = vector.load %arg14[%270, %c0_100] : memref<64x64xf32, #tpu.memory_space<vmem>>, vector<8x64xf32>
    %cst_101 = arith.constant dense<0.000000e+00> : vector<8x64xf32>
    %272 = tpu.matmul %255, %19, %cst_101 {dimension_numbers = #tpu.dot_dimension_numbers<[1], [0], [0], [1], [0, 0, 1, 1], [], []>} : vector<8x64xf32>, vector<64x64xf32>, vector<8x64xf32> -> vector<8x64xf32>
    %273 = arith.addf %271, %272 : vector<8x64xf32>
    %274 = arith.negf %261 : vector<8x64xf32>
    %275 = math.exp %274 : vector<8x64xf32>
    %cst_102 = arith.constant 1.000000e+00 : f32
    %276 = vector.broadcast %cst_102 : f32 to vector<8x64xf32>
    %277 = arith.addf %276, %275 : vector<8x64xf32>
    %278 = arith.divf %276, %277 : vector<8x64xf32>
    %279 = arith.negf %265 : vector<8x64xf32>
    %280 = math.exp %279 : vector<8x64xf32>
    %cst_103 = arith.constant 1.000000e+00 : f32
    %281 = vector.broadcast %cst_103 : f32 to vector<8x64xf32>
    %282 = arith.addf %281, %280 : vector<8x64xf32>
    %283 = arith.divf %281, %282 : vector<8x64xf32>
    %284 = math.tanh %269 : vector<8x64xf32>
    %285 = arith.negf %273 : vector<8x64xf32>
    %286 = math.exp %285 : vector<8x64xf32>
    %cst_104 = arith.constant 1.000000e+00 : f32
    %287 = vector.broadcast %cst_104 : f32 to vector<8x64xf32>
    %288 = arith.addf %287, %286 : vector<8x64xf32>
    %289 = arith.divf %287, %288 : vector<8x64xf32>
    %290 = arith.mulf %283, %253 : vector<8x64xf32>
    %291 = arith.mulf %278, %284 : vector<8x64xf32>
    %292 = arith.addf %290, %291 : vector<8x64xf32>
    %293 = math.tanh %292 : vector<8x64xf32>
    %294 = arith.mulf %289, %293 : vector<8x64xf32>
    %c7_i32 = arith.constant 7 : i32
    %c8_i32_105 = arith.constant 8 : i32
    %295 = arith.muli %c7_i32, %c8_i32_105 : i32
    %296 = tpu.assume_multiple %295, 8 : i32
    %297 = arith.index_cast %296 : i32 to index
    %c0_106 = arith.constant 0 : index
    %298 = vector.load %arg11[%297, %c0_106] : memref<64x64xf32, #tpu.memory_space<vmem>>, vector<8x64xf32>
    %cst_107 = arith.constant dense<0.000000e+00> : vector<8x64xf32>
    %299 = tpu.matmul %294, %16, %cst_107 {dimension_numbers = #tpu.dot_dimension_numbers<[1], [0], [0], [1], [0, 0, 1, 1], [], []>} : vector<8x64xf32>, vector<64x64xf32>, vector<8x64xf32> -> vector<8x64xf32>
    %300 = arith.addf %298, %299 : vector<8x64xf32>
    %301 = arith.index_cast %296 : i32 to index
    %c0_108 = arith.constant 0 : index
    %302 = vector.load %arg12[%301, %c0_108] : memref<64x64xf32, #tpu.memory_space<vmem>>, vector<8x64xf32>
    %cst_109 = arith.constant dense<0.000000e+00> : vector<8x64xf32>
    %303 = tpu.matmul %294, %17, %cst_109 {dimension_numbers = #tpu.dot_dimension_numbers<[1], [0], [0], [1], [0, 0, 1, 1], [], []>} : vector<8x64xf32>, vector<64x64xf32>, vector<8x64xf32> -> vector<8x64xf32>
    %304 = arith.addf %302, %303 : vector<8x64xf32>
    %305 = arith.index_cast %296 : i32 to index
    %c0_110 = arith.constant 0 : index
    %306 = vector.load %arg13[%305, %c0_110] : memref<64x64xf32, #tpu.memory_space<vmem>>, vector<8x64xf32>
    %cst_111 = arith.constant dense<0.000000e+00> : vector<8x64xf32>
    %307 = tpu.matmul %294, %18, %cst_111 {dimension_numbers = #tpu.dot_dimension_numbers<[1], [0], [0], [1], [0, 0, 1, 1], [], []>} : vector<8x64xf32>, vector<64x64xf32>, vector<8x64xf32> -> vector<8x64xf32>
    %308 = arith.addf %306, %307 : vector<8x64xf32>
    %309 = arith.index_cast %296 : i32 to index
    %c0_112 = arith.constant 0 : index
    %310 = vector.load %arg14[%309, %c0_112] : memref<64x64xf32, #tpu.memory_space<vmem>>, vector<8x64xf32>
    %cst_113 = arith.constant dense<0.000000e+00> : vector<8x64xf32>
    %311 = tpu.matmul %294, %19, %cst_113 {dimension_numbers = #tpu.dot_dimension_numbers<[1], [0], [0], [1], [0, 0, 1, 1], [], []>} : vector<8x64xf32>, vector<64x64xf32>, vector<8x64xf32> -> vector<8x64xf32>
    %312 = arith.addf %310, %311 : vector<8x64xf32>
    %313 = arith.negf %300 : vector<8x64xf32>
    %314 = math.exp %313 : vector<8x64xf32>
    %cst_114 = arith.constant 1.000000e+00 : f32
    %315 = vector.broadcast %cst_114 : f32 to vector<8x64xf32>
    %316 = arith.addf %315, %314 : vector<8x64xf32>
    %317 = arith.divf %315, %316 : vector<8x64xf32>
    %318 = arith.negf %304 : vector<8x64xf32>
    %319 = math.exp %318 : vector<8x64xf32>
    %cst_115 = arith.constant 1.000000e+00 : f32
    %320 = vector.broadcast %cst_115 : f32 to vector<8x64xf32>
    %321 = arith.addf %320, %319 : vector<8x64xf32>
    %322 = arith.divf %320, %321 : vector<8x64xf32>
    %323 = math.tanh %308 : vector<8x64xf32>
    %324 = arith.negf %312 : vector<8x64xf32>
    %325 = math.exp %324 : vector<8x64xf32>
    %cst_116 = arith.constant 1.000000e+00 : f32
    %326 = vector.broadcast %cst_116 : f32 to vector<8x64xf32>
    %327 = arith.addf %326, %325 : vector<8x64xf32>
    %328 = arith.divf %326, %327 : vector<8x64xf32>
    %329 = arith.mulf %322, %292 : vector<8x64xf32>
    %330 = arith.mulf %317, %323 : vector<8x64xf32>
    %331 = arith.addf %329, %330 : vector<8x64xf32>
    %332 = math.tanh %331 : vector<8x64xf32>
    %333 = arith.mulf %328, %332 : vector<8x64xf32>
    %c8_i32_117 = arith.constant 8 : i32
    %c0_118 = arith.constant 0 : index
    %c0_119 = arith.constant 0 : index
    %334 = vector.load %arg8[%c0_118, %c0_119] : memref<1x64xf32, #tpu.memory_space<vmem>>, vector<1x64xf32>
    %335 = vector.broadcast %334 : vector<1x64xf32> to vector<8x64xf32>
    %336 = arith.mulf %333, %335 : vector<8x64xf32>
    %cst_120 = arith.constant dense<0.000000e+00> : vector<8xf32>
    %337 = vector.multi_reduction <add>, %336, %cst_120 [1] : vector<8x64xf32> to vector<8xf32>
    %338 = vector.shape_cast %337 : vector<8xf32> to vector<8x1xf32>
    %c0_121 = arith.constant 0 : index
    %c0_122 = arith.constant 0 : index
    %339 = vector.load %arg9[%c0_121, %c0_122] : memref<1x1xf32, #tpu.memory_space<vmem>>, vector<1x1xf32>
    %340 = vector.broadcast %339 : vector<1x1xf32> to vector<8x1xf32>
    %341 = arith.addf %338, %340 : vector<8x1xf32>
    %c0_123 = arith.constant 0 : index
    %c0_124 = arith.constant 0 : index
    %342 = vector.load %arg10[%c0_123, %c0_124] : memref<8x1xf32, #tpu.memory_space<vmem>>, vector<8x1xf32>
    tpu.vector_store %arg10[%c0_123, %c0_124], %341 {strides = array<i32>} : memref<8x1xf32, #tpu.memory_space<vmem>>, vector<8x1xf32>,
    return
  }
  func.func @transform_0(%arg0: i32) -> (i32, i32) {
    %c0_i32 = arith.constant 0 : i32
    %c0_i32_0 = arith.constant 0 : i32
    %c0_i32_1 = arith.constant 0 : i32
    return %c0_i32, %c0_i32_0 : i32, i32
  }
  func.func @transform_1(%arg0: i32) -> (i32, i32) {
    %c0_i32 = arith.constant 0 : i32
    %c0_i32_0 = arith.constant 0 : i32
    %c0_i32_1 = arith.constant 0 : i32
    return %c0_i32, %c0_i32_0 : i32, i32
  }
  func.func @transform_2(%arg0: i32) -> (i32, i32) {
    %c0_i32 = arith.constant 0 : i32
    %c0_i32_0 = arith.constant 0 : i32
    %c0_i32_1 = arith.constant 0 : i32
    return %c0_i32, %c0_i32_0 : i32, i32
  }
  func.func @transform_3(%arg0: i32) -> (i32, i32) {
    %c0_i32 = arith.constant 0 : i32
    %c0_i32_0 = arith.constant 0 : i32
    %c0_i32_1 = arith.constant 0 : i32
    return %c0_i32, %c0_i32_0 : i32, i32
  }
  func.func @transform_4(%arg0: i32) -> (i32, i32) {
    %c0_i32 = arith.constant 0 : i32
    %c0_i32_0 = arith.constant 0 : i32
    %c0_i32_1 = arith.constant 0 : i32
    return %c0_i32, %c0_i32_0 : i32, i32
  }
  func.func @transform_5(%arg0: i32) -> (i32, i32) {
    %c0_i32 = arith.constant 0 : i32
    %c0_i32_0 = arith.constant 0 : i32
    %c0_i32_1 = arith.constant 0 : i32
    return %c0_i32, %c0_i32_0 : i32, i32
  }
  func.func @transform_6(%arg0: i32) -> (i32, i32) {
    %c0_i32 = arith.constant 0 : i32
    %c0_i32_0 = arith.constant 0 : i32
    %c0_i32_1 = arith.constant 0 : i32
    return %c0_i32, %c0_i32_0 : i32, i32
  }
  func.func @transform_7(%arg0: i32) -> (i32, i32) {
    %c0_i32 = arith.constant 0 : i32
    %c0_i32_0 = arith.constant 0 : i32
    %c0_i32_1 = arith.constant 0 : i32
    return %c0_i32, %c0_i32_0 : i32, i32
  }
  func.func @transform_8(%arg0: i32) -> (i32, i32) {
    %c0_i32 = arith.constant 0 : i32
    %c0_i32_0 = arith.constant 0 : i32
    %c0_i32_1 = arith.constant 0 : i32
    return %c0_i32, %c0_i32_0 : i32, i32
  }
  func.func @transform_9(%arg0: i32) -> (i32, i32) {
    %c0_i32 = arith.constant 0 : i32
    %c0_i32_0 = arith.constant 0 : i32
    %c0_i32_1 = arith.constant 0 : i32
    return %c0_i32, %c0_i32_0 : i32, i32
  }
}

</mosaic_0001>

<llo_original>
// kernel: tpu_custom_call.1
$region0: #{tpu_custom_call.1}
  #allocation0 [shape = 'u32[]', space=smem, size = 0x4, offset = 0x4, fixed_abs, tag = 'smem constant byte address 0x4 - core index']
  #allocation1 [shape = 'u32[144,128]{1,0:T(1,128)}', space=vmem, size = 0x12000, scoped, tag = 'internal scratch']
  #allocation2 [shape = 'f32[64,64]{1,0:T(8,128)}', space=vmem, size = 0x8000, scoped, tag = 'scratch operand']
  #allocation3 [shape = 'f32[64,64]{1,0:T(8,128)}', space=vmem, size = 0x8000, scoped, tag = 'scratch operand']
  #allocation4 [shape = 'f32[64,64]{1,0:T(8,128)}', space=vmem, size = 0x8000, scoped, tag = 'scratch operand']
  #allocation5 [shape = 'f32[64,64]{1,0:T(8,128)}', space=vmem, size = 0x8000, scoped, tag = 'scratch operand']
  #allocation6 [shape = 'f32[1,1]{1,0:T(1,128)S(1)}', space=vmem, size = 0x200, scoped, tag = 'scoped memory for tpu_custom_call.1']
  %s0 = inlined_call_operand.vmem [shape: f32[64,1], index: 0, kind: input, shape index: {}]
  %s1 = inlined_call_operand.vmem [shape: f32[1,256], index: 1, kind: input, shape index: {}]
  %s2 = inlined_call_operand.vmem [shape: f32[1,256], index: 2, kind: input, shape index: {}]
  %s3 = inlined_call_operand.vmem [shape: f32[64,64], index: 3, kind: input, shape index: {}]
  %s4 = inlined_call_operand.hbm [shape: f32[64,64], index: 4, kind: input, shape index: {}]
  %s5 = inlined_call_operand.hbm [shape: f32[64,64], index: 5, kind: input, shape index: {}]
  %s6 = inlined_call_operand.hbm [shape: f32[64,64], index: 6, kind: input, shape index: {}]
  %s7 = inlined_call_operand.vmem [shape: f32[1,64], index: 7, kind: input, shape index: {}]
  %s8 = inlined_call_operand.<no memory space> [shape: f32[1,1], index: 8, kind: input, shape index: {}]
  %s9 = inlined_call_operand.vmem [shape: f32[8,1], index: 9, kind: output, shape index: {}]
  %s10 = sld [smem:[#allocation0]]
  $region58: #{tpu_custom_call.1} parent=0
    _
  %s12 = ssub.s32 1, %s10
  %s13 = scalar_select 0, %s12, %s10
  %v14 = vstv %s8
  %15 = vst [vmem:[#allocation6] sm:$0x1] %v14
  $region1: #{tpu_custom_call.1} parent=0
    #allocation7 [shape = 'u8[32768]{0}', space=vmem, size = 0x8000, scoped, tag = 'input window, operand 4, single buffered']
    #allocation8 [shape = 's32[1]{0}', space=sflag, size = 0x4, scoped, tag = 'scoped memory for tpu_custom_call.1']
    #allocation9 [shape = 'u8[32768]{0}', space=vmem, size = 0x8000, scoped, tag = 'input window, operand 5, single buffered']
    #allocation10 [shape = 's32[1]{0}', space=sflag, size = 0x4, scoped, tag = 'scoped memory for tpu_custom_call.1']
    #allocation11 [shape = 'u8[32768]{0}', space=vmem, size = 0x8000, scoped, tag = 'input window, operand 6, single buffered']
    %16 = vsyncpa [#allocation8], 0
    %17 = vsyncpa [#allocation10], 0
    // Predicated region
    $region2: #{tpu_custom_call.1} parent=1 // pred_check
      _
    $region3: #{tpu_custom_call.1} parent=1 // pred_check_branch
      %19 = sbr.rel (0) target = $region5
    $region4: #{tpu_custom_call.1} parent=1 // pred_region
      _
    $region5: #{tpu_custom_call.1} parent=1 // pred_fallthru
      _
    // Predicated region
    $region6: #{tpu_custom_call.1} parent=1 // pred_check
      _
    $region7: #{tpu_custom_call.1} parent=1 // pred_check_branch
      %21 = sbr.rel (0) target = $region9
    $region8: #{tpu_custom_call.1} parent=1 // pred_region
      _
    $region9: #{tpu_custom_call.1} parent=1 // pred_fallthru
      _
    // Predicated region
    $region10: #{tpu_custom_call.1} parent=1 // pred_check
      _
    $region11: #{tpu_custom_call.1} parent=1 // pred_check_branch
      %23 = sbr.rel (0) target = $region13
    $region12: #{tpu_custom_call.1} parent=1 // pred_region
      _
    $region13: #{tpu_custom_call.1} parent=1 // pred_fallthru
      _
    // Predicated region
    $region14: #{tpu_custom_call.1} parent=1 // pred_check
      _
    $region15: #{tpu_custom_call.1} parent=1 // pred_check_branch
      %25 = sbr.rel (0) target = $region17
    $region16: #{tpu_custom_call.1} parent=1 // pred_region
      _
    $region17: #{tpu_custom_call.1} parent=1 // pred_fallthru
      _
    // Predicated region
    $region18: #{tpu_custom_call.1} parent=1 // pred_check
      _
    $region19: #{tpu_custom_call.1} parent=1 // pred_check_branch
      %27 = sbr.rel (0) target = $region21
    $region20: #{tpu_custom_call.1} parent=1 // pred_region
      %s29 = ssub.s32 1024, 1024
      %30 = vsyncadd [#allocation8], %s29
      %s31 = sshll.u32 [#allocation7], 4
      %s32 = int_to_ptr.vmem [resolvable:$true] %s31
      %37 = dma.hbm_to_vmem [thread:$0]  %s4, 1024, %s32, [#allocation8], 128, 128, 8
    $region21: #{tpu_custom_call.1} parent=1 // pred_fallthru
      _
    // Predicated region
    $region22: #{tpu_custom_call.1} parent=1 // pred_check
      _
    $region23: #{tpu_custom_call.1} parent=1 // pred_check_branch
      %39 = sbr.rel (0) target = $region25
    $region24: #{tpu_custom_call.1} parent=1 // pred_region
      %s41 = ssub.s32 1024, 1024
      %42 = vsyncadd [#allocation10], %s41
      %s43 = sshll.u32 [#allocation9], 4
      %s44 = int_to_ptr.vmem [resolvable:$true] %s43
      %49 = dma.hbm_to_vmem [thread:$0]  %s5, 1024, %s44, [#allocation10], 128, 128, 8
    $region25: #{tpu_custom_call.1} parent=1 // pred_fallthru
      _
    // Predicated region
    $region26: #{tpu_custom_call.1} parent=1 // pred_check
      _
    $region27: #{tpu_custom_call.1} parent=1 // pred_check_branch
      %51 = sbr.rel (0) target = $region29
    $region28: #{tpu_custom_call.1} parent=1 // pred_region
      %s53 = ssub.s32 1024, 1024
      %54 = vsyncadd [#allocation10], %s53
      %s55 = sshll.u32 [#allocation11], 4
      %s56 = int_to_ptr.vmem [resolvable:$true] %s55
      %61 = dma.hbm_to_vmem [thread:$0]  %s6, 1024, %s56, [#allocation10], 128, 128, 8
    $region29: #{tpu_custom_call.1} parent=1 // pred_fallthru
      _
    // Predicated region
    $region30: #{tpu_custom_call.1} parent=1 // pred_check
      _
    $region31: #{tpu_custom_call.1} parent=1 // pred_check_branch
      %63 = sbr.rel (0) target = $region33
    $region32: #{tpu_custom_call.1} parent=1 // pred_region
      _
    $region33: #{tpu_custom_call.1} parent=1 // pred_fallthru
      _
    // Predicated region
    $region34: #{tpu_custom_call.1} parent=1 // pred_check
      _
    $region35: #{tpu_custom_call.1} parent=1 // pred_check_branch
      %65 = sbr.rel (0) target = $region37
    $region36: #{tpu_custom_call.1} parent=1 // pred_region
      _
    $region37: #{tpu_custom_call.1} parent=1 // pred_fallthru
      _
    // Predicated region
    $region38: #{tpu_custom_call.1} parent=1 // pred_check
      _
    $region39: #{tpu_custom_call.1} parent=1 // pred_check_branch
      %67 = sbr.rel (0) target = $region41
    $region40: #{tpu_custom_call.1} parent=1 // pred_region
      %68 = dma.done [#allocation8], 1024
    $region41: #{tpu_custom_call.1} parent=1 // pred_fallthru
      _
    // Predicated region
    $region42: #{tpu_custom_call.1} parent=1 // pred_check
      _
    $region43: #{tpu_custom_call.1} parent=1 // pred_check_branch
      %70 = sbr.rel (0) target = $region45
    $region44: #{tpu_custom_call.1} parent=1 // pred_region
      %71 = dma.done [#allocation10], 1024
    $region45: #{tpu_custom_call.1} parent=1 // pred_fallthru
      _
    // Predicated region
    $region46: #{tpu_custom_call.1} parent=1 // pred_check
      _
    $region47: #{tpu_custom_call.1} parent=1 // pred_check_branch
      %73 = sbr.rel (0) target = $region49
    $region48: #{tpu_custom_call.1} parent=1 // pred_region
      %74 = dma.done [#allocation10], 1024
    $region49: #{tpu_custom_call.1} parent=1 // pred_fallthru
      _
    %v75 = vld [vmem:[%s0] sm:$0xff]
    %v76 = vld [vmem:[%s0 + $0x8] sm:$0xff]
    %v77 = vld [vmem:[%s0 + $0x10] sm:$0xff]
    %v78 = vld [vmem:[%s0 + $0x18] sm:$0xff]
    %v79 = vld [vmem:[%s0 + $0x20] sm:$0xff]
    %v80 = vld [vmem:[%s0 + $0x28] sm:$0xff]
    %v81 = vld [vmem:[%s0 + $0x30] sm:$0xff]
    %v82 = vld [vmem:[%s0 + $0x38] sm:$0xff]
    %v83 = vld [vmem:[%s1] sm:$0x3]
    %85 = vset.pattern.permute.xlu0 0
    %86 = vperm.xlu0 %85, %v75
    %v87 = vpop.permute.xlu0 %86
    %90 = vset.pattern.permute.xlu0 0
    %91 = vperm.xlu0 %90, %v76
    %v92 = vpop.permute.xlu0 %91
    %95 = vset.pattern.permute.xlu0 0
    %96 = vperm.xlu0 %95, %v77
    %v97 = vpop.permute.xlu0 %96
    %100 = vset.pattern.permute.xlu0 0
    %101 = vperm.xlu0 %100, %v78
    %v102 = vpop.permute.xlu0 %101
    %105 = vset.pattern.permute.xlu0 0
    %106 = vperm.xlu0 %105, %v79
    %v107 = vpop.permute.xlu0 %106
    %110 = vset.pattern.permute.xlu0 0
    %111 = vperm.xlu0 %110, %v80
    %v112 = vpop.permute.xlu0 %111
    %115 = vset.pattern.permute.xlu0 0
    %116 = vperm.xlu0 %115, %v81
    %v117 = vpop.permute.xlu0 %116
    %120 = vset.pattern.permute.xlu0 0
    %121 = vperm.xlu0 %120, %v82
    %v122 = vpop.permute.xlu0 %121
    %v125 = vlaneseq
    %v126 = vshrl.u32 %v125, 7
    %v127 = vsub.s32 0, %v126
    %v128 = vrot.slane %v83, %v127
    %v129 = vlaneseq
    %v130 = vshrl.u32 %v129, 7
    %v131 = vsub.s32 1, %v130
    %v132 = vrot.slane %v83, %v131
    %v135 = vmul.f32 %v87, %v128
    %v136 = vmul.f32 %v87, %v132
    %v137 = vmul.f32 %v92, %v128
    %v138 = vmul.f32 %v92, %v132
    %v139 = vmul.f32 %v97, %v128
    %v140 = vmul.f32 %v97, %v132
    %v141 = vmul.f32 %v102, %v128
    %v142 = vmul.f32 %v102, %v132
    %v143 = vmul.f32 %v107, %v128
    %v144 = vmul.f32 %v107, %v132
    %v145 = vmul.f32 %v112, %v128
    %v146 = vmul.f32 %v112, %v132
    %v147 = vmul.f32 %v117, %v128
    %v148 = vmul.f32 %v117, %v132
    %v149 = vmul.f32 %v122, %v128
    %v150 = vmul.f32 %v122, %v132
    %v151 = vld [vmem:[%s2] sm:$0x3]
    %v153 = vlaneseq
    %v154 = vshrl.u32 %v153, 7
    %v155 = vsub.s32 0, %v154
    %v156 = vrot.slane %v151, %v155
    %v157 = vlaneseq
    %v158 = vshrl.u32 %v157, 7
    %v159 = vsub.s32 1, %v158
    %v160 = vrot.slane %v151, %v159
    %v163 = vadd.f32 %v135, %v156
    %v164 = vadd.f32 %v136, %v160
    %v165 = vadd.f32 %v137, %v156
    %v166 = vadd.f32 %v138, %v160
    %v167 = vadd.f32 %v139, %v156
    %v168 = vadd.f32 %v140, %v160
    %v169 = vadd.f32 %v141, %v156
    %v170 = vadd.f32 %v142, %v160
    %v171 = vadd.f32 %v143, %v156
    %v172 = vadd.f32 %v144, %v160
    %v173 = vadd.f32 %v145, %v156
    %v174 = vadd.f32 %v146, %v160
    %v175 = vadd.f32 %v147, %v156
    %v176 = vadd.f32 %v148, %v160
    %v177 = vadd.f32 %v149, %v156
    %v178 = vadd.f32 %v150, %v160
    %vm179 = vcmask 523264
    %180 = vst.msk [vmem:[#allocation2] sm:$0xff] %vm179, %v163
    %181 = vst.msk [vmem:[#allocation2 + $0x8] sm:$0xff] %vm179, %v165
    %182 = vst.msk [vmem:[#allocation2 + $0x10] sm:$0xff] %vm179, %v167
    %183 = vst.msk [vmem:[#allocation2 + $0x18] sm:$0xff] %vm179, %v169
    %184 = vst.msk [vmem:[#allocation2 + $0x20] sm:$0xff] %vm179, %v171
    %185 = vst.msk [vmem:[#allocation2 + $0x28] sm:$0xff] %vm179, %v173
    %186 = vst.msk [vmem:[#allocation2 + $0x30] sm:$0xff] %vm179, %v175
    %187 = vst.msk [vmem:[#allocation2 + $0x38] sm:$0xff] %vm179, %v177
    %196 = vrot.lane.b32.xlu0 %v163, 64
    %v197 = vpop.permute.xlu0 %196
    %198 = vrot.lane.b32.xlu0 %v165, 64
    %v199 = vpop.permute.xlu0 %198
    %200 = vrot.lane.b32.xlu0 %v167, 64
    %v201 = vpop.permute.xlu0 %200
    %202 = vrot.lane.b32.xlu0 %v169, 64
    %v203 = vpop.permute.xlu0 %202
    %204 = vrot.lane.b32.xlu0 %v171, 64
    %v205 = vpop.permute.xlu0 %204
    %206 = vrot.lane.b32.xlu0 %v173, 64
    %v207 = vpop.permute.xlu0 %206
    %208 = vrot.lane.b32.xlu0 %v175, 64
    %v209 = vpop.permute.xlu0 %208
    %210 = vrot.lane.b32.xlu0 %v177, 64
    %v211 = vpop.permute.xlu0 %210
    %220 = vst.msk [vmem:[#allocation3] sm:$0xff] %vm179, %v197
    %221 = vst.msk [vmem:[#allocation3 + $0x8] sm:$0xff] %vm179, %v199
    %222 = vst.msk [vmem:[#allocation3 + $0x10] sm:$0xff] %vm179, %v201
    %223 = vst.msk [vmem:[#allocation3 + $0x18] sm:$0xff] %vm179, %v203
    %224 = vst.msk [vmem:[#allocation3 + $0x20] sm:$0xff] %vm179, %v205
    %225 = vst.msk [vmem:[#allocation3 + $0x28] sm:$0xff] %vm179, %v207
    %226 = vst.msk [vmem:[#allocation3 + $0x30] sm:$0xff] %vm179, %v209
    %227 = vst.msk [vmem:[#allocation3 + $0x38] sm:$0xff] %vm179, %v211
    %228 = vst.msk [vmem:[#allocation4] sm:$0xff] %vm179, %v164
    %229 = vst.msk [vmem:[#allocation4 + $0x8] sm:$0xff] %vm179, %v166
    %230 = vst.msk [vmem:[#allocation4 + $0x10] sm:$0xff] %vm179, %v168
    %231 = vst.msk [vmem:[#allocation4 + $0x18] sm:$0xff] %vm179, %v170
    %232 = vst.msk [vmem:[#allocation4 + $0x20] sm:$0xff] %vm179, %v172
    %233 = vst.msk [vmem:[#allocation4 + $0x28] sm:$0xff] %vm179, %v174
    %234 = vst.msk [vmem:[#allocation4 + $0x30] sm:$0xff] %vm179, %v176
    %235 = vst.msk [vmem:[#allocation4 + $0x38] sm:$0xff] %vm179, %v178
    %244 = vrot.lane.b32.xlu0 %v164, 64
    %v245 = vpop.permute.xlu0 %244
    %246 = vrot.lane.b32.xlu0 %v166, 64
    %v247 = vpop.permute.xlu0 %246
    %248 = vrot.lane.b32.xlu0 %v168, 64
    %v249 = vpop.permute.xlu0 %248
    %250 = vrot.lane.b32.xlu0 %v170, 64
    %v251 = vpop.permute.xlu0 %250
    %252 = vrot.lane.b32.xlu0 %v172, 64
    %v253 = vpop.permute.xlu0 %252
    %254 = vrot.lane.b32.xlu0 %v174, 64
    %v255 = vpop.permute.xlu0 %254
    %256 = vrot.lane.b32.xlu0 %v176, 64
    %v257 = vpop.permute.xlu0 %256
    %258 = vrot.lane.b32.xlu0 %v178, 64
    %v259 = vpop.permute.xlu0 %258
    %268 = vst.msk [vmem:[#allocation5] sm:$0xff] %vm179, %v245
    %269 = vst.msk [vmem:[#allocation5 + $0x8] sm:$0xff] %vm179, %v247
    %270 = vst.msk [vmem:[#allocation5 + $0x10] sm:$0xff] %vm179, %v249
    %271 = vst.msk [vmem:[#allocation5 + $0x18] sm:$0xff] %vm179, %v251
    %272 = vst.msk [vmem:[#allocation5 + $0x20] sm:$0xff] %vm179, %v253
    %273 = vst.msk [vmem:[#allocation5 + $0x28] sm:$0xff] %vm179, %v255
    %274 = vst.msk [vmem:[#allocation5 + $0x30] sm:$0xff] %vm179, %v257
    %275 = vst.msk [vmem:[#allocation5 + $0x38] sm:$0xff] %vm179, %v259
    %v276 = vld [vmem:[%s3] sm:$0xff]
    %v277 = vld [vmem:[%s3 + $0x8] sm:$0xff]
    %v278 = vld [vmem:[%s3 + $0x10] sm:$0xff]
    %v279 = vld [vmem:[%s3 + $0x18] sm:$0xff]
    %v280 = vld [vmem:[%s3 + $0x20] sm:$0xff]
    %v281 = vld [vmem:[%s3 + $0x28] sm:$0xff]
    %v282 = vld [vmem:[%s3 + $0x30] sm:$0xff]
    %v283 = vld [vmem:[%s3 + $0x38] sm:$0xff]
    %v284 = vld [vmem:[#allocation7] sm:$0xff]
    %v285 = vld [vmem:[#allocation7 + $0x8] sm:$0xff]
    %v286 = vld [vmem:[#allocation7 + $0x10] sm:$0xff]
    %v287 = vld [vmem:[#allocation7 + $0x18] sm:$0xff]
    %v288 = vld [vmem:[#allocation7 + $0x20] sm:$0xff]
    %v289 = vld [vmem:[#allocation7 + $0x28] sm:$0xff]
    %v290 = vld [vmem:[#allocation7 + $0x30] sm:$0xff]
    %v291 = vld [vmem:[#allocation7 + $0x38] sm:$0xff]
    %v292 = vld [vmem:[#allocation9] sm:$0xff]
    %v293 = vld [vmem:[#allocation9 + $0x8] sm:$0xff]
    %v294 = vld [vmem:[#allocation9 + $0x10] sm:$0xff]
    %v295 = vld [vmem:[#allocation9 + $0x18] sm:$0xff]
    %v296 = vld [vmem:[#allocation9 + $0x20] sm:$0xff]
    %v297 = vld [vmem:[#allocation9 + $0x28] sm:$0xff]
    %v298 = vld [vmem:[#allocation9 + $0x30] sm:$0xff]
    %v299 = vld [vmem:[#allocation9 + $0x38] sm:$0xff]
    %v300 = vld [vmem:[#allocation11] sm:$0xff]
    %v301 = vld [vmem:[#allocation11 + $0x8] sm:$0xff]
    %v302 = vld [vmem:[#allocation11 + $0x10] sm:$0xff]
    %v303 = vld [vmem:[#allocation11 + $0x18] sm:$0xff]
    %v304 = vld [vmem:[#allocation11 + $0x20] sm:$0xff]
    %v305 = vld [vmem:[#allocation11 + $0x28] sm:$0xff]
    %v306 = vld [vmem:[#allocation11 + $0x30] sm:$0xff]
    %v307 = vld [vmem:[#allocation11 + $0x38] sm:$0xff]
    %v308 = vld [vmem:[#allocation2] sm:$0xff]
    %v310 = vsel %vm179, 0.0, 0
    %312 = vmatprep.subr.mxu0 0.0
    %313 = vmatpush1.msra.mxu0 %v276
    %314 = vmatprep.subr.mxu0 0.0
    %315 = vmatpush1.msra.mxu0 %v277
    %316 = vmatprep.subr.mxu0 0.0
    %317 = vmatpush1.msra.mxu0 %v278
    %318 = vmatprep.subr.mxu0 0.0
    %319 = vmatpush1.msra.mxu0 %v279
    %320 = vmatprep.subr.mxu0 0.0
    %321 = vmatpush1.msra.mxu0 %v280
    %322 = vmatprep.subr.mxu0 0.0
    %323 = vmatpush1.msra.mxu0 %v281
    %324 = vmatprep.subr.mxu0 0.0
    %325 = vmatpush1.msra.mxu0 %v282
    %326 = vmatprep.subr.mxu0 0.0
    %327 = vmatpush1.msra.mxu0 %v283
    %328 = vmatprep.subr.mxu0 0.0
    %329 = vmatpush1.msra.mxu0 0.0
    %330 = vmatprep.subr.mxu0 0.0
    %331 = vmatpush1.msra.mxu0 0.0
    %332 = vmatprep.subr.mxu0 0.0
    %333 = vmatpush1.msra.mxu0 0.0
    %334 = vmatprep.subr.mxu0 0.0
    %335 = vmatpush1.msra.mxu0 0.0
    %336 = vmatprep.subr.mxu0 0.0
    %337 = vmatpush1.msra.mxu0 0.0
    %338 = vmatprep.subr.mxu0 0.0
    %339 = vmatpush1.msra.mxu0 0.0
    %340 = vmatprep.subr.mxu0 0.0
    %341 = vmatpush1.msra.mxu0 0.0
    %342 = vmatprep.subr.mxu0 0.0
    %343 = vmatpush1.msra.mxu0 0.0
    %344 = vmatprep.subr.mxu0 0.0
    %345 = vmatpush1.msra.mxu0 0.0
    %346 = vmatprep.subr.mxu0 0.0
    %347 = vmatpush1.msra.mxu0 0.0
    %348 = vmatprep.subr.mxu0 0.0
    %349 = vmatpush1.msra.mxu0 0.0
    %350 = vmatprep.subr.mxu0 0.0
    %351 = vmatpush1.msra.mxu0 0.0
    %352 = vmatprep.subr.mxu0 0.0
    %353 = vmatpush1.msra.mxu0 0.0
    %354 = vmatprep.subr.mxu0 0.0
    %355 = vmatpush1.msra.mxu0 0.0
    %356 = vmatprep.subr.mxu0 0.0
    %357 = vmatpush1.msra.mxu0 0.0
    %358 = vmatprep.subr.mxu0 0.0
    %359 = vmatpush1.msra.mxu0 0.0
    %360 = vmatprep.subr.mxu0 0.0
    %361 = vmatpush1.msra.mxu0 0.0
    %362 = vmatprep.subr.mxu0 0.0
    %363 = vmatpush1.msra.mxu0 0.0
    %364 = vmatprep.subr.mxu0 0.0
    %365 = vmatpush1.msra.mxu0 0.0
    %366 = vmatprep.subr.mxu0 0.0
    %367 = vmatpush1.msra.mxu0 0.0
    %368 = vmatprep.subr.mxu0 0.0
    %369 = vmatpush1.msra.mxu0 0.0
    %370 = vmatprep.subr.mxu0 0.0
    %371 = vmatpush1.msra.mxu0 0.0
    %372 = vmatprep.subr.mxu0 0.0
    %373 = vmatpush1.msra.mxu0 0.0
    %374 = vmatprep.subr.mxu0 0.0
    %375 = vmatpush1.msra.mxu0 0.0
    %376 = vmatprep.mubr.f32.mxu0 0.0
    %377 = vmatmul.mubr.f32.gmra.mrb[0].mxu0 %v310
    %v378 = vpop.f32.mrb[0].mxu0
    %v379 = vadd.f32 0.0, %v378
    %v380 = vpop.f32.mrb[0].mxu0
    %381 = vdwg.mxu0
    %v382 = vadd.f32 %v308, %v379
    %v383 = vld [vmem:[#allocation3] sm:$0xff]
    %384 = vmatprep.subr.mxu0 0.0
    %385 = vmatpush1.msra.mxu0 %v284
    %386 = vmatprep.subr.mxu0 0.0
    %387 = vmatpush1.msra.mxu0 %v285
    %388 = vmatprep.subr.mxu0 0.0
    %389 = vmatpush1.msra.mxu0 %v286
    %390 = vmatprep.subr.mxu0 0.0
    %391 = vmatpush1.msra.mxu0 %v287
    %392 = vmatprep.subr.mxu0 0.0
    %393 = vmatpush1.msra.mxu0 %v288
    %394 = vmatprep.subr.mxu0 0.0
    %395 = vmatpush1.msra.mxu0 %v289
    %396 = vmatprep.subr.mxu0 0.0
    %397 = vmatpush1.msra.mxu0 %v290
    %398 = vmatprep.subr.mxu0 0.0
    %399 = vmatpush1.msra.mxu0 %v291
    %400 = vmatprep.subr.mxu0 0.0
    %401 = vmatpush1.msra.mxu0 0.0
    %402 = vmatprep.subr.mxu0 0.0
    %403 = vmatpush1.msra.mxu0 0.0
    %404 = vmatprep.subr.mxu0 0.0
    %405 = vmatpush1.msra.mxu0 0.0
    %406 = vmatprep.subr.mxu0 0.0
    %407 = vmatpush1.msra.mxu0 0.0
    %408 = vmatprep.subr.mxu0 0.0
    %409 = vmatpush1.msra.mxu0 0.0
    %410 = vmatprep.subr.mxu0 0.0
    %411 = vmatpush1.msra.mxu0 0.0
    %412 = vmatprep.subr.mxu0 0.0
    %413 = vmatpush1.msra.mxu0 0.0
    %414 = vmatprep.subr.mxu0 0.0
    %415 = vmatpush1.msra.mxu0 0.0
    %416 = vmatprep.subr.mxu0 0.0
    %417 = vmatpush1.msra.mxu0 0.0
    %418 = vmatprep.subr.mxu0 0.0
    %419 = vmatpush1.msra.mxu0 0.0
    %420 = vmatprep.subr.mxu0 0.0
    %421 = vmatpush1.msra.mxu0 0.0
    %422 = vmatprep.subr.mxu0 0.0
    %423 = vmatpush1.msra.mxu0 0.0
    %424 = vmatprep.subr.mxu0 0.0
    %425 = vmatpush1.msra.mxu0 0.0
    %426 = vmatprep.subr.mxu0 0.0
    %427 = vmatpush1.msra.mxu0 0.0
    %428 = vmatprep.subr.mxu0 0.0
    %429 = vmatpush1.msra.mxu0 0.0
    %430 = vmatprep.subr.mxu0 0.0
    %431 = vmatpush1.msra.mxu0 0.0
    %432 = vmatprep.subr.mxu0 0.0
    %433 = vmatpush1.msra.mxu0 0.0
    %434 = vmatprep.subr.mxu0 0.0
    %435 = vmatpush1.msra.mxu0 0.0
    %436 = vmatprep.subr.mxu0 0.0
    %437 = vmatpush1.msra.mxu0 0.0
    %438 = vmatprep.subr.mxu0 0.0
    %439 = vmatpush1.msra.mxu0 0.0
    %440 = vmatprep.subr.mxu0 0.0
    %441 = vmatpush1.msra.mxu0 0.0
    %442 = vmatprep.subr.mxu0 0.0
    %443 = vmatpush1.msra.mxu0 0.0
    %444 = vmatprep.subr.mxu0 0.0
    %445 = vmatpush1.msra.mxu0 0.0
    %446 = vmatprep.subr.mxu0 0.0
    %447 = vmatpush1.msra.mxu0 0.0
    %448 = vmatprep.mubr.f32.mxu0 0.0
    %449 = vmatmul.mubr.f32.gmra.mrb[0].mxu0 %v310
    %v450 = vpop.f32.mrb[0].mxu0
    %v451 = vadd.f32 0.0, %v450
    %v452 = vpop.f32.mrb[0].mxu0
    %453 = vdwg.mxu0
    %v454 = vadd.f32 %v383, %v451
    %v455 = vld [vmem:[#allocation4] sm:$0xff]
    %456 = vmatprep.subr.mxu0 0.0
    %457 = vmatpush1.msra.mxu0 %v292
    %458 = vmatprep.subr.mxu0 0.0
    %459 = vmatpush1.msra.mxu0 %v293
    %460 = vmatprep.subr.mxu0 0.0
    %461 = vmatpush1.msra.mxu0 %v294
    %462 = vmatprep.subr.mxu0 0.0
    %463 = vmatpush1.msra.mxu0 %v295
    %464 = vmatprep.subr.mxu0 0.0
    %465 = vmatpush1.msra.mxu0 %v296
    %466 = vmatprep.subr.mxu0 0.0
    %467 = vmatpush1.msra.mxu0 %v297
    %468 = vmatprep.subr.mxu0 0.0
    %469 = vmatpush1.msra.mxu0 %v298
    %470 = vmatprep.subr.mxu0 0.0
    %471 = vmatpush1.msra.mxu0 %v299
    %472 = vmatprep.subr.mxu0 0.0
    %473 = vmatpush1.msra.mxu0 0.0
    %474 = vmatprep.subr.mxu0 0.0
    %475 = vmatpush1.msra.mxu0 0.0
    %476 = vmatprep.subr.mxu0 0.0
    %477 = vmatpush1.msra.mxu0 0.0
    %478 = vmatprep.subr.mxu0 0.0
    %479 = vmatpush1.msra.mxu0 0.0
    %480 = vmatprep.subr.mxu0 0.0
    %481 = vmatpush1.msra.mxu0 0.0
    %482 = vmatprep.subr.mxu0 0.0
    %483 = vmatpush1.msra.mxu0 0.0
    %484 = vmatprep.subr.mxu0 0.0
    %485 = vmatpush1.msra.mxu0 0.0
    %486 = vmatprep.subr.mxu0 0.0
    %487 = vmatpush1.msra.mxu0 0.0
    %488 = vmatprep.subr.mxu0 0.0
    %489 = vmatpush1.msra.mxu0 0.0
    %490 = vmatprep.subr.mxu0 0.0
    %491 = vmatpush1.msra.mxu0 0.0
    %492 = vmatprep.subr.mxu0 0.0
    %493 = vmatpush1.msra.mxu0 0.0
    %494 = vmatprep.subr.mxu0 0.0
    %495 = vmatpush1.msra.mxu0 0.0
    %496 = vmatprep.subr.mxu0 0.0
    %497 = vmatpush1.msra.mxu0 0.0
    %498 = vmatprep.subr.mxu0 0.0
    %499 = vmatpush1.msra.mxu0 0.0
    %500 = vmatprep.subr.mxu0 0.0
    %501 = vmatpush1.msra.mxu0 0.0
    %502 = vmatprep.subr.mxu0 0.0
    %503 = vmatpush1.msra.mxu0 0.0
    %504 = vmatprep.subr.mxu0 0.0
    %505 = vmatpush1.msra.mxu0 0.0
    %506 = vmatprep.subr.mxu0 0.0
    %507 = vmatpush1.msra.mxu0 0.0
    %508 = vmatprep.subr.mxu0 0.0
    %509 = vmatpush1.msra.mxu0 0.0
    %510 = vmatprep.subr.mxu0 0.0
    %511 = vmatpush1.msra.mxu0 0.0
    %512 = vmatprep.subr.mxu0 0.0
    %513 = vmatpush1.msra.mxu0 0.0
    %514 = vmatprep.subr.mxu0 0.0
    %515 = vmatpush1.msra.mxu0 0.0
    %516 = vmatprep.subr.mxu0 0.0
    %517 = vmatpush1.msra.mxu0 0.0
    %518 = vmatprep.subr.mxu0 0.0
    %519 = vmatpush1.msra.mxu0 0.0
    %520 = vmatprep.mubr.f32.mxu0 0.0
    %521 = vmatmul.mubr.f32.gmra.mrb[0].mxu0 %v310
    %v522 = vpop.f32.mrb[0].mxu0
    %v523 = vadd.f32 0.0, %v522
    %v524 = vpop.f32.mrb[0].mxu0
    %525 = vdwg.mxu0
    %v526 = vadd.f32 %v455, %v523
    %v527 = vld [vmem:[#allocation5] sm:$0xff]
    %528 = vmatprep.subr.mxu0 0.0
    %529 = vmatpush1.msra.mxu0 %v300
    %530 = vmatprep.subr.mxu0 0.0
    %531 = vmatpush1.msra.mxu0 %v301
    %532 = vmatprep.subr.mxu0 0.0
    %533 = vmatpush1.msra.mxu0 %v302
    %534 = vmatprep.subr.mxu0 0.0
    %535 = vmatpush1.msra.mxu0 %v303
    %536 = vmatprep.subr.mxu0 0.0
    %537 = vmatpush1.msra.mxu0 %v304
    %538 = vmatprep.subr.mxu0 0.0
    %539 = vmatpush1.msra.mxu0 %v305
    %540 = vmatprep.subr.mxu0 0.0
    %541 = vmatpush1.msra.mxu0 %v306
    %542 = vmatprep.subr.mxu0 0.0
    %543 = vmatpush1.msra.mxu0 %v307
    %544 = vmatprep.subr.mxu0 0.0
    %545 = vmatpush1.msra.mxu0 0.0
    %546 = vmatprep.subr.mxu0 0.0
    %547 = vmatpush1.msra.mxu0 0.0
    %548 = vmatprep.subr.mxu0 0.0
    %549 = vmatpush1.msra.mxu0 0.0
    %550 = vmatprep.subr.mxu0 0.0
    %551 = vmatpush1.msra.mxu0 0.0
    %552 = vmatprep.subr.mxu0 0.0
    %553 = vmatpush1.msra.mxu0 0.0
    %554 = vmatprep.subr.mxu0 0.0
    %555 = vmatpush1.msra.mxu0 0.0
    %556 = vmatprep.subr.mxu0 0.0
    %557 = vmatpush1.msra.mxu0 0.0
    %558 = vmatprep.subr.mxu0 0.0
    %559 = vmatpush1.msra.mxu0 0.0
    %560 = vmatprep.subr.mxu0 0.0
    %561 = vmatpush1.msra.mxu0 0.0
    %562 = vmatprep.subr.mxu0 0.0
    %563 = vmatpush1.msra.mxu0 0.0
    %564 = vmatprep.subr.mxu0 0.0
    %565 = vmatpush1.msra.mxu0 0.0
    %566 = vmatprep.subr.mxu0 0.0
    %567 = vmatpush1.msra.mxu0 0.0
    %568 = vmatprep.subr.mxu0 0.0
    %569 = vmatpush1.msra.mxu0 0.0
    %570 = vmatprep.subr.mxu0 0.0
    %571 = vmatpush1.msra.mxu0 0.0
    %572 = vmatprep.subr.mxu0 0.0
    %573 = vmatpush1.msra.mxu0 0.0
    %574 = vmatprep.subr.mxu0 0.0
    %575 = vmatpush1.msra.mxu0 0.0
    %576 = vmatprep.subr.mxu0 0.0
    %577 = vmatpush1.msra.mxu0 0.0
    %578 = vmatprep.subr.mxu0 0.0
    %579 = vmatpush1.msra.mxu0 0.0
    %580 = vmatprep.subr.mxu0 0.0
    %581 = vmatpush1.msra.mxu0 0.0
    %582 = vmatprep.subr.mxu0 0.0
    %583 = vmatpush1.msra.mxu0 0.0
    %584 = vmatprep.subr.mxu0 0.0
    %585 = vmatpush1.msra.mxu0 0.0
    %586 = vmatprep.subr.mxu0 0.0
    %587 = vmatpush1.msra.mxu0 0.0
    %588 = vmatprep.subr.mxu0 0.0
    %589 = vmatpush1.msra.mxu0 0.0
    %590 = vmatprep.subr.mxu0 0.0
    %591 = vmatpush1.msra.mxu0 0.0
    %592 = vmatprep.mubr.f32.mxu0 0.0
    %593 = vmatmul.mubr.f32.gmra.mrb[0].mxu0 %v310
    %v594 = vpop.f32.mrb[0].mxu0
    %v595 = vadd.f32 0.0, %v594
    %v596 = vpop.f32.mrb[0].mxu0
    %597 = vdwg.mxu0
    %v598 = vadd.f32 %v527, %v595
    %v599 = vxor.u32 %v382, 2147483648
    %v600 = vmul.f32 %v599, 1.442695
    %v601 = vpow.pop %v600
    %v602 = vadd.f32 %v601, 1.0
    %v603 = vrcp.pop %v602
    %v604 = vmul.f32 1.0, %v603
    %v605 = vxor.u32 %v454, 2147483648
    %v606 = vmul.f32 %v605, 1.442695
    %v607 = vpow.pop %v606
    %v608 = vadd.f32 %v607, 1.0
    %v609 = vrcp.pop %v608
    %v610 = vmul.f32 1.0, %v609
    %v611 = vtanh.pop %v526
    %v612 = vxor.u32 %v598, 2147483648
    %v613 = vmul.f32 %v612, 1.442695
    %v614 = vpow.pop %v613
    %v615 = vadd.f32 %v614, 1.0
    %v616 = vrcp.pop %v615
    %v617 = vmul.f32 1.0, %v616
    %v618 = vmul.f32 %v610, 0.0
    %v619 = vmul.f32 %v604, %v611
    %v620 = vadd.f32 %v618, %v619
    %v621 = vtanh.pop %v620
    %v622 = vmul.f32 %v617, %v621
    %s623 = scalar_lea.vmem [#allocation2], 8
    %v624 = vld [vmem:[%s623] sm:$0xff]
    %v626 = vsel %vm179, %v622, 0
    %628 = vmatprep.subr.mxu0 0.0
    %629 = vmatpush1.msra.mxu0 %v276
    %630 = vmatprep.subr.mxu0 0.0
    %631 = vmatpush1.msra.mxu0 %v277
    %632 = vmatprep.subr.mxu0 0.0
    %633 = vmatpush1.msra.mxu0 %v278
    %634 = vmatprep.subr.mxu0 0.0
    %635 = vmatpush1.msra.mxu0 %v279
    %636 = vmatprep.subr.mxu0 0.0
    %637 = vmatpush1.msra.mxu0 %v280
    %638 = vmatprep.subr.mxu0 0.0
    %639 = vmatpush1.msra.mxu0 %v281
    %640 = vmatprep.subr.mxu0 0.0
    %641 = vmatpush1.msra.mxu0 %v282
    %642 = vmatprep.subr.mxu0 0.0
    %643 = vmatpush1.msra.mxu0 %v283
    %644 = vmatprep.subr.mxu0 0.0
    %645 = vmatpush1.msra.mxu0 0.0
    %646 = vmatprep.subr.mxu0 0.0
    %647 = vmatpush1.msra.mxu0 0.0
    %648 = vmatprep.subr.mxu0 0.0
    %649 = vmatpush1.msra.mxu0 0.0
    %650 = vmatprep.subr.mxu0 0.0
    %651 = vmatpush1.msra.mxu0 0.0
    %652 = vmatprep.subr.mxu0 0.0
    %653 = vmatpush1.msra.mxu0 0.0
    %654 = vmatprep.subr.mxu0 0.0
    %655 = vmatpush1.msra.mxu0 0.0
    %656 = vmatprep.subr.mxu0 0.0
    %657 = vmatpush1.msra.mxu0 0.0
    %658 = vmatprep.subr.mxu0 0.0
    %659 = vmatpush1.msra.mxu0 0.0
    %660 = vmatprep.subr.mxu0 0.0
    %661 = vmatpush1.msra.mxu0 0.0
    %662 = vmatprep.subr.mxu0 0.0
    %663 = vmatpush1.msra.mxu0 0.0
    %664 = vmatprep.subr.mxu0 0.0
    %665 = vmatpush1.msra.mxu0 0.0
    %666 = vmatprep.subr.mxu0 0.0
    %667 = vmatpush1.msra.mxu0 0.0
    %668 = vmatprep.subr.mxu0 0.0
    %669 = vmatpush1.msra.mxu0 0.0
    %670 = vmatprep.subr.mxu0 0.0
    %671 = vmatpush1.msra.mxu0 0.0
    %672 = vmatprep.subr.mxu0 0.0
    %673 = vmatpush1.msra.mxu0 0.0
    %674 = vmatprep.subr.mxu0 0.0
    %675 = vmatpush1.msra.mxu0 0.0
    %676 = vmatprep.subr.mxu0 0.0
    %677 = vmatpush1.msra.mxu0 0.0
    %678 = vmatprep.subr.mxu0 0.0
    %679 = vmatpush1.msra.mxu0 0.0
    %680 = vmatprep.subr.mxu0 0.0
    %681 = vmatpush1.msra.mxu0 0.0
    %682 = vmatprep.subr.mxu0 0.0
    %683 = vmatpush1.msra.mxu0 0.0
    %684 = vmatprep.subr.mxu0 0.0
    %685 = vmatpush1.msra.mxu0 0.0
    %686 = vmatprep.subr.mxu0 0.0
    %687 = vmatpush1.msra.mxu0 0.0
    %688 = vmatprep.subr.mxu0 0.0
    %689 = vmatpush1.msra.mxu0 0.0
    %690 = vmatprep.subr.mxu0 0.0
    %691 = vmatpush1.msra.mxu0 0.0
    %692 = vmatprep.mubr.f32.mxu0 0.0
    %693 = vmatmul.mubr.f32.gmra.mrb[0].mxu0 %v626
    %v694 = vpop.f32.mrb[0].mxu0
    %v695 = vadd.f32 0.0, %v694
    %v696 = vpop.f32.mrb[0].mxu0
    %697 = vdwg.mxu0
    %v698 = vadd.f32 %v624, %v695
    %s699 = scalar_lea.vmem [#allocation3], 8
    %v700 = vld [vmem:[%s699] sm:$0xff]
    %701 = vmatprep.subr.mxu0 0.0
    %702 = vmatpush1.msra.mxu0 %v284
    %703 = vmatprep.subr.mxu0 0.0
    %704 = vmatpush1.msra.mxu0 %v285
    %705 = vmatprep.subr.mxu0 0.0
    %706 = vmatpush1.msra.mxu0 %v286
    %707 = vmatprep.subr.mxu0 0.0
    %708 = vmatpush1.msra.mxu0 %v287
    %709 = vmatprep.subr.mxu0 0.0
    %710 = vmatpush1.msra.mxu0 %v288
    %711 = vmatprep.subr.mxu0 0.0
    %712 = vmatpush1.msra.mxu0 %v289
    %713 = vmatprep.subr.mxu0 0.0
    %714 = vmatpush1.msra.mxu0 %v290
    %715 = vmatprep.subr.mxu0 0.0
    %716 = vmatpush1.msra.mxu0 %v291
    %717 = vmatprep.subr.mxu0 0.0
    %718 = vmatpush1.msra.mxu0 0.0
    %719 = vmatprep.subr.mxu0 0.0
    %720 = vmatpush1.msra.mxu0 0.0
    %721 = vmatprep.subr.mxu0 0.0
    %722 = vmatpush1.msra.mxu0 0.0
    %723 = vmatprep.subr.mxu0 0.0
    %724 = vmatpush1.msra.mxu0 0.0
    %725 = vmatprep.subr.mxu0 0.0
    %726 = vmatpush1.msra.mxu0 0.0
    %727 = vmatprep.subr.mxu0 0.0
    %728 = vmatpush1.msra.mxu0 0.0
    %729 = vmatprep.subr.mxu0 0.0
    %730 = vmatpush1.msra.mxu0 0.0
    %731 = vmatprep.subr.mxu0 0.0
    %732 = vmatpush1.msra.mxu0 0.0
    %733 = vmatprep.subr.mxu0 0.0
    %734 = vmatpush1.msra.mxu0 0.0
    %735 = vmatprep.subr.mxu0 0.0
    %736 = vmatpush1.msra.mxu0 0.0
    %737 = vmatprep.subr.mxu0 0.0
    %738 = vmatpush1.msra.mxu0 0.0
    %739 = vmatprep.subr.mxu0 0.0
    %740 = vmatpush1.msra.mxu0 0.0
    %741 = vmatprep.subr.mxu0 0.0
    %742 = vmatpush1.msra.mxu0 0.0
    %743 = vmatprep.subr.mxu0 0.0
    %744 = vmatpush1.msra.mxu0 0.0
    %745 = vmatprep.subr.mxu0 0.0
    %746 = vmatpush1.msra.mxu0 0.0
    %747 = vmatprep.subr.mxu0 0.0
    %748 = vmatpush1.msra.mxu0 0.0
    %749 = vmatprep.subr.mxu0 0.0
    %750 = vmatpush1.msra.mxu0 0.0
    %751 = vmatprep.subr.mxu0 0.0
    %752 = vmatpush1.msra.mxu0 0.0
    %753 = vmatprep.subr.mxu0 0.0
    %754 = vmatpush1.msra.mxu0 0.0
    %755 = vmatprep.subr.mxu0 0.0
    %756 = vmatpush1.msra.mxu0 0.0
    %757 = vmatprep.subr.mxu0 0.0
    %758 = vmatpush1.msra.mxu0 0.0
    %759 = vmatprep.subr.mxu0 0.0
    %760 = vmatpush1.msra.mxu0 0.0
    %761 = vmatprep.subr.mxu0 0.0
    %762 = vmatpush1.msra.mxu0 0.0
    %763 = vmatprep.subr.mxu0 0.0
    %764 = vmatpush1.msra.mxu0 0.0
    %765 = vmatprep.mubr.f32.mxu0 0.0
    %766 = vmatmul.mubr.f32.gmra.mrb[0].mxu0 %v626
    %v767 = vpop.f32.mrb[0].mxu0
    %v768 = vadd.f32 0.0, %v767
    %v769 = vpop.f32.mrb[0].mxu0
    %770 = vdwg.mxu0
    %v771 = vadd.f32 %v700, %v768
    %s772 = scalar_lea.vmem [#allocation4], 8
    %v773 = vld [vmem:[%s772] sm:$0xff]
    %774 = vmatprep.subr.mxu0 0.0
    %775 = vmatpush1.msra.mxu0 %v292
    %776 = vmatprep.subr.mxu0 0.0
    %777 = vmatpush1.msra.mxu0 %v293
    %778 = vmatprep.subr.mxu0 0.0
    %779 = vmatpush1.msra.mxu0 %v294
    %780 = vmatprep.subr.mxu0 0.0
    %781 = vmatpush1.msra.mxu0 %v295
    %782 = vmatprep.subr.mxu0 0.0
    %783 = vmatpush1.msra.mxu0 %v296
    %784 = vmatprep.subr.mxu0 0.0
    %785 = vmatpush1.msra.mxu0 %v297
    %786 = vmatprep.subr.mxu0 0.0
    %787 = vmatpush1.msra.mxu0 %v298
    %788 = vmatprep.subr.mxu0 0.0
    %789 = vmatpush1.msra.mxu0 %v299
    %790 = vmatprep.subr.mxu0 0.0
    %791 = vmatpush1.msra.mxu0 0.0
    %792 = vmatprep.subr.mxu0 0.0
    %793 = vmatpush1.msra.mxu0 0.0
    %794 = vmatprep.subr.mxu0 0.0
    %795 = vmatpush1.msra.mxu0 0.0
    %796 = vmatprep.subr.mxu0 0.0
    %797 = vmatpush1.msra.mxu0 0.0
    %798 = vmatprep.subr.mxu0 0.0
    %799 = vmatpush1.msra.mxu0 0.0
    %800 = vmatprep.subr.mxu0 0.0
    %801 = vmatpush1.msra.mxu0 0.0
    %802 = vmatprep.subr.mxu0 0.0
    %803 = vmatpush1.msra.mxu0 0.0
    %804 = vmatprep.subr.mxu0 0.0
    %805 = vmatpush1.msra.mxu0 0.0
    %806 = vmatprep.subr.mxu0 0.0
    %807 = vmatpush1.msra.mxu0 0.0
    %808 = vmatprep.subr.mxu0 0.0
    %809 = vmatpush1.msra.mxu0 0.0
    %810 = vmatprep.subr.mxu0 0.0
    %811 = vmatpush1.msra.mxu0 0.0
    %812 = vmatprep.subr.mxu0 0.0
    %813 = vmatpush1.msra.mxu0 0.0
    %814 = vmatprep.subr.mxu0 0.0
    %815 = vmatpush1.msra.mxu0 0.0
    %816 = vmatprep.subr.mxu0 0.0
    %817 = vmatpush1.msra.mxu0 0.0
    %818 = vmatprep.subr.mxu0 0.0
    %819 = vmatpush1.msra.mxu0 0.0
    %820 = vmatprep.subr.mxu0 0.0
    %821 = vmatpush1.msra.mxu0 0.0
    %822 = vmatprep.subr.mxu0 0.0
    %823 = vmatpush1.msra.mxu0 0.0
    %824 = vmatprep.subr.mxu0 0.0
    %825 = vmatpush1.msra.mxu0 0.0
    %826 = vmatprep.subr.mxu0 0.0
    %827 = vmatpush1.msra.mxu0 0.0
    %828 = vmatprep.subr.mxu0 0.0
    %829 = vmatpush1.msra.mxu0 0.0
    %830 = vmatprep.subr.mxu0 0.0
    %831 = vmatpush1.msra.mxu0 0.0
    %832 = vmatprep.subr.mxu0 0.0
    %833 = vmatpush1.msra.mxu0 0.0
    %834 = vmatprep.subr.mxu0 0.0
    %835 = vmatpush1.msra.mxu0 0.0
    %836 = vmatprep.subr.mxu0 0.0
    %837 = vmatpush1.msra.mxu0 0.0
    %838 = vmatprep.mubr.f32.mxu0 0.0
    %839 = vmatmul.mubr.f32.gmra.mrb[0].mxu0 %v626
    %v840 = vpop.f32.mrb[0].mxu0
    %v841 = vadd.f32 0.0, %v840
    %v842 = vpop.f32.mrb[0].mxu0
    %843 = vdwg.mxu0
    %v844 = vadd.f32 %v773, %v841
    %s845 = scalar_lea.vmem [#allocation5], 8
    %v846 = vld [vmem:[%s845] sm:$0xff]
    %847 = vmatprep.subr.mxu0 0.0
    %848 = vmatpush1.msra.mxu0 %v300
    %849 = vmatprep.subr.mxu0 0.0
    %850 = vmatpush1.msra.mxu0 %v301
    %851 = vmatprep.subr.mxu0 0.0
    %852 = vmatpush1.msra.mxu0 %v302
    %853 = vmatprep.subr.mxu0 0.0
    %854 = vmatpush1.msra.mxu0 %v303
    %855 = vmatprep.subr.mxu0 0.0
    %856 = vmatpush1.msra.mxu0 %v304
    %857 = vmatprep.subr.mxu0 0.0
    %858 = vmatpush1.msra.mxu0 %v305
    %859 = vmatprep.subr.mxu0 0.0
    %860 = vmatpush1.msra.mxu0 %v306
    %861 = vmatprep.subr.mxu0 0.0
    %862 = vmatpush1.msra.mxu0 %v307
    %863 = vmatprep.subr.mxu0 0.0
    %864 = vmatpush1.msra.mxu0 0.0
    %865 = vmatprep.subr.mxu0 0.0
    %866 = vmatpush1.msra.mxu0 0.0
    %867 = vmatprep.subr.mxu0 0.0
    %868 = vmatpush1.msra.mxu0 0.0
    %869 = vmatprep.subr.mxu0 0.0
    %870 = vmatpush1.msra.mxu0 0.0
    %871 = vmatprep.subr.mxu0 0.0
    %872 = vmatpush1.msra.mxu0 0.0
    %873 = vmatprep.subr.mxu0 0.0
    %874 = vmatpush1.msra.mxu0 0.0
    %875 = vmatprep.subr.mxu0 0.0
    %876 = vmatpush1.msra.mxu0 0.0
    %877 = vmatprep.subr.mxu0 0.0
    %878 = vmatpush1.msra.mxu0 0.0
    %879 = vmatprep.subr.mxu0 0.0
    %880 = vmatpush1.msra.mxu0 0.0
    %881 = vmatprep.subr.mxu0 0.0
    %882 = vmatpush1.msra.mxu0 0.0
    %883 = vmatprep.subr.mxu0 0.0
    %884 = vmatpush1.msra.mxu0 0.0
    %885 = vmatprep.subr.mxu0 0.0
    %886 = vmatpush1.msra.mxu0 0.0
    %887 = vmatprep.subr.mxu0 0.0
    %888 = vmatpush1.msra.mxu0 0.0
    %889 = vmatprep.subr.mxu0 0.0
    %890 = vmatpush1.msra.mxu0 0.0
    %891 = vmatprep.subr.mxu0 0.0
    %892 = vmatpush1.msra.mxu0 0.0
    %893 = vmatprep.subr.mxu0 0.0
    %894 = vmatpush1.msra.mxu0 0.0
    %895 = vmatprep.subr.mxu0 0.0
    %896 = vmatpush1.msra.mxu0 0.0
    %897 = vmatprep.subr.mxu0 0.0
    %898 = vmatpush1.msra.mxu0 0.0
    %899 = vmatprep.subr.mxu0 0.0
    %900 = vmatpush1.msra.mxu0 0.0
    %901 = vmatprep.subr.mxu0 0.0
    %902 = vmatpush1.msra.mxu0 0.0
    %903 = vmatprep.subr.mxu0 0.0
    %904 = vmatpush1.msra.mxu0 0.0
    %905 = vmatprep.subr.mxu0 0.0
    %906 = vmatpush1.msra.mxu0 0.0
    %907 = vmatprep.subr.mxu0 0.0
    %908 = vmatpush1.msra.mxu0 0.0
    %909 = vmatprep.subr.mxu0 0.0
    %910 = vmatpush1.msra.mxu0 0.0
    %911 = vmatprep.mubr.f32.mxu0 0.0
    %912 = vmatmul.mubr.f32.gmra.mrb[0].mxu0 %v626
    %v913 = vpop.f32.mrb[0].mxu0
    %v914 = vadd.f32 0.0, %v913
    %v915 = vpop.f32.mrb[0].mxu0
    %916 = vdwg.mxu0
    %v917 = vadd.f32 %v846, %v914
    %v918 = vxor.u32 %v698, 2147483648
    %v919 = vmul.f32 %v918, 1.442695
    %v920 = vpow.pop %v919
    %v921 = vadd.f32 %v920, 1.0
    %v922 = vrcp.pop %v921
    %v923 = vmul.f32 1.0, %v922
    %v924 = vxor.u32 %v771, 2147483648
    %v925 = vmul.f32 %v924, 1.442695
    %v926 = vpow.pop %v925
    %v927 = vadd.f32 %v926, 1.0
    %v928 = vrcp.pop %v927
    %v929 = vmul.f32 1.0, %v928
    %v930 = vtanh.pop %v844
    %v931 = vxor.u32 %v917, 2147483648
    %v932 = vmul.f32 %v931, 1.442695
    %v933 = vpow.pop %v932
    %v934 = vadd.f32 %v933, 1.0
    %v935 = vrcp.pop %v934
    %v936 = vmul.f32 1.0, %v935
    %v937 = vmul.f32 %v929, %v620
    %v938 = vmul.f32 %v923, %v930
    %v939 = vadd.f32 %v937, %v938
    %v940 = vtanh.pop %v939
    %v941 = vmul.f32 %v936, %v940
    %s942 = scalar_lea.vmem [#allocation2], 16
    %v943 = vld [vmem:[%s942] sm:$0xff]
    %v945 = vsel %vm179, %v941, 0
    %947 = vmatprep.subr.mxu0 0.0
    %948 = vmatpush1.msra.mxu0 %v276
    %949 = vmatprep.subr.mxu0 0.0
    %950 = vmatpush1.msra.mxu0 %v277
    %951 = vmatprep.subr.mxu0 0.0
    %952 = vmatpush1.msra.mxu0 %v278
    %953 = vmatprep.subr.mxu0 0.0
    %954 = vmatpush1.msra.mxu0 %v279
    %955 = vmatprep.subr.mxu0 0.0
    %956 = vmatpush1.msra.mxu0 %v280
    %957 = vmatprep.subr.mxu0 0.0
    %958 = vmatpush1.msra.mxu0 %v281
    %959 = vmatprep.subr.mxu0 0.0
    %960 = vmatpush1.msra.mxu0 %v282
    %961 = vmatprep.subr.mxu0 0.0
    %962 = vmatpush1.msra.mxu0 %v283
    %963 = vmatprep.subr.mxu0 0.0
    %964 = vmatpush1.msra.mxu0 0.0
    %965 = vmatprep.subr.mxu0 0.0
    %966 = vmatpush1.msra.mxu0 0.0
    %967 = vmatprep.subr.mxu0 0.0
    %968 = vmatpush1.msra.mxu0 0.0
    %969 = vmatprep.subr.mxu0 0.0
    %970 = vmatpush1.msra.mxu0 0.0
    %971 = vmatprep.subr.mxu0 0.0
    %972 = vmatpush1.msra.mxu0 0.0
    %973 = vmatprep.subr.mxu0 0.0
    %974 = vmatpush1.msra.mxu0 0.0
    %975 = vmatprep.subr.mxu0 0.0
    %976 = vmatpush1.msra.mxu0 0.0
    %977 = vmatprep.subr.mxu0 0.0
    %978 = vmatpush1.msra.mxu0 0.0
    %979 = vmatprep.subr.mxu0 0.0
    %980 = vmatpush1.msra.mxu0 0.0
    %981 = vmatprep.subr.mxu0 0.0
    %982 = vmatpush1.msra.mxu0 0.0
    %983 = vmatprep.subr.mxu0 0.0
    %984 = vmatpush1.msra.mxu0 0.0
    %985 = vmatprep.subr.mxu0 0.0
    %986 = vmatpush1.msra.mxu0 0.0
    %987 = vmatprep.subr.mxu0 0.0
    %988 = vmatpush1.msra.mxu0 0.0
    %989 = vmatprep.subr.mxu0 0.0
    %990 = vmatpush1.msra.mxu0 0.0
    %991 = vmatprep.subr.mxu0 0.0
    %992 = vmatpush1.msra.mxu0 0.0
    %993 = vmatprep.subr.mxu0 0.0
    %994 = vmatpush1.msra.mxu0 0.0
    %995 = vmatprep.subr.mxu0 0.0
    %996 = vmatpush1.msra.mxu0 0.0
    %997 = vmatprep.subr.mxu0 0.0
    %998 = vmatpush1.msra.mxu0 0.0
    %999 = vmatprep.subr.mxu0 0.0
    %1000 = vmatpush1.msra.mxu0 0.0
    %1001 = vmatprep.subr.mxu0 0.0
    %1002 = vmatpush1.msra.mxu0 0.0
    %1003 = vmatprep.subr.mxu0 0.0
    %1004 = vmatpush1.msra.mxu0 0.0
    %1005 = vmatprep.subr.mxu0 0.0
    %1006 = vmatpush1.msra.mxu0 0.0
    %1007 = vmatprep.subr.mxu0 0.0
    %1008 = vmatpush1.msra.mxu0 0.0
    %1009 = vmatprep.subr.mxu0 0.0
    %1010 = vmatpush1.msra.mxu0 0.0
    %1011 = vmatprep.mubr.f32.mxu0 0.0
    %1012 = vmatmul.mubr.f32.gmra.mrb[0].mxu0 %v945
    %v1013 = vpop.f32.mrb[0].mxu0
    %v1014 = vadd.f32 0.0, %v1013
    %v1015 = vpop.f32.mrb[0].mxu0
    %1016 = vdwg.mxu0
    %v1017 = vadd.f32 %v943, %v1014
    %s1018 = scalar_lea.vmem [#allocation3], 16
    %v1019 = vld [vmem:[%s1018] sm:$0xff]
    %1020 = vmatprep.subr.mxu0 0.0
    %1021 = vmatpush1.msra.mxu0 %v284
    %1022 = vmatprep.subr.mxu0 0.0
    %1023 = vmatpush1.msra.mxu0 %v285
    %1024 = vmatprep.subr.mxu0 0.0
    %1025 = vmatpush1.msra.mxu0 %v286
    %1026 = vmatprep.subr.mxu0 0.0
    %1027 = vmatpush1.msra.mxu0 %v287
    %1028 = vmatprep.subr.mxu0 0.0
    %1029 = vmatpush1.msra.mxu0 %v288
    %1030 = vmatprep.subr.mxu0 0.0
    %1031 = vmatpush1.msra.mxu0 %v289
    %1032 = vmatprep.subr.mxu0 0.0
    %1033 = vmatpush1.msra.mxu0 %v290
    %1034 = vmatprep.subr.mxu0 0.0
    %1035 = vmatpush1.msra.mxu0 %v291
    %1036 = vmatprep.subr.mxu0 0.0
    %1037 = vmatpush1.msra.mxu0 0.0
    %1038 = vmatprep.subr.mxu0 0.0
    %1039 = vmatpush1.msra.mxu0 0.0
    %1040 = vmatprep.subr.mxu0 0.0
    %1041 = vmatpush1.msra.mxu0 0.0
    %1042 = vmatprep.subr.mxu0 0.0
    %1043 = vmatpush1.msra.mxu0 0.0
    %1044 = vmatprep.subr.mxu0 0.0
    %1045 = vmatpush1.msra.mxu0 0.0
    %1046 = vmatprep.subr.mxu0 0.0
    %1047 = vmatpush1.msra.mxu0 0.0
    %1048 = vmatprep.subr.mxu0 0.0
    %1049 = vmatpush1.msra.mxu0 0.0
    %1050 = vmatprep.subr.mxu0 0.0
    %1051 = vmatpush1.msra.mxu0 0.0
    %1052 = vmatprep.subr.mxu0 0.0
    %1053 = vmatpush1.msra.mxu0 0.0
    %1054 = vmatprep.subr.mxu0 0.0
    %1055 = vmatpush1.msra.mxu0 0.0
    %1056 = vmatprep.subr.mxu0 0.0
    %1057 = vmatpush1.msra.mxu0 0.0
    %1058 = vmatprep.subr.mxu0 0.0
    %1059 = vmatpush1.msra.mxu0 0.0
    %1060 = vmatprep.subr.mxu0 0.0
    %1061 = vmatpush1.msra.mxu0 0.0
    %1062 = vmatprep.subr.mxu0 0.0
    %1063 = vmatpush1.msra.mxu0 0.0
    %1064 = vmatprep.subr.mxu0 0.0
    %1065 = vmatpush1.msra.mxu0 0.0
    %1066 = vmatprep.subr.mxu0 0.0
    %1067 = vmatpush1.msra.mxu0 0.0
    %1068 = vmatprep.subr.mxu0 0.0
    %1069 = vmatpush1.msra.mxu0 0.0
    %1070 = vmatprep.subr.mxu0 0.0
    %1071 = vmatpush1.msra.mxu0 0.0
    %1072 = vmatprep.subr.mxu0 0.0
    %1073 = vmatpush1.msra.mxu0 0.0
    %1074 = vmatprep.subr.mxu0 0.0
    %1075 = vmatpush1.msra.mxu0 0.0
    %1076 = vmatprep.subr.mxu0 0.0
    %1077 = vmatpush1.msra.mxu0 0.0
    %1078 = vmatprep.subr.mxu0 0.0
    %1079 = vmatpush1.msra.mxu0 0.0
    %1080 = vmatprep.subr.mxu0 0.0
    %1081 = vmatpush1.msra.mxu0 0.0
    %1082 = vmatprep.subr.mxu0 0.0
    %1083 = vmatpush1.msra.mxu0 0.0
    %1084 = vmatprep.mubr.f32.mxu0 0.0
    %1085 = vmatmul.mubr.f32.gmra.mrb[0].mxu0 %v945
    %v1086 = vpop.f32.mrb[0].mxu0
    %v1087 = vadd.f32 0.0, %v1086
    %v1088 = vpop.f32.mrb[0].mxu0
    %1089 = vdwg.mxu0
    %v1090 = vadd.f32 %v1019, %v1087
    %s1091 = scalar_lea.vmem [#allocation4], 16
    %v1092 = vld [vmem:[%s1091] sm:$0xff]
    %1093 = vmatprep.subr.mxu0 0.0
    %1094 = vmatpush1.msra.mxu0 %v292
    %1095 = vmatprep.subr.mxu0 0.0
    %1096 = vmatpush1.msra.mxu0 %v293
    %1097 = vmatprep.subr.mxu0 0.0
    %1098 = vmatpush1.msra.mxu0 %v294
    %1099 = vmatprep.subr.mxu0 0.0
    %1100 = vmatpush1.msra.mxu0 %v295
    %1101 = vmatprep.subr.mxu0 0.0
    %1102 = vmatpush1.msra.mxu0 %v296
    %1103 = vmatprep.subr.mxu0 0.0
    %1104 = vmatpush1.msra.mxu0 %v297
    %1105 = vmatprep.subr.mxu0 0.0
    %1106 = vmatpush1.msra.mxu0 %v298
    %1107 = vmatprep.subr.mxu0 0.0
    %1108 = vmatpush1.msra.mxu0 %v299
    %1109 = vmatprep.subr.mxu0 0.0
    %1110 = vmatpush1.msra.mxu0 0.0
    %1111 = vmatprep.subr.mxu0 0.0
    %1112 = vmatpush1.msra.mxu0 0.0
    %1113 = vmatprep.subr.mxu0 0.0
    %1114 = vmatpush1.msra.mxu0 0.0
    %1115 = vmatprep.subr.mxu0 0.0
    %1116 = vmatpush1.msra.mxu0 0.0
    %1117 = vmatprep.subr.mxu0 0.0
    %1118 = vmatpush1.msra.mxu0 0.0
    %1119 = vmatprep.subr.mxu0 0.0
    %1120 = vmatpush1.msra.mxu0 0.0
    %1121 = vmatprep.subr.mxu0 0.0
    %1122 = vmatpush1.msra.mxu0 0.0
    %1123 = vmatprep.subr.mxu0 0.0
    %1124 = vmatpush1.msra.mxu0 0.0
    %1125 = vmatprep.subr.mxu0 0.0
    %1126 = vmatpush1.msra.mxu0 0.0
    %1127 = vmatprep.subr.mxu0 0.0
    %1128 = vmatpush1.msra.mxu0 0.0
    %1129 = vmatprep.subr.mxu0 0.0
    %1130 = vmatpush1.msra.mxu0 0.0
    %1131 = vmatprep.subr.mxu0 0.0
    %1132 = vmatpush1.msra.mxu0 0.0
    %1133 = vmatprep.subr.mxu0 0.0
    %1134 = vmatpush1.msra.mxu0 0.0
    %1135 = vmatprep.subr.mxu0 0.0
    %1136 = vmatpush1.msra.mxu0 0.0
    %1137 = vmatprep.subr.mxu0 0.0
    %1138 = vmatpush1.msra.mxu0 0.0
    %1139 = vmatprep.subr.mxu0 0.0
    %1140 = vmatpush1.msra.mxu0 0.0
    %1141 = vmatprep.subr.mxu0 0.0
    %1142 = vmatpush1.msra.mxu0 0.0
    %1143 = vmatprep.subr.mxu0 0.0
    %1144 = vmatpush1.msra.mxu0 0.0
    %1145 = vmatprep.subr.mxu0 0.0
    %1146 = vmatpush1.msra.mxu0 0.0
    %1147 = vmatprep.subr.mxu0 0.0
    %1148 = vmatpush1.msra.mxu0 0.0
    %1149 = vmatprep.subr.mxu0 0.0
    %1150 = vmatpush1.msra.mxu0 0.0
    %1151 = vmatprep.subr.mxu0 0.0
    %1152 = vmatpush1.msra.mxu0 0.0
    %1153 = vmatprep.subr.mxu0 0.0
    %1154 = vmatpush1.msra.mxu0 0.0
    %1155 = vmatprep.subr.mxu0 0.0
    %1156 = vmatpush1.msra.mxu0 0.0
    %1157 = vmatprep.mubr.f32.mxu0 0.0
    %1158 = vmatmul.mubr.f32.gmra.mrb[0].mxu0 %v945
    %v1159 = vpop.f32.mrb[0].mxu0
    %v1160 = vadd.f32 0.0, %v1159
    %v1161 = vpop.f32.mrb[0].mxu0
    %1162 = vdwg.mxu0
    %v1163 = vadd.f32 %v1092, %v1160
    %s1164 = scalar_lea.vmem [#allocation5], 16
    %v1165 = vld [vmem:[%s1164] sm:$0xff]
    %1166 = vmatprep.subr.mxu0 0.0
    %1167 = vmatpush1.msra.mxu0 %v300
    %1168 = vmatprep.subr.mxu0 0.0
    %1169 = vmatpush1.msra.mxu0 %v301
    %1170 = vmatprep.subr.mxu0 0.0
    %1171 = vmatpush1.msra.mxu0 %v302
    %1172 = vmatprep.subr.mxu0 0.0
    %1173 = vmatpush1.msra.mxu0 %v303
    %1174 = vmatprep.subr.mxu0 0.0
    %1175 = vmatpush1.msra.mxu0 %v304
    %1176 = vmatprep.subr.mxu0 0.0
    %1177 = vmatpush1.msra.mxu0 %v305
    %1178 = vmatprep.subr.mxu0 0.0
    %1179 = vmatpush1.msra.mxu0 %v306
    %1180 = vmatprep.subr.mxu0 0.0
    %1181 = vmatpush1.msra.mxu0 %v307
    %1182 = vmatprep.subr.mxu0 0.0
    %1183 = vmatpush1.msra.mxu0 0.0
    %1184 = vmatprep.subr.mxu0 0.0
    %1185 = vmatpush1.msra.mxu0 0.0
    %1186 = vmatprep.subr.mxu0 0.0
    %1187 = vmatpush1.msra.mxu0 0.0
    %1188 = vmatprep.subr.mxu0 0.0
    %1189 = vmatpush1.msra.mxu0 0.0
    %1190 = vmatprep.subr.mxu0 0.0
    %1191 = vmatpush1.msra.mxu0 0.0
    %1192 = vmatprep.subr.mxu0 0.0
    %1193 = vmatpush1.msra.mxu0 0.0
    %1194 = vmatprep.subr.mxu0 0.0
    %1195 = vmatpush1.msra.mxu0 0.0
    %1196 = vmatprep.subr.mxu0 0.0
    %1197 = vmatpush1.msra.mxu0 0.0
    %1198 = vmatprep.subr.mxu0 0.0
    %1199 = vmatpush1.msra.mxu0 0.0
    %1200 = vmatprep.subr.mxu0 0.0
    %1201 = vmatpush1.msra.mxu0 0.0
    %1202 = vmatprep.subr.mxu0 0.0
    %1203 = vmatpush1.msra.mxu0 0.0
    %1204 = vmatprep.subr.mxu0 0.0
    %1205 = vmatpush1.msra.mxu0 0.0
    %1206 = vmatprep.subr.mxu0 0.0
    %1207 = vmatpush1.msra.mxu0 0.0
    %1208 = vmatprep.subr.mxu0 0.0
    %1209 = vmatpush1.msra.mxu0 0.0
    %1210 = vmatprep.subr.mxu0 0.0
    %1211 = vmatpush1.msra.mxu0 0.0
    %1212 = vmatprep.subr.mxu0 0.0
    %1213 = vmatpush1.msra.mxu0 0.0
    %1214 = vmatprep.subr.mxu0 0.0
    %1215 = vmatpush1.msra.mxu0 0.0
    %1216 = vmatprep.subr.mxu0 0.0
    %1217 = vmatpush1.msra.mxu0 0.0
    %1218 = vmatprep.subr.mxu0 0.0
    %1219 = vmatpush1.msra.mxu0 0.0
    %1220 = vmatprep.subr.mxu0 0.0
    %1221 = vmatpush1.msra.mxu0 0.0
    %1222 = vmatprep.subr.mxu0 0.0
    %1223 = vmatpush1.msra.mxu0 0.0
    %1224 = vmatprep.subr.mxu0 0.0
    %1225 = vmatpush1.msra.mxu0 0.0
    %1226 = vmatprep.subr.mxu0 0.0
    %1227 = vmatpush1.msra.mxu0 0.0
    %1228 = vmatprep.subr.mxu0 0.0
    %1229 = vmatpush1.msra.mxu0 0.0
    %1230 = vmatprep.mubr.f32.mxu0 0.0
    %1231 = vmatmul.mubr.f32.gmra.mrb[0].mxu0 %v945
    %v1232 = vpop.f32.mrb[0].mxu0
    %v1233 = vadd.f32 0.0, %v1232
    %v1234 = vpop.f32.mrb[0].mxu0
    %1235 = vdwg.mxu0
    %v1236 = vadd.f32 %v1165, %v1233
    %v1237 = vxor.u32 %v1017, 2147483648
    %v1238 = vmul.f32 %v1237, 1.442695
    %v1239 = vpow.pop %v1238
    %v1240 = vadd.f32 %v1239, 1.0
    %v1241 = vrcp.pop %v1240
    %v1242 = vmul.f32 1.0, %v1241
    %v1243 = vxor.u32 %v1090, 2147483648
    %v1244 = vmul.f32 %v1243, 1.442695
    %v1245 = vpow.pop %v1244
    %v1246 = vadd.f32 %v1245, 1.0
    %v1247 = vrcp.pop %v1246
    %v1248 = vmul.f32 1.0, %v1247
    %v1249 = vtanh.pop %v1163
    %v1250 = vxor.u32 %v1236, 2147483648
    %v1251 = vmul.f32 %v1250, 1.442695
    %v1252 = vpow.pop %v1251
    %v1253 = vadd.f32 %v1252, 1.0
    %v1254 = vrcp.pop %v1253
    %v1255 = vmul.f32 1.0, %v1254
    %v1256 = vmul.f32 %v1248, %v939
    %v1257 = vmul.f32 %v1242, %v1249
    %v1258 = vadd.f32 %v1256, %v1257
    %v1259 = vtanh.pop %v1258
    %v1260 = vmul.f32 %v1255, %v1259
    %s1261 = scalar_lea.vmem [#allocation2], 24
    %v1262 = vld [vmem:[%s1261] sm:$0xff]
    %v1264 = vsel %vm179, %v1260, 0
    %1266 = vmatprep.subr.mxu0 0.0
    %1267 = vmatpush1.msra.mxu0 %v276
    %1268 = vmatprep.subr.mxu0 0.0
    %1269 = vmatpush1.msra.mxu0 %v277
    %1270 = vmatprep.subr.mxu0 0.0
    %1271 = vmatpush1.msra.mxu0 %v278
    %1272 = vmatprep.subr.mxu0 0.0
    %1273 = vmatpush1.msra.mxu0 %v279
    %1274 = vmatprep.subr.mxu0 0.0
    %1275 = vmatpush1.msra.mxu0 %v280
    %1276 = vmatprep.subr.mxu0 0.0
    %1277 = vmatpush1.msra.mxu0 %v281
    %1278 = vmatprep.subr.mxu0 0.0
    %1279 = vmatpush1.msra.mxu0 %v282
    %1280 = vmatprep.subr.mxu0 0.0
    %1281 = vmatpush1.msra.mxu0 %v283
    %1282 = vmatprep.subr.mxu0 0.0
    %1283 = vmatpush1.msra.mxu0 0.0
    %1284 = vmatprep.subr.mxu0 0.0
    %1285 = vmatpush1.msra.mxu0 0.0
    %1286 = vmatprep.subr.mxu0 0.0
    %1287 = vmatpush1.msra.mxu0 0.0
    %1288 = vmatprep.subr.mxu0 0.0
    %1289 = vmatpush1.msra.mxu0 0.0
    %1290 = vmatprep.subr.mxu0 0.0
    %1291 = vmatpush1.msra.mxu0 0.0
    %1292 = vmatprep.subr.mxu0 0.0
    %1293 = vmatpush1.msra.mxu0 0.0
    %1294 = vmatprep.subr.mxu0 0.0
    %1295 = vmatpush1.msra.mxu0 0.0
    %1296 = vmatprep.subr.mxu0 0.0
    %1297 = vmatpush1.msra.mxu0 0.0
    %1298 = vmatprep.subr.mxu0 0.0
    %1299 = vmatpush1.msra.mxu0 0.0
    %1300 = vmatprep.subr.mxu0 0.0
    %1301 = vmatpush1.msra.mxu0 0.0
    %1302 = vmatprep.subr.mxu0 0.0
    %1303 = vmatpush1.msra.mxu0 0.0
    %1304 = vmatprep.subr.mxu0 0.0
    %1305 = vmatpush1.msra.mxu0 0.0
    %1306 = vmatprep.subr.mxu0 0.0
    %1307 = vmatpush1.msra.mxu0 0.0
    %1308 = vmatprep.subr.mxu0 0.0
    %1309 = vmatpush1.msra.mxu0 0.0
    %1310 = vmatprep.subr.mxu0 0.0
    %1311 = vmatpush1.msra.mxu0 0.0
    %1312 = vmatprep.subr.mxu0 0.0
    %1313 = vmatpush1.msra.mxu0 0.0
    %1314 = vmatprep.subr.mxu0 0.0
    %1315 = vmatpush1.msra.mxu0 0.0
    %1316 = vmatprep.subr.mxu0 0.0
    %1317 = vmatpush1.msra.mxu0 0.0
    %1318 = vmatprep.subr.mxu0 0.0
    %1319 = vmatpush1.msra.mxu0 0.0
    %1320 = vmatprep.subr.mxu0 0.0
    %1321 = vmatpush1.msra.mxu0 0.0
    %1322 = vmatprep.subr.mxu0 0.0
    %1323 = vmatpush1.msra.mxu0 0.0
    %1324 = vmatprep.subr.mxu0 0.0
    %1325 = vmatpush1.msra.mxu0 0.0
    %1326 = vmatprep.subr.mxu0 0.0
    %1327 = vmatpush1.msra.mxu0 0.0
    %1328 = vmatprep.subr.mxu0 0.0
    %1329 = vmatpush1.msra.mxu0 0.0
    %1330 = vmatprep.mubr.f32.mxu0 0.0
    %1331 = vmatmul.mubr.f32.gmra.mrb[0].mxu0 %v1264
    %v1332 = vpop.f32.mrb[0].mxu0
    %v1333 = vadd.f32 0.0, %v1332
    %v1334 = vpop.f32.mrb[0].mxu0
    %1335 = vdwg.mxu0
    %v1336 = vadd.f32 %v1262, %v1333
    %s1337 = scalar_lea.vmem [#allocation3], 24
    %v1338 = vld [vmem:[%s1337] sm:$0xff]
    %1339 = vmatprep.subr.mxu0 0.0
    %1340 = vmatpush1.msra.mxu0 %v284
    %1341 = vmatprep.subr.mxu0 0.0
    %1342 = vmatpush1.msra.mxu0 %v285
    %1343 = vmatprep.subr.mxu0 0.0
    %1344 = vmatpush1.msra.mxu0 %v286
    %1345 = vmatprep.subr.mxu0 0.0
    %1346 = vmatpush1.msra.mxu0 %v287
    %1347 = vmatprep.subr.mxu0 0.0
    %1348 = vmatpush1.msra.mxu0 %v288
    %1349 = vmatprep.subr.mxu0 0.0
    %1350 = vmatpush1.msra.mxu0 %v289
    %1351 = vmatprep.subr.mxu0 0.0
    %1352 = vmatpush1.msra.mxu0 %v290
    %1353 = vmatprep.subr.mxu0 0.0
    %1354 = vmatpush1.msra.mxu0 %v291
    %1355 = vmatprep.subr.mxu0 0.0
    %1356 = vmatpush1.msra.mxu0 0.0
    %1357 = vmatprep.subr.mxu0 0.0
    %1358 = vmatpush1.msra.mxu0 0.0
    %1359 = vmatprep.subr.mxu0 0.0
    %1360 = vmatpush1.msra.mxu0 0.0
    %1361 = vmatprep.subr.mxu0 0.0
    %1362 = vmatpush1.msra.mxu0 0.0
    %1363 = vmatprep.subr.mxu0 0.0
    %1364 = vmatpush1.msra.mxu0 0.0
    %1365 = vmatprep.subr.mxu0 0.0
    %1366 = vmatpush1.msra.mxu0 0.0
    %1367 = vmatprep.subr.mxu0 0.0
    %1368 = vmatpush1.msra.mxu0 0.0
    %1369 = vmatprep.subr.mxu0 0.0
    %1370 = vmatpush1.msra.mxu0 0.0
    %1371 = vmatprep.subr.mxu0 0.0
    %1372 = vmatpush1.msra.mxu0 0.0
    %1373 = vmatprep.subr.mxu0 0.0
    %1374 = vmatpush1.msra.mxu0 0.0
    %1375 = vmatprep.subr.mxu0 0.0
    %1376 = vmatpush1.msra.mxu0 0.0
    %1377 = vmatprep.subr.mxu0 0.0
    %1378 = vmatpush1.msra.mxu0 0.0
    %1379 = vmatprep.subr.mxu0 0.0
    %1380 = vmatpush1.msra.mxu0 0.0
    %1381 = vmatprep.subr.mxu0 0.0
    %1382 = vmatpush1.msra.mxu0 0.0
    %1383 = vmatprep.subr.mxu0 0.0
    %1384 = vmatpush1.msra.mxu0 0.0
    %1385 = vmatprep.subr.mxu0 0.0
    %1386 = vmatpush1.msra.mxu0 0.0
    %1387 = vmatprep.subr.mxu0 0.0
    %1388 = vmatpush1.msra.mxu0 0.0
    %1389 = vmatprep.subr.mxu0 0.0
    %1390 = vmatpush1.msra.mxu0 0.0
    %1391 = vmatprep.subr.mxu0 0.0
    %1392 = vmatpush1.msra.mxu0 0.0
    %1393 = vmatprep.subr.mxu0 0.0
    %1394 = vmatpush1.msra.mxu0 0.0
    %1395 = vmatprep.subr.mxu0 0.0
    %1396 = vmatpush1.msra.mxu0 0.0
    %1397 = vmatprep.subr.mxu0 0.0
    %1398 = vmatpush1.msra.mxu0 0.0
    %1399 = vmatprep.subr.mxu0 0.0
    %1400 = vmatpush1.msra.mxu0 0.0
    %1401 = vmatprep.subr.mxu0 0.0
    %1402 = vmatpush1.msra.mxu0 0.0
    %1403 = vmatprep.mubr.f32.mxu0 0.0
    %1404 = vmatmul.mubr.f32.gmra.mrb[0].mxu0 %v1264
    %v1405 = vpop.f32.mrb[0].mxu0
    %v1406 = vadd.f32 0.0, %v1405
    %v1407 = vpop.f32.mrb[0].mxu0
    %1408 = vdwg.mxu0
    %v1409 = vadd.f32 %v1338, %v1406
    %s1410 = scalar_lea.vmem [#allocation4], 24
    %v1411 = vld [vmem:[%s1410] sm:$0xff]
    %1412 = vmatprep.subr.mxu0 0.0
    %1413 = vmatpush1.msra.mxu0 %v292
    %1414 = vmatprep.subr.mxu0 0.0
    %1415 = vmatpush1.msra.mxu0 %v293
    %1416 = vmatprep.subr.mxu0 0.0
    %1417 = vmatpush1.msra.mxu0 %v294
    %1418 = vmatprep.subr.mxu0 0.0
    %1419 = vmatpush1.msra.mxu0 %v295
    %1420 = vmatprep.subr.mxu0 0.0
    %1421 = vmatpush1.msra.mxu0 %v296
    %1422 = vmatprep.subr.mxu0 0.0
    %1423 = vmatpush1.msra.mxu0 %v297
    %1424 = vmatprep.subr.mxu0 0.0
    %1425 = vmatpush1.msra.mxu0 %v298
    %1426 = vmatprep.subr.mxu0 0.0
    %1427 = vmatpush1.msra.mxu0 %v299
    %1428 = vmatprep.subr.mxu0 0.0
    %1429 = vmatpush1.msra.mxu0 0.0
    %1430 = vmatprep.subr.mxu0 0.0
    %1431 = vmatpush1.msra.mxu0 0.0
    %1432 = vmatprep.subr.mxu0 0.0
    %1433 = vmatpush1.msra.mxu0 0.0
    %1434 = vmatprep.subr.mxu0 0.0
    %1435 = vmatpush1.msra.mxu0 0.0
    %1436 = vmatprep.subr.mxu0 0.0
    %1437 = vmatpush1.msra.mxu0 0.0
    %1438 = vmatprep.subr.mxu0 0.0
    %1439 = vmatpush1.msra.mxu0 0.0
    %1440 = vmatprep.subr.mxu0 0.0
    %1441 = vmatpush1.msra.mxu0 0.0
    %1442 = vmatprep.subr.mxu0 0.0
    %1443 = vmatpush1.msra.mxu0 0.0
    %1444 = vmatprep.subr.mxu0 0.0
    %1445 = vmatpush1.msra.mxu0 0.0
    %1446 = vmatprep.subr.mxu0 0.0
    %1447 = vmatpush1.msra.mxu0 0.0
    %1448 = vmatprep.subr.mxu0 0.0
    %1449 = vmatpush1.msra.mxu0 0.0
    %1450 = vmatprep.subr.mxu0 0.0
    %1451 = vmatpush1.msra.mxu0 0.0
    %1452 = vmatprep.subr.mxu0 0.0
    %1453 = vmatpush1.msra.mxu0 0.0
    %1454 = vmatprep.subr.mxu0 0.0
    %1455 = vmatpush1.msra.mxu0 0.0
    %1456 = vmatprep.subr.mxu0 0.0
    %1457 = vmatpush1.msra.mxu0 0.0
    %1458 = vmatprep.subr.mxu0 0.0
    %1459 = vmatpush1.msra.mxu0 0.0
    %1460 = vmatprep.subr.mxu0 0.0
    %1461 = vmatpush1.msra.mxu0 0.0
    %1462 = vmatprep.subr.mxu0 0.0
    %1463 = vmatpush1.msra.mxu0 0.0
    %1464 = vmatprep.subr.mxu0 0.0
    %1465 = vmatpush1.msra.mxu0 0.0
    %1466 = vmatprep.subr.mxu0 0.0
    %1467 = vmatpush1.msra.mxu0 0.0
    %1468 = vmatprep.subr.mxu0 0.0
    %1469 = vmatpush1.msra.mxu0 0.0
    %1470 = vmatprep.subr.mxu0 0.0
    %1471 = vmatpush1.msra.mxu0 0.0
    %1472 = vmatprep.subr.mxu0 0.0
    %1473 = vmatpush1.msra.mxu0 0.0
    %1474 = vmatprep.subr.mxu0 0.0
    %1475 = vmatpush1.msra.mxu0 0.0
    %1476 = vmatprep.mubr.f32.mxu0 0.0
    %1477 = vmatmul.mubr.f32.gmra.mrb[0].mxu0 %v1264
    %v1478 = vpop.f32.mrb[0].mxu0
    %v1479 = vadd.f32 0.0, %v1478
    %v1480 = vpop.f32.mrb[0].mxu0
    %1481 = vdwg.mxu0
    %v1482 = vadd.f32 %v1411, %v1479
    %s1483 = scalar_lea.vmem [#allocation5], 24
    %v1484 = vld [vmem:[%s1483] sm:$0xff]
    %1485 = vmatprep.subr.mxu0 0.0
    %1486 = vmatpush1.msra.mxu0 %v300
    %1487 = vmatprep.subr.mxu0 0.0
    %1488 = vmatpush1.msra.mxu0 %v301
    %1489 = vmatprep.subr.mxu0 0.0
    %1490 = vmatpush1.msra.mxu0 %v302
    %1491 = vmatprep.subr.mxu0 0.0
    %1492 = vmatpush1.msra.mxu0 %v303
    %1493 = vmatprep.subr.mxu0 0.0
    %1494 = vmatpush1.msra.mxu0 %v304
    %1495 = vmatprep.subr.mxu0 0.0
    %1496 = vmatpush1.msra.mxu0 %v305
    %1497 = vmatprep.subr.mxu0 0.0
    %1498 = vmatpush1.msra.mxu0 %v306
    %1499 = vmatprep.subr.mxu0 0.0
    %1500 = vmatpush1.msra.mxu0 %v307
    %1501 = vmatprep.subr.mxu0 0.0
    %1502 = vmatpush1.msra.mxu0 0.0
    %1503 = vmatprep.subr.mxu0 0.0
    %1504 = vmatpush1.msra.mxu0 0.0
    %1505 = vmatprep.subr.mxu0 0.0
    %1506 = vmatpush1.msra.mxu0 0.0
    %1507 = vmatprep.subr.mxu0 0.0
    %1508 = vmatpush1.msra.mxu0 0.0
    %1509 = vmatprep.subr.mxu0 0.0
    %1510 = vmatpush1.msra.mxu0 0.0
    %1511 = vmatprep.subr.mxu0 0.0
    %1512 = vmatpush1.msra.mxu0 0.0
    %1513 = vmatprep.subr.mxu0 0.0
    %1514 = vmatpush1.msra.mxu0 0.0
    %1515 = vmatprep.subr.mxu0 0.0
    %1516 = vmatpush1.msra.mxu0 0.0
    %1517 = vmatprep.subr.mxu0 0.0
    %1518 = vmatpush1.msra.mxu0 0.0
    %1519 = vmatprep.subr.mxu0 0.0
    %1520 = vmatpush1.msra.mxu0 0.0
    %1521 = vmatprep.subr.mxu0 0.0
    %1522 = vmatpush1.msra.mxu0 0.0
    %1523 = vmatprep.subr.mxu0 0.0
    %1524 = vmatpush1.msra.mxu0 0.0
    %1525 = vmatprep.subr.mxu0 0.0
    %1526 = vmatpush1.msra.mxu0 0.0
    %1527 = vmatprep.subr.mxu0 0.0
    %1528 = vmatpush1.msra.mxu0 0.0
    %1529 = vmatprep.subr.mxu0 0.0
    %1530 = vmatpush1.msra.mxu0 0.0
    %1531 = vmatprep.subr.mxu0 0.0
    %1532 = vmatpush1.msra.mxu0 0.0
    %1533 = vmatprep.subr.mxu0 0.0
    %1534 = vmatpush1.msra.mxu0 0.0
    %1535 = vmatprep.subr.mxu0 0.0
    %1536 = vmatpush1.msra.mxu0 0.0
    %1537 = vmatprep.subr.mxu0 0.0
    %1538 = vmatpush1.msra.mxu0 0.0
    %1539 = vmatprep.subr.mxu0 0.0
    %1540 = vmatpush1.msra.mxu0 0.0
    %1541 = vmatprep.subr.mxu0 0.0
    %1542 = vmatpush1.msra.mxu0 0.0
    %1543 = vmatprep.subr.mxu0 0.0
    %1544 = vmatpush1.msra.mxu0 0.0
    %1545 = vmatprep.subr.mxu0 0.0
    %1546 = vmatpush1.msra.mxu0 0.0
    %1547 = vmatprep.subr.mxu0 0.0
    %1548 = vmatpush1.msra.mxu0 0.0
    %1549 = vmatprep.mubr.f32.mxu0 0.0
    %1550 = vmatmul.mubr.f32.gmra.mrb[0].mxu0 %v1264
    %v1551 = vpop.f32.mrb[0].mxu0
    %v1552 = vadd.f32 0.0, %v1551
    %v1553 = vpop.f32.mrb[0].mxu0
    %1554 = vdwg.mxu0
    %v1555 = vadd.f32 %v1484, %v1552
    %v1556 = vxor.u32 %v1336, 2147483648
    %v1557 = vmul.f32 %v1556, 1.442695
    %v1558 = vpow.pop %v1557
    %v1559 = vadd.f32 %v1558, 1.0
    %v1560 = vrcp.pop %v1559
    %v1561 = vmul.f32 1.0, %v1560
    %v1562 = vxor.u32 %v1409, 2147483648
    %v1563 = vmul.f32 %v1562, 1.442695
    %v1564 = vpow.pop %v1563
    %v1565 = vadd.f32 %v1564, 1.0
    %v1566 = vrcp.pop %v1565
    %v1567 = vmul.f32 1.0, %v1566
    %v1568 = vtanh.pop %v1482
    %v1569 = vxor.u32 %v1555, 2147483648
    %v1570 = vmul.f32 %v1569, 1.442695
    %v1571 = vpow.pop %v1570
    %v1572 = vadd.f32 %v1571, 1.0
    %v1573 = vrcp.pop %v1572
    %v1574 = vmul.f32 1.0, %v1573
    %v1575 = vmul.f32 %v1567, %v1258
    %v1576 = vmul.f32 %v1561, %v1568
    %v1577 = vadd.f32 %v1575, %v1576
    %v1578 = vtanh.pop %v1577
    %v1579 = vmul.f32 %v1574, %v1578
    %s1580 = scalar_lea.vmem [#allocation2], 32
    %v1581 = vld [vmem:[%s1580] sm:$0xff]
    %v1583 = vsel %vm179, %v1579, 0
    %1585 = vmatprep.subr.mxu0 0.0
    %1586 = vmatpush1.msra.mxu0 %v276
    %1587 = vmatprep.subr.mxu0 0.0
    %1588 = vmatpush1.msra.mxu0 %v277
    %1589 = vmatprep.subr.mxu0 0.0
    %1590 = vmatpush1.msra.mxu0 %v278
    %1591 = vmatprep.subr.mxu0 0.0
    %1592 = vmatpush1.msra.mxu0 %v279
    %1593 = vmatprep.subr.mxu0 0.0
    %1594 = vmatpush1.msra.mxu0 %v280
    %1595 = vmatprep.subr.mxu0 0.0
    %1596 = vmatpush1.msra.mxu0 %v281
    %1597 = vmatprep.subr.mxu0 0.0
    %1598 = vmatpush1.msra.mxu0 %v282
    %1599 = vmatprep.subr.mxu0 0.0
    %1600 = vmatpush1.msra.mxu0 %v283
    %1601 = vmatprep.subr.mxu0 0.0
    %1602 = vmatpush1.msra.mxu0 0.0
    %1603 = vmatprep.subr.mxu0 0.0
    %1604 = vmatpush1.msra.mxu0 0.0
    %1605 = vmatprep.subr.mxu0 0.0
    %1606 = vmatpush1.msra.mxu0 0.0
    %1607 = vmatprep.subr.mxu0 0.0
    %1608 = vmatpush1.msra.mxu0 0.0
    %1609 = vmatprep.subr.mxu0 0.0
    %1610 = vmatpush1.msra.mxu0 0.0
    %1611 = vmatprep.subr.mxu0 0.0
    %1612 = vmatpush1.msra.mxu0 0.0
    %1613 = vmatprep.subr.mxu0 0.0
    %1614 = vmatpush1.msra.mxu0 0.0
    %1615 = vmatprep.subr.mxu0 0.0
    %1616 = vmatpush1.msra.mxu0 0.0
    %1617 = vmatprep.subr.mxu0 0.0
    %1618 = vmatpush1.msra.mxu0 0.0
    %1619 = vmatprep.subr.mxu0 0.0
    %1620 = vmatpush1.msra.mxu0 0.0
    %1621 = vmatprep.subr.mxu0 0.0
    %1622 = vmatpush1.msra.mxu0 0.0
    %1623 = vmatprep.subr.mxu0 0.0
    %1624 = vmatpush1.msra.mxu0 0.0
    %1625 = vmatprep.subr.mxu0 0.0
    %1626 = vmatpush1.msra.mxu0 0.0
    %1627 = vmatprep.subr.mxu0 0.0
    %1628 = vmatpush1.msra.mxu0 0.0
    %1629 = vmatprep.subr.mxu0 0.0
    %1630 = vmatpush1.msra.mxu0 0.0
    %1631 = vmatprep.subr.mxu0 0.0
    %1632 = vmatpush1.msra.mxu0 0.0
    %1633 = vmatprep.subr.mxu0 0.0
    %1634 = vmatpush1.msra.mxu0 0.0
    %1635 = vmatprep.subr.mxu0 0.0
    %1636 = vmatpush1.msra.mxu0 0.0
    %1637 = vmatprep.subr.mxu0 0.0
    %1638 = vmatpush1.msra.mxu0 0.0
    %1639 = vmatprep.subr.mxu0 0.0
    %1640 = vmatpush1.msra.mxu0 0.0
    %1641 = vmatprep.subr.mxu0 0.0
    %1642 = vmatpush1.msra.mxu0 0.0
    %1643 = vmatprep.subr.mxu0 0.0
    %1644 = vmatpush1.msra.mxu0 0.0
    %1645 = vmatprep.subr.mxu0 0.0
    %1646 = vmatpush1.msra.mxu0 0.0
    %1647 = vmatprep.subr.mxu0 0.0
    %1648 = vmatpush1.msra.mxu0 0.0
    %1649 = vmatprep.mubr.f32.mxu0 0.0
    %1650 = vmatmul.mubr.f32.gmra.mrb[0].mxu0 %v1583
    %v1651 = vpop.f32.mrb[0].mxu0
    %v1652 = vadd.f32 0.0, %v1651
    %v1653 = vpop.f32.mrb[0].mxu0
    %1654 = vdwg.mxu0
    %v1655 = vadd.f32 %v1581, %v1652
    %s1656 = scalar_lea.vmem [#allocation3], 32
    %v1657 = vld [vmem:[%s1656] sm:$0xff]
    %1658 = vmatprep.subr.mxu0 0.0
    %1659 = vmatpush1.msra.mxu0 %v284
    %1660 = vmatprep.subr.mxu0 0.0
    %1661 = vmatpush1.msra.mxu0 %v285
    %1662 = vmatprep.subr.mxu0 0.0
    %1663 = vmatpush1.msra.mxu0 %v286
    %1664 = vmatprep.subr.mxu0 0.0
    %1665 = vmatpush1.msra.mxu0 %v287
    %1666 = vmatprep.subr.mxu0 0.0
    %1667 = vmatpush1.msra.mxu0 %v288
    %1668 = vmatprep.subr.mxu0 0.0
    %1669 = vmatpush1.msra.mxu0 %v289
    %1670 = vmatprep.subr.mxu0 0.0
    %1671 = vmatpush1.msra.mxu0 %v290
    %1672 = vmatprep.subr.mxu0 0.0
    %1673 = vmatpush1.msra.mxu0 %v291
    %1674 = vmatprep.subr.mxu0 0.0
    %1675 = vmatpush1.msra.mxu0 0.0
    %1676 = vmatprep.subr.mxu0 0.0
    %1677 = vmatpush1.msra.mxu0 0.0
    %1678 = vmatprep.subr.mxu0 0.0
    %1679 = vmatpush1.msra.mxu0 0.0
    %1680 = vmatprep.subr.mxu0 0.0
    %1681 = vmatpush1.msra.mxu0 0.0
    %1682 = vmatprep.subr.mxu0 0.0
    %1683 = vmatpush1.msra.mxu0 0.0
    %1684 = vmatprep.subr.mxu0 0.0
    %1685 = vmatpush1.msra.mxu0 0.0
    %1686 = vmatprep.subr.mxu0 0.0
    %1687 = vmatpush1.msra.mxu0 0.0
    %1688 = vmatprep.subr.mxu0 0.0
    %1689 = vmatpush1.msra.mxu0 0.0
    %1690 = vmatprep.subr.mxu0 0.0
    %1691 = vmatpush1.msra.mxu0 0.0
    %1692 = vmatprep.subr.mxu0 0.0
    %1693 = vmatpush1.msra.mxu0 0.0
    %1694 = vmatprep.subr.mxu0 0.0
    %1695 = vmatpush1.msra.mxu0 0.0
    %1696 = vmatprep.subr.mxu0 0.0
    %1697 = vmatpush1.msra.mxu0 0.0
    %1698 = vmatprep.subr.mxu0 0.0
    %1699 = vmatpush1.msra.mxu0 0.0
    %1700 = vmatprep.subr.mxu0 0.0
    %1701 = vmatpush1.msra.mxu0 0.0
    %1702 = vmatprep.subr.mxu0 0.0
    %1703 = vmatpush1.msra.mxu0 0.0
    %1704 = vmatprep.subr.mxu0 0.0
    %1705 = vmatpush1.msra.mxu0 0.0
    %1706 = vmatprep.subr.mxu0 0.0
    %1707 = vmatpush1.msra.mxu0 0.0
    %1708 = vmatprep.subr.mxu0 0.0
    %1709 = vmatpush1.msra.mxu0 0.0
    %1710 = vmatprep.subr.mxu0 0.0
    %1711 = vmatpush1.msra.mxu0 0.0
    %1712 = vmatprep.subr.mxu0 0.0
    %1713 = vmatpush1.msra.mxu0 0.0
    %1714 = vmatprep.subr.mxu0 0.0
    %1715 = vmatpush1.msra.mxu0 0.0
    %1716 = vmatprep.subr.mxu0 0.0
    %1717 = vmatpush1.msra.mxu0 0.0
    %1718 = vmatprep.subr.mxu0 0.0
    %1719 = vmatpush1.msra.mxu0 0.0
    %1720 = vmatprep.subr.mxu0 0.0
    %1721 = vmatpush1.msra.mxu0 0.0
    %1722 = vmatprep.mubr.f32.mxu0 0.0
    %1723 = vmatmul.mubr.f32.gmra.mrb[0].mxu0 %v1583
    %v1724 = vpop.f32.mrb[0].mxu0
    %v1725 = vadd.f32 0.0, %v1724
    %v1726 = vpop.f32.mrb[0].mxu0
    %1727 = vdwg.mxu0
    %v1728 = vadd.f32 %v1657, %v1725
    %s1729 = scalar_lea.vmem [#allocation4], 32
    %v1730 = vld [vmem:[%s1729] sm:$0xff]
    %1731 = vmatprep.subr.mxu0 0.0
    %1732 = vmatpush1.msra.mxu0 %v292
    %1733 = vmatprep.subr.mxu0 0.0
    %1734 = vmatpush1.msra.mxu0 %v293
    %1735 = vmatprep.subr.mxu0 0.0
    %1736 = vmatpush1.msra.mxu0 %v294
    %1737 = vmatprep.subr.mxu0 0.0
    %1738 = vmatpush1.msra.mxu0 %v295
    %1739 = vmatprep.subr.mxu0 0.0
    %1740 = vmatpush1.msra.mxu0 %v296
    %1741 = vmatprep.subr.mxu0 0.0
    %1742 = vmatpush1.msra.mxu0 %v297
    %1743 = vmatprep.subr.mxu0 0.0
    %1744 = vmatpush1.msra.mxu0 %v298
    %1745 = vmatprep.subr.mxu0 0.0
    %1746 = vmatpush1.msra.mxu0 %v299
    %1747 = vmatprep.subr.mxu0 0.0
    %1748 = vmatpush1.msra.mxu0 0.0
    %1749 = vmatprep.subr.mxu0 0.0
    %1750 = vmatpush1.msra.mxu0 0.0
    %1751 = vmatprep.subr.mxu0 0.0
    %1752 = vmatpush1.msra.mxu0 0.0
    %1753 = vmatprep.subr.mxu0 0.0
    %1754 = vmatpush1.msra.mxu0 0.0
    %1755 = vmatprep.subr.mxu0 0.0
    %1756 = vmatpush1.msra.mxu0 0.0
    %1757 = vmatprep.subr.mxu0 0.0
    %1758 = vmatpush1.msra.mxu0 0.0
    %1759 = vmatprep.subr.mxu0 0.0
    %1760 = vmatpush1.msra.mxu0 0.0
    %1761 = vmatprep.subr.mxu0 0.0
    %1762 = vmatpush1.msra.mxu0 0.0
    %1763 = vmatprep.subr.mxu0 0.0
    %1764 = vmatpush1.msra.mxu0 0.0
    %1765 = vmatprep.subr.mxu0 0.0
    %1766 = vmatpush1.msra.mxu0 0.0
    %1767 = vmatprep.subr.mxu0 0.0
    %1768 = vmatpush1.msra.mxu0 0.0
    %1769 = vmatprep.subr.mxu0 0.0
    %1770 = vmatpush1.msra.mxu0 0.0
    %1771 = vmatprep.subr.mxu0 0.0
    %1772 = vmatpush1.msra.mxu0 0.0
    %1773 = vmatprep.subr.mxu0 0.0
    %1774 = vmatpush1.msra.mxu0 0.0
    %1775 = vmatprep.subr.mxu0 0.0
    %1776 = vmatpush1.msra.mxu0 0.0
    %1777 = vmatprep.subr.mxu0 0.0
    %1778 = vmatpush1.msra.mxu0 0.0
    %1779 = vmatprep.subr.mxu0 0.0
    %1780 = vmatpush1.msra.mxu0 0.0
    %1781 = vmatprep.subr.mxu0 0.0
    %1782 = vmatpush1.msra.mxu0 0.0
    %1783 = vmatprep.subr.mxu0 0.0
    %1784 = vmatpush1.msra.mxu0 0.0
    %1785 = vmatprep.subr.mxu0 0.0
    %1786 = vmatpush1.msra.mxu0 0.0
    %1787 = vmatprep.subr.mxu0 0.0
    %1788 = vmatpush1.msra.mxu0 0.0
    %1789 = vmatprep.subr.mxu0 0.0
    %1790 = vmatpush1.msra.mxu0 0.0
    %1791 = vmatprep.subr.mxu0 0.0
    %1792 = vmatpush1.msra.mxu0 0.0
    %1793 = vmatprep.subr.mxu0 0.0
    %1794 = vmatpush1.msra.mxu0 0.0
    %1795 = vmatprep.mubr.f32.mxu0 0.0
    %1796 = vmatmul.mubr.f32.gmra.mrb[0].mxu0 %v1583
    %v1797 = vpop.f32.mrb[0].mxu0
    %v1798 = vadd.f32 0.0, %v1797
    %v1799 = vpop.f32.mrb[0].mxu0
    %1800 = vdwg.mxu0
    %v1801 = vadd.f32 %v1730, %v1798
    %s1802 = scalar_lea.vmem [#allocation5], 32
    %v1803 = vld [vmem:[%s1802] sm:$0xff]
    %1804 = vmatprep.subr.mxu0 0.0
    %1805 = vmatpush1.msra.mxu0 %v300
    %1806 = vmatprep.subr.mxu0 0.0
    %1807 = vmatpush1.msra.mxu0 %v301
    %1808 = vmatprep.subr.mxu0 0.0
    %1809 = vmatpush1.msra.mxu0 %v302
    %1810 = vmatprep.subr.mxu0 0.0
    %1811 = vmatpush1.msra.mxu0 %v303
    %1812 = vmatprep.subr.mxu0 0.0
    %1813 = vmatpush1.msra.mxu0 %v304
    %1814 = vmatprep.subr.mxu0 0.0
    %1815 = vmatpush1.msra.mxu0 %v305
    %1816 = vmatprep.subr.mxu0 0.0
    %1817 = vmatpush1.msra.mxu0 %v306
    %1818 = vmatprep.subr.mxu0 0.0
    %1819 = vmatpush1.msra.mxu0 %v307
    %1820 = vmatprep.subr.mxu0 0.0
    %1821 = vmatpush1.msra.mxu0 0.0
    %1822 = vmatprep.subr.mxu0 0.0
    %1823 = vmatpush1.msra.mxu0 0.0
    %1824 = vmatprep.subr.mxu0 0.0
    %1825 = vmatpush1.msra.mxu0 0.0
    %1826 = vmatprep.subr.mxu0 0.0
    %1827 = vmatpush1.msra.mxu0 0.0
    %1828 = vmatprep.subr.mxu0 0.0
    %1829 = vmatpush1.msra.mxu0 0.0
    %1830 = vmatprep.subr.mxu0 0.0
    %1831 = vmatpush1.msra.mxu0 0.0
    %1832 = vmatprep.subr.mxu0 0.0
    %1833 = vmatpush1.msra.mxu0 0.0
    %1834 = vmatprep.subr.mxu0 0.0
    %1835 = vmatpush1.msra.mxu0 0.0
    %1836 = vmatprep.subr.mxu0 0.0
    %1837 = vmatpush1.msra.mxu0 0.0
    %1838 = vmatprep.subr.mxu0 0.0
    %1839 = vmatpush1.msra.mxu0 0.0
    %1840 = vmatprep.subr.mxu0 0.0
    %1841 = vmatpush1.msra.mxu0 0.0
    %1842 = vmatprep.subr.mxu0 0.0
    %1843 = vmatpush1.msra.mxu0 0.0
    %1844 = vmatprep.subr.mxu0 0.0
    %1845 = vmatpush1.msra.mxu0 0.0
    %1846 = vmatprep.subr.mxu0 0.0
    %1847 = vmatpush1.msra.mxu0 0.0
    %1848 = vmatprep.subr.mxu0 0.0
    %1849 = vmatpush1.msra.mxu0 0.0
    %1850 = vmatprep.subr.mxu0 0.0
    %1851 = vmatpush1.msra.mxu0 0.0
    %1852 = vmatprep.subr.mxu0 0.0
    %1853 = vmatpush1.msra.mxu0 0.0
    %1854 = vmatprep.subr.mxu0 0.0
    %1855 = vmatpush1.msra.mxu0 0.0
    %1856 = vmatprep.subr.mxu0 0.0
    %1857 = vmatpush1.msra.mxu0 0.0
    %1858 = vmatprep.subr.mxu0 0.0
    %1859 = vmatpush1.msra.mxu0 0.0
    %1860 = vmatprep.subr.mxu0 0.0
    %1861 = vmatpush1.msra.mxu0 0.0
    %1862 = vmatprep.subr.mxu0 0.0
    %1863 = vmatpush1.msra.mxu0 0.0
    %1864 = vmatprep.subr.mxu0 0.0
    %1865 = vmatpush1.msra.mxu0 0.0
    %1866 = vmatprep.subr.mxu0 0.0
    %1867 = vmatpush1.msra.mxu0 0.0
    %1868 = vmatprep.mubr.f32.mxu0 0.0
    %1869 = vmatmul.mubr.f32.gmra.mrb[0].mxu0 %v1583
    %v1870 = vpop.f32.mrb[0].mxu0
    %v1871 = vadd.f32 0.0, %v1870
    %v1872 = vpop.f32.mrb[0].mxu0
    %1873 = vdwg.mxu0
    %v1874 = vadd.f32 %v1803, %v1871
    %v1875 = vxor.u32 %v1655, 2147483648
    %v1876 = vmul.f32 %v1875, 1.442695
    %v1877 = vpow.pop %v1876
    %v1878 = vadd.f32 %v1877, 1.0
    %v1879 = vrcp.pop %v1878
    %v1880 = vmul.f32 1.0, %v1879
    %v1881 = vxor.u32 %v1728, 2147483648
    %v1882 = vmul.f32 %v1881, 1.442695
    %v1883 = vpow.pop %v1882
    %v1884 = vadd.f32 %v1883, 1.0
    %v1885 = vrcp.pop %v1884
    %v1886 = vmul.f32 1.0, %v1885
    %v1887 = vtanh.pop %v1801
    %v1888 = vxor.u32 %v1874, 2147483648
    %v1889 = vmul.f32 %v1888, 1.442695
    %v1890 = vpow.pop %v1889
    %v1891 = vadd.f32 %v1890, 1.0
    %v1892 = vrcp.pop %v1891
    %v1893 = vmul.f32 1.0, %v1892
    %v1894 = vmul.f32 %v1886, %v1577
    %v1895 = vmul.f32 %v1880, %v1887
    %v1896 = vadd.f32 %v1894, %v1895
    %v1897 = vtanh.pop %v1896
    %v1898 = vmul.f32 %v1893, %v1897
    %s1899 = scalar_lea.vmem [#allocation2], 40
    %v1900 = vld [vmem:[%s1899] sm:$0xff]
    %v1902 = vsel %vm179, %v1898, 0
    %1904 = vmatprep.subr.mxu0 0.0
    %1905 = vmatpush1.msra.mxu0 %v276
    %1906 = vmatprep.subr.mxu0 0.0
    %1907 = vmatpush1.msra.mxu0 %v277
    %1908 = vmatprep.subr.mxu0 0.0
    %1909 = vmatpush1.msra.mxu0 %v278
    %1910 = vmatprep.subr.mxu0 0.0
    %1911 = vmatpush1.msra.mxu0 %v279
    %1912 = vmatprep.subr.mxu0 0.0
    %1913 = vmatpush1.msra.mxu0 %v280
    %1914 = vmatprep.subr.mxu0 0.0
    %1915 = vmatpush1.msra.mxu0 %v281
    %1916 = vmatprep.subr.mxu0 0.0
    %1917 = vmatpush1.msra.mxu0 %v282
    %1918 = vmatprep.subr.mxu0 0.0
    %1919 = vmatpush1.msra.mxu0 %v283
    %1920 = vmatprep.subr.mxu0 0.0
    %1921 = vmatpush1.msra.mxu0 0.0
    %1922 = vmatprep.subr.mxu0 0.0
    %1923 = vmatpush1.msra.mxu0 0.0
    %1924 = vmatprep.subr.mxu0 0.0
    %1925 = vmatpush1.msra.mxu0 0.0
    %1926 = vmatprep.subr.mxu0 0.0
    %1927 = vmatpush1.msra.mxu0 0.0
    %1928 = vmatprep.subr.mxu0 0.0
    %1929 = vmatpush1.msra.mxu0 0.0
    %1930 = vmatprep.subr.mxu0 0.0
    %1931 = vmatpush1.msra.mxu0 0.0
    %1932 = vmatprep.subr.mxu0 0.0
    %1933 = vmatpush1.msra.mxu0 0.0
    %1934 = vmatprep.subr.mxu0 0.0
    %1935 = vmatpush1.msra.mxu0 0.0
    %1936 = vmatprep.subr.mxu0 0.0
    %1937 = vmatpush1.msra.mxu0 0.0
    %1938 = vmatprep.subr.mxu0 0.0
    %1939 = vmatpush1.msra.mxu0 0.0
    %1940 = vmatprep.subr.mxu0 0.0
    %1941 = vmatpush1.msra.mxu0 0.0
    %1942 = vmatprep.subr.mxu0 0.0
    %1943 = vmatpush1.msra.mxu0 0.0
    %1944 = vmatprep.subr.mxu0 0.0
    %1945 = vmatpush1.msra.mxu0 0.0
    %1946 = vmatprep.subr.mxu0 0.0
    %1947 = vmatpush1.msra.mxu0 0.0
    %1948 = vmatprep.subr.mxu0 0.0
    %1949 = vmatpush1.msra.mxu0 0.0
    %1950 = vmatprep.subr.mxu0 0.0
    %1951 = vmatpush1.msra.mxu0 0.0
    %1952 = vmatprep.subr.mxu0 0.0
    %1953 = vmatpush1.msra.mxu0 0.0
    %1954 = vmatprep.subr.mxu0 0.0
    %1955 = vmatpush1.msra.mxu0 0.0
    %1956 = vmatprep.subr.mxu0 0.0
    %1957 = vmatpush1.msra.mxu0 0.0
    %1958 = vmatprep.subr.mxu0 0.0
    %1959 = vmatpush1.msra.mxu0 0.0
    %1960 = vmatprep.subr.mxu0 0.0
    %1961 = vmatpush1.msra.mxu0 0.0
    %1962 = vmatprep.subr.mxu0 0.0
    %1963 = vmatpush1.msra.mxu0 0.0
    %1964 = vmatprep.subr.mxu0 0.0
    %1965 = vmatpush1.msra.mxu0 0.0
    %1966 = vmatprep.subr.mxu0 0.0
    %1967 = vmatpush1.msra.mxu0 0.0
    %1968 = vmatprep.mubr.f32.mxu0 0.0
    %1969 = vmatmul.mubr.f32.gmra.mrb[0].mxu0 %v1902
    %v1970 = vpop.f32.mrb[0].mxu0
    %v1971 = vadd.f32 0.0, %v1970
    %v1972 = vpop.f32.mrb[0].mxu0
    %1973 = vdwg.mxu0
    %v1974 = vadd.f32 %v1900, %v1971
    %s1975 = scalar_lea.vmem [#allocation3], 40
    %v1976 = vld [vmem:[%s1975] sm:$0xff]
    %1977 = vmatprep.subr.mxu0 0.0
    %1978 = vmatpush1.msra.mxu0 %v284
    %1979 = vmatprep.subr.mxu0 0.0
    %1980 = vmatpush1.msra.mxu0 %v285
    %1981 = vmatprep.subr.mxu0 0.0
    %1982 = vmatpush1.msra.mxu0 %v286
    %1983 = vmatprep.subr.mxu0 0.0
    %1984 = vmatpush1.msra.mxu0 %v287
    %1985 = vmatprep.subr.mxu0 0.0
    %1986 = vmatpush1.msra.mxu0 %v288
    %1987 = vmatprep.subr.mxu0 0.0
    %1988 = vmatpush1.msra.mxu0 %v289
    %1989 = vmatprep.subr.mxu0 0.0
    %1990 = vmatpush1.msra.mxu0 %v290
    %1991 = vmatprep.subr.mxu0 0.0
    %1992 = vmatpush1.msra.mxu0 %v291
    %1993 = vmatprep.subr.mxu0 0.0
    %1994 = vmatpush1.msra.mxu0 0.0
    %1995 = vmatprep.subr.mxu0 0.0
    %1996 = vmatpush1.msra.mxu0 0.0
    %1997 = vmatprep.subr.mxu0 0.0
    %1998 = vmatpush1.msra.mxu0 0.0
    %1999 = vmatprep.subr.mxu0 0.0
    %2000 = vmatpush1.msra.mxu0 0.0
    %2001 = vmatprep.subr.mxu0 0.0
    %2002 = vmatpush1.msra.mxu0 0.0
    %2003 = vmatprep.subr.mxu0 0.0
    %2004 = vmatpush1.msra.mxu0 0.0
    %2005 = vmatprep.subr.mxu0 0.0
    %2006 = vmatpush1.msra.mxu0 0.0
    %2007 = vmatprep.subr.mxu0 0.0
    %2008 = vmatpush1.msra.mxu0 0.0
    %2009 = vmatprep.subr.mxu0 0.0
    %2010 = vmatpush1.msra.mxu0 0.0
    %2011 = vmatprep.subr.mxu0 0.0
    %2012 = vmatpush1.msra.mxu0 0.0
    %2013 = vmatprep.subr.mxu0 0.0
    %2014 = vmatpush1.msra.mxu0 0.0
    %2015 = vmatprep.subr.mxu0 0.0
    %2016 = vmatpush1.msra.mxu0 0.0
    %2017 = vmatprep.subr.mxu0 0.0
    %2018 = vmatpush1.msra.mxu0 0.0
    %2019 = vmatprep.subr.mxu0 0.0
    %2020 = vmatpush1.msra.mxu0 0.0
    %2021 = vmatprep.subr.mxu0 0.0
    %2022 = vmatpush1.msra.mxu0 0.0
    %2023 = vmatprep.subr.mxu0 0.0
    %2024 = vmatpush1.msra.mxu0 0.0
    %2025 = vmatprep.subr.mxu0 0.0
    %2026 = vmatpush1.msra.mxu0 0.0
    %2027 = vmatprep.subr.mxu0 0.0
    %2028 = vmatpush1.msra.mxu0 0.0
    %2029 = vmatprep.subr.mxu0 0.0
    %2030 = vmatpush1.msra.mxu0 0.0
    %2031 = vmatprep.subr.mxu0 0.0
    %2032 = vmatpush1.msra.mxu0 0.0
    %2033 = vmatprep.subr.mxu0 0.0
    %2034 = vmatpush1.msra.mxu0 0.0
    %2035 = vmatprep.subr.mxu0 0.0
    %2036 = vmatpush1.msra.mxu0 0.0
    %2037 = vmatprep.subr.mxu0 0.0
    %2038 = vmatpush1.msra.mxu0 0.0
    %2039 = vmatprep.subr.mxu0 0.0
    %2040 = vmatpush1.msra.mxu0 0.0
    %2041 = vmatprep.mubr.f32.mxu0 0.0
    %2042 = vmatmul.mubr.f32.gmra.mrb[0].mxu0 %v1902
    %v2043 = vpop.f32.mrb[0].mxu0
    %v2044 = vadd.f32 0.0, %v2043
    %v2045 = vpop.f32.mrb[0].mxu0
    %2046 = vdwg.mxu0
    %v2047 = vadd.f32 %v1976, %v2044
    %s2048 = scalar_lea.vmem [#allocation4], 40
    %v2049 = vld [vmem:[%s2048] sm:$0xff]
    %2050 = vmatprep.subr.mxu0 0.0
    %2051 = vmatpush1.msra.mxu0 %v292
    %2052 = vmatprep.subr.mxu0 0.0
    %2053 = vmatpush1.msra.mxu0 %v293
    %2054 = vmatprep.subr.mxu0 0.0
    %2055 = vmatpush1.msra.mxu0 %v294
    %2056 = vmatprep.subr.mxu0 0.0
    %2057 = vmatpush1.msra.mxu0 %v295
    %2058 = vmatprep.subr.mxu0 0.0
    %2059 = vmatpush1.msra.mxu0 %v296
    %2060 = vmatprep.subr.mxu0 0.0
    %2061 = vmatpush1.msra.mxu0 %v297
    %2062 = vmatprep.subr.mxu0 0.0
    %2063 = vmatpush1.msra.mxu0 %v298
    %2064 = vmatprep.subr.mxu0 0.0
    %2065 = vmatpush1.msra.mxu0 %v299
    %2066 = vmatprep.subr.mxu0 0.0
    %2067 = vmatpush1.msra.mxu0 0.0
    %2068 = vmatprep.subr.mxu0 0.0
    %2069 = vmatpush1.msra.mxu0 0.0
    %2070 = vmatprep.subr.mxu0 0.0
    %2071 = vmatpush1.msra.mxu0 0.0
    %2072 = vmatprep.subr.mxu0 0.0
    %2073 = vmatpush1.msra.mxu0 0.0
    %2074 = vmatprep.subr.mxu0 0.0
    %2075 = vmatpush1.msra.mxu0 0.0
    %2076 = vmatprep.subr.mxu0 0.0
    %2077 = vmatpush1.msra.mxu0 0.0
    %2078 = vmatprep.subr.mxu0 0.0
    %2079 = vmatpush1.msra.mxu0 0.0
    %2080 = vmatprep.subr.mxu0 0.0
    %2081 = vmatpush1.msra.mxu0 0.0
    %2082 = vmatprep.subr.mxu0 0.0
    %2083 = vmatpush1.msra.mxu0 0.0
    %2084 = vmatprep.subr.mxu0 0.0
    %2085 = vmatpush1.msra.mxu0 0.0
    %2086 = vmatprep.subr.mxu0 0.0
    %2087 = vmatpush1.msra.mxu0 0.0
    %2088 = vmatprep.subr.mxu0 0.0
    %2089 = vmatpush1.msra.mxu0 0.0
    %2090 = vmatprep.subr.mxu0 0.0
    %2091 = vmatpush1.msra.mxu0 0.0
    %2092 = vmatprep.subr.mxu0 0.0
    %2093 = vmatpush1.msra.mxu0 0.0
    %2094 = vmatprep.subr.mxu0 0.0
    %2095 = vmatpush1.msra.mxu0 0.0
    %2096 = vmatprep.subr.mxu0 0.0
    %2097 = vmatpush1.msra.mxu0 0.0
    %2098 = vmatprep.subr.mxu0 0.0
    %2099 = vmatpush1.msra.mxu0 0.0
    %2100 = vmatprep.subr.mxu0 0.0
    %2101 = vmatpush1.msra.mxu0 0.0
    %2102 = vmatprep.subr.mxu0 0.0
    %2103 = vmatpush1.msra.mxu0 0.0
    %2104 = vmatprep.subr.mxu0 0.0
    %2105 = vmatpush1.msra.mxu0 0.0
    %2106 = vmatprep.subr.mxu0 0.0
    %2107 = vmatpush1.msra.mxu0 0.0
    %2108 = vmatprep.subr.mxu0 0.0
    %2109 = vmatpush1.msra.mxu0 0.0
    %2110 = vmatprep.subr.mxu0 0.0
    %2111 = vmatpush1.msra.mxu0 0.0
    %2112 = vmatprep.subr.mxu0 0.0
    %2113 = vmatpush1.msra.mxu0 0.0
    %2114 = vmatprep.mubr.f32.mxu0 0.0
    %2115 = vmatmul.mubr.f32.gmra.mrb[0].mxu0 %v1902
    %v2116 = vpop.f32.mrb[0].mxu0
    %v2117 = vadd.f32 0.0, %v2116
    %v2118 = vpop.f32.mrb[0].mxu0
    %2119 = vdwg.mxu0
    %v2120 = vadd.f32 %v2049, %v2117
    %s2121 = scalar_lea.vmem [#allocation5], 40
    %v2122 = vld [vmem:[%s2121] sm:$0xff]
    %2123 = vmatprep.subr.mxu0 0.0
    %2124 = vmatpush1.msra.mxu0 %v300
    %2125 = vmatprep.subr.mxu0 0.0
    %2126 = vmatpush1.msra.mxu0 %v301
    %2127 = vmatprep.subr.mxu0 0.0
    %2128 = vmatpush1.msra.mxu0 %v302
    %2129 = vmatprep.subr.mxu0 0.0
    %2130 = vmatpush1.msra.mxu0 %v303
    %2131 = vmatprep.subr.mxu0 0.0
    %2132 = vmatpush1.msra.mxu0 %v304
    %2133 = vmatprep.subr.mxu0 0.0
    %2134 = vmatpush1.msra.mxu0 %v305
    %2135 = vmatprep.subr.mxu0 0.0
    %2136 = vmatpush1.msra.mxu0 %v306
    %2137 = vmatprep.subr.mxu0 0.0
    %2138 = vmatpush1.msra.mxu0 %v307
    %2139 = vmatprep.subr.mxu0 0.0
    %2140 = vmatpush1.msra.mxu0 0.0
    %2141 = vmatprep.subr.mxu0 0.0
    %2142 = vmatpush1.msra.mxu0 0.0
    %2143 = vmatprep.subr.mxu0 0.0
    %2144 = vmatpush1.msra.mxu0 0.0
    %2145 = vmatprep.subr.mxu0 0.0
    %2146 = vmatpush1.msra.mxu0 0.0
    %2147 = vmatprep.subr.mxu0 0.0
    %2148 = vmatpush1.msra.mxu0 0.0
    %2149 = vmatprep.subr.mxu0 0.0
    %2150 = vmatpush1.msra.mxu0 0.0
    %2151 = vmatprep.subr.mxu0 0.0
    %2152 = vmatpush1.msra.mxu0 0.0
    %2153 = vmatprep.subr.mxu0 0.0
    %2154 = vmatpush1.msra.mxu0 0.0
    %2155 = vmatprep.subr.mxu0 0.0
    %2156 = vmatpush1.msra.mxu0 0.0
    %2157 = vmatprep.subr.mxu0 0.0
    %2158 = vmatpush1.msra.mxu0 0.0
    %2159 = vmatprep.subr.mxu0 0.0
    %2160 = vmatpush1.msra.mxu0 0.0
    %2161 = vmatprep.subr.mxu0 0.0
    %2162 = vmatpush1.msra.mxu0 0.0
    %2163 = vmatprep.subr.mxu0 0.0
    %2164 = vmatpush1.msra.mxu0 0.0
    %2165 = vmatprep.subr.mxu0 0.0
    %2166 = vmatpush1.msra.mxu0 0.0
    %2167 = vmatprep.subr.mxu0 0.0
    %2168 = vmatpush1.msra.mxu0 0.0
    %2169 = vmatprep.subr.mxu0 0.0
    %2170 = vmatpush1.msra.mxu0 0.0
    %2171 = vmatprep.subr.mxu0 0.0
    %2172 = vmatpush1.msra.mxu0 0.0
    %2173 = vmatprep.subr.mxu0 0.0
    %2174 = vmatpush1.msra.mxu0 0.0
    %2175 = vmatprep.subr.mxu0 0.0
    %2176 = vmatpush1.msra.mxu0 0.0
    %2177 = vmatprep.subr.mxu0 0.0
    %2178 = vmatpush1.msra.mxu0 0.0
    %2179 = vmatprep.subr.mxu0 0.0
    %2180 = vmatpush1.msra.mxu0 0.0
    %2181 = vmatprep.subr.mxu0 0.0
    %2182 = vmatpush1.msra.mxu0 0.0
    %2183 = vmatprep.subr.mxu0 0.0
    %2184 = vmatpush1.msra.mxu0 0.0
    %2185 = vmatprep.subr.mxu0 0.0
    %2186 = vmatpush1.msra.mxu0 0.0
    %2187 = vmatprep.mubr.f32.mxu0 0.0
    %2188 = vmatmul.mubr.f32.gmra.mrb[0].mxu0 %v1902
    %v2189 = vpop.f32.mrb[0].mxu0
    %v2190 = vadd.f32 0.0, %v2189
    %v2191 = vpop.f32.mrb[0].mxu0
    %2192 = vdwg.mxu0
    %v2193 = vadd.f32 %v2122, %v2190
    %v2194 = vxor.u32 %v1974, 2147483648
    %v2195 = vmul.f32 %v2194, 1.442695
    %v2196 = vpow.pop %v2195
    %v2197 = vadd.f32 %v2196, 1.0
    %v2198 = vrcp.pop %v2197
    %v2199 = vmul.f32 1.0, %v2198
    %v2200 = vxor.u32 %v2047, 2147483648
    %v2201 = vmul.f32 %v2200, 1.442695
    %v2202 = vpow.pop %v2201
    %v2203 = vadd.f32 %v2202, 1.0
    %v2204 = vrcp.pop %v2203
    %v2205 = vmul.f32 1.0, %v2204
    %v2206 = vtanh.pop %v2120
    %v2207 = vxor.u32 %v2193, 2147483648
    %v2208 = vmul.f32 %v2207, 1.442695
    %v2209 = vpow.pop %v2208
    %v2210 = vadd.f32 %v2209, 1.0
    %v2211 = vrcp.pop %v2210
    %v2212 = vmul.f32 1.0, %v2211
    %v2213 = vmul.f32 %v2205, %v1896
    %v2214 = vmul.f32 %v2199, %v2206
    %v2215 = vadd.f32 %v2213, %v2214
    %v2216 = vtanh.pop %v2215
    %v2217 = vmul.f32 %v2212, %v2216
    %s2218 = scalar_lea.vmem [#allocation2], 48
    %v2219 = vld [vmem:[%s2218] sm:$0xff]
    %v2221 = vsel %vm179, %v2217, 0
    %2223 = vmatprep.subr.mxu0 0.0
    %2224 = vmatpush1.msra.mxu0 %v276
    %2225 = vmatprep.subr.mxu0 0.0
    %2226 = vmatpush1.msra.mxu0 %v277
    %2227 = vmatprep.subr.mxu0 0.0
    %2228 = vmatpush1.msra.mxu0 %v278
    %2229 = vmatprep.subr.mxu0 0.0
    %2230 = vmatpush1.msra.mxu0 %v279
    %2231 = vmatprep.subr.mxu0 0.0
    %2232 = vmatpush1.msra.mxu0 %v280
    %2233 = vmatprep.subr.mxu0 0.0
    %2234 = vmatpush1.msra.mxu0 %v281
    %2235 = vmatprep.subr.mxu0 0.0
    %2236 = vmatpush1.msra.mxu0 %v282
    %2237 = vmatprep.subr.mxu0 0.0
    %2238 = vmatpush1.msra.mxu0 %v283
    %2239 = vmatprep.subr.mxu0 0.0
    %2240 = vmatpush1.msra.mxu0 0.0
    %2241 = vmatprep.subr.mxu0 0.0
    %2242 = vmatpush1.msra.mxu0 0.0
    %2243 = vmatprep.subr.mxu0 0.0
    %2244 = vmatpush1.msra.mxu0 0.0
    %2245 = vmatprep.subr.mxu0 0.0
    %2246 = vmatpush1.msra.mxu0 0.0
    %2247 = vmatprep.subr.mxu0 0.0
    %2248 = vmatpush1.msra.mxu0 0.0
    %2249 = vmatprep.subr.mxu0 0.0
    %2250 = vmatpush1.msra.mxu0 0.0
    %2251 = vmatprep.subr.mxu0 0.0
    %2252 = vmatpush1.msra.mxu0 0.0
    %2253 = vmatprep.subr.mxu0 0.0
    %2254 = vmatpush1.msra.mxu0 0.0
    %2255 = vmatprep.subr.mxu0 0.0
    %2256 = vmatpush1.msra.mxu0 0.0
    %2257 = vmatprep.subr.mxu0 0.0
    %2258 = vmatpush1.msra.mxu0 0.0
    %2259 = vmatprep.subr.mxu0 0.0
    %2260 = vmatpush1.msra.mxu0 0.0
    %2261 = vmatprep.subr.mxu0 0.0
    %2262 = vmatpush1.msra.mxu0 0.0
    %2263 = vmatprep.subr.mxu0 0.0
    %2264 = vmatpush1.msra.mxu0 0.0
    %2265 = vmatprep.subr.mxu0 0.0
    %2266 = vmatpush1.msra.mxu0 0.0
    %2267 = vmatprep.subr.mxu0 0.0
    %2268 = vmatpush1.msra.mxu0 0.0
    %2269 = vmatprep.subr.mxu0 0.0
    %2270 = vmatpush1.msra.mxu0 0.0
    %2271 = vmatprep.subr.mxu0 0.0
    %2272 = vmatpush1.msra.mxu0 0.0
    %2273 = vmatprep.subr.mxu0 0.0
    %2274 = vmatpush1.msra.mxu0 0.0
    %2275 = vmatprep.subr.mxu0 0.0
    %2276 = vmatpush1.msra.mxu0 0.0
    %2277 = vmatprep.subr.mxu0 0.0
    %2278 = vmatpush1.msra.mxu0 0.0
    %2279 = vmatprep.subr.mxu0 0.0
    %2280 = vmatpush1.msra.mxu0 0.0
    %2281 = vmatprep.subr.mxu0 0.0
    %2282 = vmatpush1.msra.mxu0 0.0
    %2283 = vmatprep.subr.mxu0 0.0
    %2284 = vmatpush1.msra.mxu0 0.0
    %2285 = vmatprep.subr.mxu0 0.0
    %2286 = vmatpush1.msra.mxu0 0.0
    %2287 = vmatprep.mubr.f32.mxu0 0.0
    %2288 = vmatmul.mubr.f32.gmra.mrb[0].mxu0 %v2221
    %v2289 = vpop.f32.mrb[0].mxu0
    %v2290 = vadd.f32 0.0, %v2289
    %v2291 = vpop.f32.mrb[0].mxu0
    %2292 = vdwg.mxu0
    %v2293 = vadd.f32 %v2219, %v2290
    %s2294 = scalar_lea.vmem [#allocation3], 48
    %v2295 = vld [vmem:[%s2294] sm:$0xff]
    %2296 = vmatprep.subr.mxu0 0.0
    %2297 = vmatpush1.msra.mxu0 %v284
    %2298 = vmatprep.subr.mxu0 0.0
    %2299 = vmatpush1.msra.mxu0 %v285
    %2300 = vmatprep.subr.mxu0 0.0
    %2301 = vmatpush1.msra.mxu0 %v286
    %2302 = vmatprep.subr.mxu0 0.0
    %2303 = vmatpush1.msra.mxu0 %v287
    %2304 = vmatprep.subr.mxu0 0.0
    %2305 = vmatpush1.msra.mxu0 %v288
    %2306 = vmatprep.subr.mxu0 0.0
    %2307 = vmatpush1.msra.mxu0 %v289
    %2308 = vmatprep.subr.mxu0 0.0
    %2309 = vmatpush1.msra.mxu0 %v290
    %2310 = vmatprep.subr.mxu0 0.0
    %2311 = vmatpush1.msra.mxu0 %v291
    %2312 = vmatprep.subr.mxu0 0.0
    %2313 = vmatpush1.msra.mxu0 0.0
    %2314 = vmatprep.subr.mxu0 0.0
    %2315 = vmatpush1.msra.mxu0 0.0
    %2316 = vmatprep.subr.mxu0 0.0
    %2317 = vmatpush1.msra.mxu0 0.0
    %2318 = vmatprep.subr.mxu0 0.0
    %2319 = vmatpush1.msra.mxu0 0.0
    %2320 = vmatprep.subr.mxu0 0.0
    %2321 = vmatpush1.msra.mxu0 0.0
    %2322 = vmatprep.subr.mxu0 0.0
    %2323 = vmatpush1.msra.mxu0 0.0
    %2324 = vmatprep.subr.mxu0 0.0
    %2325 = vmatpush1.msra.mxu0 0.0
    %2326 = vmatprep.subr.mxu0 0.0
    %2327 = vmatpush1.msra.mxu0 0.0
    %2328 = vmatprep.subr.mxu0 0.0
    %2329 = vmatpush1.msra.mxu0 0.0
    %2330 = vmatprep.subr.mxu0 0.0
    %2331 = vmatpush1.msra.mxu0 0.0
    %2332 = vmatprep.subr.mxu0 0.0
    %2333 = vmatpush1.msra.mxu0 0.0
    %2334 = vmatprep.subr.mxu0 0.0
    %2335 = vmatpush1.msra.mxu0 0.0
    %2336 = vmatprep.subr.mxu0 0.0
    %2337 = vmatpush1.msra.mxu0 0.0
    %2338 = vmatprep.subr.mxu0 0.0
    %2339 = vmatpush1.msra.mxu0 0.0
    %2340 = vmatprep.subr.mxu0 0.0
    %2341 = vmatpush1.msra.mxu0 0.0
    %2342 = vmatprep.subr.mxu0 0.0
    %2343 = vmatpush1.msra.mxu0 0.0
    %2344 = vmatprep.subr.mxu0 0.0
    %2345 = vmatpush1.msra.mxu0 0.0
    %2346 = vmatprep.subr.mxu0 0.0
    %2347 = vmatpush1.msra.mxu0 0.0
    %2348 = vmatprep.subr.mxu0 0.0
    %2349 = vmatpush1.msra.mxu0 0.0
    %2350 = vmatprep.subr.mxu0 0.0
    %2351 = vmatpush1.msra.mxu0 0.0
    %2352 = vmatprep.subr.mxu0 0.0
    %2353 = vmatpush1.msra.mxu0 0.0
    %2354 = vmatprep.subr.mxu0 0.0
    %2355 = vmatpush1.msra.mxu0 0.0
    %2356 = vmatprep.subr.mxu0 0.0
    %2357 = vmatpush1.msra.mxu0 0.0
    %2358 = vmatprep.subr.mxu0 0.0
    %2359 = vmatpush1.msra.mxu0 0.0
    %2360 = vmatprep.mubr.f32.mxu0 0.0
    %2361 = vmatmul.mubr.f32.gmra.mrb[0].mxu0 %v2221
    %v2362 = vpop.f32.mrb[0].mxu0
    %v2363 = vadd.f32 0.0, %v2362
    %v2364 = vpop.f32.mrb[0].mxu0
    %2365 = vdwg.mxu0
    %v2366 = vadd.f32 %v2295, %v2363
    %s2367 = scalar_lea.vmem [#allocation4], 48
    %v2368 = vld [vmem:[%s2367] sm:$0xff]
    %2369 = vmatprep.subr.mxu0 0.0
    %2370 = vmatpush1.msra.mxu0 %v292
    %2371 = vmatprep.subr.mxu0 0.0
    %2372 = vmatpush1.msra.mxu0 %v293
    %2373 = vmatprep.subr.mxu0 0.0
    %2374 = vmatpush1.msra.mxu0 %v294
    %2375 = vmatprep.subr.mxu0 0.0
    %2376 = vmatpush1.msra.mxu0 %v295
    %2377 = vmatprep.subr.mxu0 0.0
    %2378 = vmatpush1.msra.mxu0 %v296
    %2379 = vmatprep.subr.mxu0 0.0
    %2380 = vmatpush1.msra.mxu0 %v297
    %2381 = vmatprep.subr.mxu0 0.0
    %2382 = vmatpush1.msra.mxu0 %v298
    %2383 = vmatprep.subr.mxu0 0.0
    %2384 = vmatpush1.msra.mxu0 %v299
    %2385 = vmatprep.subr.mxu0 0.0
    %2386 = vmatpush1.msra.mxu0 0.0
    %2387 = vmatprep.subr.mxu0 0.0
    %2388 = vmatpush1.msra.mxu0 0.0
    %2389 = vmatprep.subr.mxu0 0.0
    %2390 = vmatpush1.msra.mxu0 0.0
    %2391 = vmatprep.subr.mxu0 0.0
    %2392 = vmatpush1.msra.mxu0 0.0
    %2393 = vmatprep.subr.mxu0 0.0
    %2394 = vmatpush1.msra.mxu0 0.0
    %2395 = vmatprep.subr.mxu0 0.0
    %2396 = vmatpush1.msra.mxu0 0.0
    %2397 = vmatprep.subr.mxu0 0.0
    %2398 = vmatpush1.msra.mxu0 0.0
    %2399 = vmatprep.subr.mxu0 0.0
    %2400 = vmatpush1.msra.mxu0 0.0
    %2401 = vmatprep.subr.mxu0 0.0
    %2402 = vmatpush1.msra.mxu0 0.0
    %2403 = vmatprep.subr.mxu0 0.0
    %2404 = vmatpush1.msra.mxu0 0.0
    %2405 = vmatprep.subr.mxu0 0.0
    %2406 = vmatpush1.msra.mxu0 0.0
    %2407 = vmatprep.subr.mxu0 0.0
    %2408 = vmatpush1.msra.mxu0 0.0
    %2409 = vmatprep.subr.mxu0 0.0
    %2410 = vmatpush1.msra.mxu0 0.0
    %2411 = vmatprep.subr.mxu0 0.0
    %2412 = vmatpush1.msra.mxu0 0.0
    %2413 = vmatprep.subr.mxu0 0.0
    %2414 = vmatpush1.msra.mxu0 0.0
    %2415 = vmatprep.subr.mxu0 0.0
    %2416 = vmatpush1.msra.mxu0 0.0
    %2417 = vmatprep.subr.mxu0 0.0
    %2418 = vmatpush1.msra.mxu0 0.0
    %2419 = vmatprep.subr.mxu0 0.0
    %2420 = vmatpush1.msra.mxu0 0.0
    %2421 = vmatprep.subr.mxu0 0.0
    %2422 = vmatpush1.msra.mxu0 0.0
    %2423 = vmatprep.subr.mxu0 0.0
    %2424 = vmatpush1.msra.mxu0 0.0
    %2425 = vmatprep.subr.mxu0 0.0
    %2426 = vmatpush1.msra.mxu0 0.0
    %2427 = vmatprep.subr.mxu0 0.0
    %2428 = vmatpush1.msra.mxu0 0.0
    %2429 = vmatprep.subr.mxu0 0.0
    %2430 = vmatpush1.msra.mxu0 0.0
    %2431 = vmatprep.subr.mxu0 0.0
    %2432 = vmatpush1.msra.mxu0 0.0
    %2433 = vmatprep.mubr.f32.mxu0 0.0
    %2434 = vmatmul.mubr.f32.gmra.mrb[0].mxu0 %v2221
    %v2435 = vpop.f32.mrb[0].mxu0
    %v2436 = vadd.f32 0.0, %v2435
    %v2437 = vpop.f32.mrb[0].mxu0
    %2438 = vdwg.mxu0
    %v2439 = vadd.f32 %v2368, %v2436
    %s2440 = scalar_lea.vmem [#allocation5], 48
    %v2441 = vld [vmem:[%s2440] sm:$0xff]
    %2442 = vmatprep.subr.mxu0 0.0
    %2443 = vmatpush1.msra.mxu0 %v300
    %2444 = vmatprep.subr.mxu0 0.0
    %2445 = vmatpush1.msra.mxu0 %v301
    %2446 = vmatprep.subr.mxu0 0.0
    %2447 = vmatpush1.msra.mxu0 %v302
    %2448 = vmatprep.subr.mxu0 0.0
    %2449 = vmatpush1.msra.mxu0 %v303
    %2450 = vmatprep.subr.mxu0 0.0
    %2451 = vmatpush1.msra.mxu0 %v304
    %2452 = vmatprep.subr.mxu0 0.0
    %2453 = vmatpush1.msra.mxu0 %v305
    %2454 = vmatprep.subr.mxu0 0.0
    %2455 = vmatpush1.msra.mxu0 %v306
    %2456 = vmatprep.subr.mxu0 0.0
    %2457 = vmatpush1.msra.mxu0 %v307
    %2458 = vmatprep.subr.mxu0 0.0
    %2459 = vmatpush1.msra.mxu0 0.0
    %2460 = vmatprep.subr.mxu0 0.0
    %2461 = vmatpush1.msra.mxu0 0.0
    %2462 = vmatprep.subr.mxu0 0.0
    %2463 = vmatpush1.msra.mxu0 0.0
    %2464 = vmatprep.subr.mxu0 0.0
    %2465 = vmatpush1.msra.mxu0 0.0
    %2466 = vmatprep.subr.mxu0 0.0
    %2467 = vmatpush1.msra.mxu0 0.0
    %2468 = vmatprep.subr.mxu0 0.0
    %2469 = vmatpush1.msra.mxu0 0.0
    %2470 = vmatprep.subr.mxu0 0.0
    %2471 = vmatpush1.msra.mxu0 0.0
    %2472 = vmatprep.subr.mxu0 0.0
    %2473 = vmatpush1.msra.mxu0 0.0
    %2474 = vmatprep.subr.mxu0 0.0
    %2475 = vmatpush1.msra.mxu0 0.0
    %2476 = vmatprep.subr.mxu0 0.0
    %2477 = vmatpush1.msra.mxu0 0.0
    %2478 = vmatprep.subr.mxu0 0.0
    %2479 = vmatpush1.msra.mxu0 0.0
    %2480 = vmatprep.subr.mxu0 0.0
    %2481 = vmatpush1.msra.mxu0 0.0
    %2482 = vmatprep.subr.mxu0 0.0
    %2483 = vmatpush1.msra.mxu0 0.0
    %2484 = vmatprep.subr.mxu0 0.0
    %2485 = vmatpush1.msra.mxu0 0.0
    %2486 = vmatprep.subr.mxu0 0.0
    %2487 = vmatpush1.msra.mxu0 0.0
    %2488 = vmatprep.subr.mxu0 0.0
    %2489 = vmatpush1.msra.mxu0 0.0
    %2490 = vmatprep.subr.mxu0 0.0
    %2491 = vmatpush1.msra.mxu0 0.0
    %2492 = vmatprep.subr.mxu0 0.0
    %2493 = vmatpush1.msra.mxu0 0.0
    %2494 = vmatprep.subr.mxu0 0.0
    %2495 = vmatpush1.msra.mxu0 0.0
    %2496 = vmatprep.subr.mxu0 0.0
    %2497 = vmatpush1.msra.mxu0 0.0
    %2498 = vmatprep.subr.mxu0 0.0
    %2499 = vmatpush1.msra.mxu0 0.0
    %2500 = vmatprep.subr.mxu0 0.0
    %2501 = vmatpush1.msra.mxu0 0.0
    %2502 = vmatprep.subr.mxu0 0.0
    %2503 = vmatpush1.msra.mxu0 0.0
    %2504 = vmatprep.subr.mxu0 0.0
    %2505 = vmatpush1.msra.mxu0 0.0
    %2506 = vmatprep.mubr.f32.mxu0 0.0
    %2507 = vmatmul.mubr.f32.gmra.mrb[0].mxu0 %v2221
    %v2508 = vpop.f32.mrb[0].mxu0
    %v2509 = vadd.f32 0.0, %v2508
    %v2510 = vpop.f32.mrb[0].mxu0
    %2511 = vdwg.mxu0
    %v2512 = vadd.f32 %v2441, %v2509
    %v2513 = vxor.u32 %v2293, 2147483648
    %v2514 = vmul.f32 %v2513, 1.442695
    %v2515 = vpow.pop %v2514
    %v2516 = vadd.f32 %v2515, 1.0
    %v2517 = vrcp.pop %v2516
    %v2518 = vmul.f32 1.0, %v2517
    %v2519 = vxor.u32 %v2366, 2147483648
    %v2520 = vmul.f32 %v2519, 1.442695
    %v2521 = vpow.pop %v2520
    %v2522 = vadd.f32 %v2521, 1.0
    %v2523 = vrcp.pop %v2522
    %v2524 = vmul.f32 1.0, %v2523
    %v2525 = vtanh.pop %v2439
    %v2526 = vxor.u32 %v2512, 2147483648
    %v2527 = vmul.f32 %v2526, 1.442695
    %v2528 = vpow.pop %v2527
    %v2529 = vadd.f32 %v2528, 1.0
    %v2530 = vrcp.pop %v2529
    %v2531 = vmul.f32 1.0, %v2530
    %v2532 = vmul.f32 %v2524, %v2215
    %v2533 = vmul.f32 %v2518, %v2525
    %v2534 = vadd.f32 %v2532, %v2533
    %v2535 = vtanh.pop %v2534
    %v2536 = vmul.f32 %v2531, %v2535
    %s2537 = scalar_lea.vmem [#allocation2], 56
    %v2538 = vld [vmem:[%s2537] sm:$0xff]
    %v2540 = vsel %vm179, %v2536, 0
    %2542 = vmatprep.subr.mxu0 0.0
    %2543 = vmatpush1.msra.mxu0 %v276
    %2544 = vmatprep.subr.mxu0 0.0
    %2545 = vmatpush1.msra.mxu0 %v277
    %2546 = vmatprep.subr.mxu0 0.0
    %2547 = vmatpush1.msra.mxu0 %v278
    %2548 = vmatprep.subr.mxu0 0.0
    %2549 = vmatpush1.msra.mxu0 %v279
    %2550 = vmatprep.subr.mxu0 0.0
    %2551 = vmatpush1.msra.mxu0 %v280
    %2552 = vmatprep.subr.mxu0 0.0
    %2553 = vmatpush1.msra.mxu0 %v281
    %2554 = vmatprep.subr.mxu0 0.0
    %2555 = vmatpush1.msra.mxu0 %v282
    %2556 = vmatprep.subr.mxu0 0.0
    %2557 = vmatpush1.msra.mxu0 %v283
    %2558 = vmatprep.subr.mxu0 0.0
    %2559 = vmatpush1.msra.mxu0 0.0
    %2560 = vmatprep.subr.mxu0 0.0
    %2561 = vmatpush1.msra.mxu0 0.0
    %2562 = vmatprep.subr.mxu0 0.0
    %2563 = vmatpush1.msra.mxu0 0.0
    %2564 = vmatprep.subr.mxu0 0.0
    %2565 = vmatpush1.msra.mxu0 0.0
    %2566 = vmatprep.subr.mxu0 0.0
    %2567 = vmatpush1.msra.mxu0 0.0
    %2568 = vmatprep.subr.mxu0 0.0
    %2569 = vmatpush1.msra.mxu0 0.0
    %2570 = vmatprep.subr.mxu0 0.0
    %2571 = vmatpush1.msra.mxu0 0.0
    %2572 = vmatprep.subr.mxu0 0.0
    %2573 = vmatpush1.msra.mxu0 0.0
    %2574 = vmatprep.subr.mxu0 0.0
    %2575 = vmatpush1.msra.mxu0 0.0
    %2576 = vmatprep.subr.mxu0 0.0
    %2577 = vmatpush1.msra.mxu0 0.0
    %2578 = vmatprep.subr.mxu0 0.0
    %2579 = vmatpush1.msra.mxu0 0.0
    %2580 = vmatprep.subr.mxu0 0.0
    %2581 = vmatpush1.msra.mxu0 0.0
    %2582 = vmatprep.subr.mxu0 0.0
    %2583 = vmatpush1.msra.mxu0 0.0
    %2584 = vmatprep.subr.mxu0 0.0
    %2585 = vmatpush1.msra.mxu0 0.0
    %2586 = vmatprep.subr.mxu0 0.0
    %2587 = vmatpush1.msra.mxu0 0.0
    %2588 = vmatprep.subr.mxu0 0.0
    %2589 = vmatpush1.msra.mxu0 0.0
    %2590 = vmatprep.subr.mxu0 0.0
    %2591 = vmatpush1.msra.mxu0 0.0
    %2592 = vmatprep.subr.mxu0 0.0
    %2593 = vmatpush1.msra.mxu0 0.0
    %2594 = vmatprep.subr.mxu0 0.0
    %2595 = vmatpush1.msra.mxu0 0.0
    %2596 = vmatprep.subr.mxu0 0.0
    %2597 = vmatpush1.msra.mxu0 0.0
    %2598 = vmatprep.subr.mxu0 0.0
    %2599 = vmatpush1.msra.mxu0 0.0
    %2600 = vmatprep.subr.mxu0 0.0
    %2601 = vmatpush1.msra.mxu0 0.0
    %2602 = vmatprep.subr.mxu0 0.0
    %2603 = vmatpush1.msra.mxu0 0.0
    %2604 = vmatprep.subr.mxu0 0.0
    %2605 = vmatpush1.msra.mxu0 0.0
    %2606 = vmatprep.mubr.f32.mxu0 0.0
    %2607 = vmatmul.mubr.f32.gmra.mrb[0].mxu0 %v2540
    %v2608 = vpop.f32.mrb[0].mxu0
    %v2609 = vadd.f32 0.0, %v2608
    %v2610 = vpop.f32.mrb[0].mxu0
    %2611 = vdwg.mxu0
    %v2612 = vadd.f32 %v2538, %v2609
    %s2613 = scalar_lea.vmem [#allocation3], 56
    %v2614 = vld [vmem:[%s2613] sm:$0xff]
    %2615 = vmatprep.subr.mxu0 0.0
    %2616 = vmatpush1.msra.mxu0 %v284
    %2617 = vmatprep.subr.mxu0 0.0
    %2618 = vmatpush1.msra.mxu0 %v285
    %2619 = vmatprep.subr.mxu0 0.0
    %2620 = vmatpush1.msra.mxu0 %v286
    %2621 = vmatprep.subr.mxu0 0.0
    %2622 = vmatpush1.msra.mxu0 %v287
    %2623 = vmatprep.subr.mxu0 0.0
    %2624 = vmatpush1.msra.mxu0 %v288
    %2625 = vmatprep.subr.mxu0 0.0
    %2626 = vmatpush1.msra.mxu0 %v289
    %2627 = vmatprep.subr.mxu0 0.0
    %2628 = vmatpush1.msra.mxu0 %v290
    %2629 = vmatprep.subr.mxu0 0.0
    %2630 = vmatpush1.msra.mxu0 %v291
    %2631 = vmatprep.subr.mxu0 0.0
    %2632 = vmatpush1.msra.mxu0 0.0
    %2633 = vmatprep.subr.mxu0 0.0
    %2634 = vmatpush1.msra.mxu0 0.0
    %2635 = vmatprep.subr.mxu0 0.0
    %2636 = vmatpush1.msra.mxu0 0.0
    %2637 = vmatprep.subr.mxu0 0.0
    %2638 = vmatpush1.msra.mxu0 0.0
    %2639 = vmatprep.subr.mxu0 0.0
    %2640 = vmatpush1.msra.mxu0 0.0
    %2641 = vmatprep.subr.mxu0 0.0
    %2642 = vmatpush1.msra.mxu0 0.0
    %2643 = vmatprep.subr.mxu0 0.0
    %2644 = vmatpush1.msra.mxu0 0.0
    %2645 = vmatprep.subr.mxu0 0.0
    %2646 = vmatpush1.msra.mxu0 0.0
    %2647 = vmatprep.subr.mxu0 0.0
    %2648 = vmatpush1.msra.mxu0 0.0
    %2649 = vmatprep.subr.mxu0 0.0
    %2650 = vmatpush1.msra.mxu0 0.0
    %2651 = vmatprep.subr.mxu0 0.0
    %2652 = vmatpush1.msra.mxu0 0.0
    %2653 = vmatprep.subr.mxu0 0.0
    %2654 = vmatpush1.msra.mxu0 0.0
    %2655 = vmatprep.subr.mxu0 0.0
    %2656 = vmatpush1.msra.mxu0 0.0
    %2657 = vmatprep.subr.mxu0 0.0
    %2658 = vmatpush1.msra.mxu0 0.0
    %2659 = vmatprep.subr.mxu0 0.0
    %2660 = vmatpush1.msra.mxu0 0.0
    %2661 = vmatprep.subr.mxu0 0.0
    %2662 = vmatpush1.msra.mxu0 0.0
    %2663 = vmatprep.subr.mxu0 0.0
    %2664 = vmatpush1.msra.mxu0 0.0
    %2665 = vmatprep.subr.mxu0 0.0
    %2666 = vmatpush1.msra.mxu0 0.0
    %2667 = vmatprep.subr.mxu0 0.0
    %2668 = vmatpush1.msra.mxu0 0.0
    %2669 = vmatprep.subr.mxu0 0.0
    %2670 = vmatpush1.msra.mxu0 0.0
    %2671 = vmatprep.subr.mxu0 0.0
    %2672 = vmatpush1.msra.mxu0 0.0
    %2673 = vmatprep.subr.mxu0 0.0
    %2674 = vmatpush1.msra.mxu0 0.0
    %2675 = vmatprep.subr.mxu0 0.0
    %2676 = vmatpush1.msra.mxu0 0.0
    %2677 = vmatprep.subr.mxu0 0.0
    %2678 = vmatpush1.msra.mxu0 0.0
    %2679 = vmatprep.mubr.f32.mxu0 0.0
    %2680 = vmatmul.mubr.f32.gmra.mrb[0].mxu0 %v2540
    %v2681 = vpop.f32.mrb[0].mxu0
    %v2682 = vadd.f32 0.0, %v2681
    %v2683 = vpop.f32.mrb[0].mxu0
    %2684 = vdwg.mxu0
    %v2685 = vadd.f32 %v2614, %v2682
    %s2686 = scalar_lea.vmem [#allocation4], 56
    %v2687 = vld [vmem:[%s2686] sm:$0xff]
    %2688 = vmatprep.subr.mxu0 0.0
    %2689 = vmatpush1.msra.mxu0 %v292
    %2690 = vmatprep.subr.mxu0 0.0
    %2691 = vmatpush1.msra.mxu0 %v293
    %2692 = vmatprep.subr.mxu0 0.0
    %2693 = vmatpush1.msra.mxu0 %v294
    %2694 = vmatprep.subr.mxu0 0.0
    %2695 = vmatpush1.msra.mxu0 %v295
    %2696 = vmatprep.subr.mxu0 0.0
    %2697 = vmatpush1.msra.mxu0 %v296
    %2698 = vmatprep.subr.mxu0 0.0
    %2699 = vmatpush1.msra.mxu0 %v297
    %2700 = vmatprep.subr.mxu0 0.0
    %2701 = vmatpush1.msra.mxu0 %v298
    %2702 = vmatprep.subr.mxu0 0.0
    %2703 = vmatpush1.msra.mxu0 %v299
    %2704 = vmatprep.subr.mxu0 0.0
    %2705 = vmatpush1.msra.mxu0 0.0
    %2706 = vmatprep.subr.mxu0 0.0
    %2707 = vmatpush1.msra.mxu0 0.0
    %2708 = vmatprep.subr.mxu0 0.0
    %2709 = vmatpush1.msra.mxu0 0.0
    %2710 = vmatprep.subr.mxu0 0.0
    %2711 = vmatpush1.msra.mxu0 0.0
    %2712 = vmatprep.subr.mxu0 0.0
    %2713 = vmatpush1.msra.mxu0 0.0
    %2714 = vmatprep.subr.mxu0 0.0
    %2715 = vmatpush1.msra.mxu0 0.0
    %2716 = vmatprep.subr.mxu0 0.0
    %2717 = vmatpush1.msra.mxu0 0.0
    %2718 = vmatprep.subr.mxu0 0.0
    %2719 = vmatpush1.msra.mxu0 0.0
    %2720 = vmatprep.subr.mxu0 0.0
    %2721 = vmatpush1.msra.mxu0 0.0
    %2722 = vmatprep.subr.mxu0 0.0
    %2723 = vmatpush1.msra.mxu0 0.0
    %2724 = vmatprep.subr.mxu0 0.0
    %2725 = vmatpush1.msra.mxu0 0.0
    %2726 = vmatprep.subr.mxu0 0.0
    %2727 = vmatpush1.msra.mxu0 0.0
    %2728 = vmatprep.subr.mxu0 0.0
    %2729 = vmatpush1.msra.mxu0 0.0
    %2730 = vmatprep.subr.mxu0 0.0
    %2731 = vmatpush1.msra.mxu0 0.0
    %2732 = vmatprep.subr.mxu0 0.0
    %2733 = vmatpush1.msra.mxu0 0.0
    %2734 = vmatprep.subr.mxu0 0.0
    %2735 = vmatpush1.msra.mxu0 0.0
    %2736 = vmatprep.subr.mxu0 0.0
    %2737 = vmatpush1.msra.mxu0 0.0
    %2738 = vmatprep.subr.mxu0 0.0
    %2739 = vmatpush1.msra.mxu0 0.0
    %2740 = vmatprep.subr.mxu0 0.0
    %2741 = vmatpush1.msra.mxu0 0.0
    %2742 = vmatprep.subr.mxu0 0.0
    %2743 = vmatpush1.msra.mxu0 0.0
    %2744 = vmatprep.subr.mxu0 0.0
    %2745 = vmatpush1.msra.mxu0 0.0
    %2746 = vmatprep.subr.mxu0 0.0
    %2747 = vmatpush1.msra.mxu0 0.0
    %2748 = vmatprep.subr.mxu0 0.0
    %2749 = vmatpush1.msra.mxu0 0.0
    %2750 = vmatprep.subr.mxu0 0.0
    %2751 = vmatpush1.msra.mxu0 0.0
    %2752 = vmatprep.mubr.f32.mxu0 0.0
    %2753 = vmatmul.mubr.f32.gmra.mrb[0].mxu0 %v2540
    %v2754 = vpop.f32.mrb[0].mxu0
    %v2755 = vadd.f32 0.0, %v2754
    %v2756 = vpop.f32.mrb[0].mxu0
    %2757 = vdwg.mxu0
    %v2758 = vadd.f32 %v2687, %v2755
    %s2759 = scalar_lea.vmem [#allocation5], 56
    %v2760 = vld [vmem:[%s2759] sm:$0xff]
    %2761 = vmatprep.subr.mxu0 0.0
    %2762 = vmatpush1.msra.mxu0 %v300
    %2763 = vmatprep.subr.mxu0 0.0
    %2764 = vmatpush1.msra.mxu0 %v301
    %2765 = vmatprep.subr.mxu0 0.0
    %2766 = vmatpush1.msra.mxu0 %v302
    %2767 = vmatprep.subr.mxu0 0.0
    %2768 = vmatpush1.msra.mxu0 %v303
    %2769 = vmatprep.subr.mxu0 0.0
    %2770 = vmatpush1.msra.mxu0 %v304
    %2771 = vmatprep.subr.mxu0 0.0
    %2772 = vmatpush1.msra.mxu0 %v305
    %2773 = vmatprep.subr.mxu0 0.0
    %2774 = vmatpush1.msra.mxu0 %v306
    %2775 = vmatprep.subr.mxu0 0.0
    %2776 = vmatpush1.msra.mxu0 %v307
    %2777 = vmatprep.subr.mxu0 0.0
    %2778 = vmatpush1.msra.mxu0 0.0
    %2779 = vmatprep.subr.mxu0 0.0
    %2780 = vmatpush1.msra.mxu0 0.0
    %2781 = vmatprep.subr.mxu0 0.0
    %2782 = vmatpush1.msra.mxu0 0.0
    %2783 = vmatprep.subr.mxu0 0.0
    %2784 = vmatpush1.msra.mxu0 0.0
    %2785 = vmatprep.subr.mxu0 0.0
    %2786 = vmatpush1.msra.mxu0 0.0
    %2787 = vmatprep.subr.mxu0 0.0
    %2788 = vmatpush1.msra.mxu0 0.0
    %2789 = vmatprep.subr.mxu0 0.0
    %2790 = vmatpush1.msra.mxu0 0.0
    %2791 = vmatprep.subr.mxu0 0.0
    %2792 = vmatpush1.msra.mxu0 0.0
    %2793 = vmatprep.subr.mxu0 0.0
    %2794 = vmatpush1.msra.mxu0 0.0
    %2795 = vmatprep.subr.mxu0 0.0
    %2796 = vmatpush1.msra.mxu0 0.0
    %2797 = vmatprep.subr.mxu0 0.0
    %2798 = vmatpush1.msra.mxu0 0.0
    %2799 = vmatprep.subr.mxu0 0.0
    %2800 = vmatpush1.msra.mxu0 0.0
    %2801 = vmatprep.subr.mxu0 0.0
    %2802 = vmatpush1.msra.mxu0 0.0
    %2803 = vmatprep.subr.mxu0 0.0
    %2804 = vmatpush1.msra.mxu0 0.0
    %2805 = vmatprep.subr.mxu0 0.0
    %2806 = vmatpush1.msra.mxu0 0.0
    %2807 = vmatprep.subr.mxu0 0.0
    %2808 = vmatpush1.msra.mxu0 0.0
    %2809 = vmatprep.subr.mxu0 0.0
    %2810 = vmatpush1.msra.mxu0 0.0
    %2811 = vmatprep.subr.mxu0 0.0
    %2812 = vmatpush1.msra.mxu0 0.0
    %2813 = vmatprep.subr.mxu0 0.0
    %2814 = vmatpush1.msra.mxu0 0.0
    %2815 = vmatprep.subr.mxu0 0.0
    %2816 = vmatpush1.msra.mxu0 0.0
    %2817 = vmatprep.subr.mxu0 0.0
    %2818 = vmatpush1.msra.mxu0 0.0
    %2819 = vmatprep.subr.mxu0 0.0
    %2820 = vmatpush1.msra.mxu0 0.0
    %2821 = vmatprep.subr.mxu0 0.0
    %2822 = vmatpush1.msra.mxu0 0.0
    %2823 = vmatprep.subr.mxu0 0.0
    %2824 = vmatpush1.msra.mxu0 0.0
    %2825 = vmatprep.mubr.f32.mxu0 0.0
    %2826 = vmatmul.mubr.f32.gmra.mrb[0].mxu0 %v2540
    %v2827 = vpop.f32.mrb[0].mxu0
    %v2828 = vadd.f32 0.0, %v2827
    %v2829 = vpop.f32.mrb[0].mxu0
    %2830 = vdwg.mxu0
    %v2831 = vadd.f32 %v2760, %v2828
    %v2832 = vxor.u32 %v2612, 2147483648
    %v2833 = vmul.f32 %v2832, 1.442695
    %v2834 = vpow.pop %v2833
    %v2835 = vadd.f32 %v2834, 1.0
    %v2836 = vrcp.pop %v2835
    %v2837 = vmul.f32 1.0, %v2836
    %v2838 = vxor.u32 %v2685, 2147483648
    %v2839 = vmul.f32 %v2838, 1.442695
    %v2840 = vpow.pop %v2839
    %v2841 = vadd.f32 %v2840, 1.0
    %v2842 = vrcp.pop %v2841
    %v2843 = vmul.f32 1.0, %v2842
    %v2844 = vtanh.pop %v2758
    %v2845 = vxor.u32 %v2831, 2147483648
    %v2846 = vmul.f32 %v2845, 1.442695
    %v2847 = vpow.pop %v2846
    %v2848 = vadd.f32 %v2847, 1.0
    %v2849 = vrcp.pop %v2848
    %v2850 = vmul.f32 1.0, %v2849
    %v2851 = vmul.f32 %v2843, %v2534
    %v2852 = vmul.f32 %v2837, %v2844
    %v2853 = vadd.f32 %v2851, %v2852
    %v2854 = vtanh.pop %v2853
    %v2855 = vmul.f32 %v2850, %v2854
    %v2856 = vld [vmem:[%s7] sm:$0x1]
    %v2858 = vlaneseq
    %v2859 = vshrl.u32 %v2858, 7
    %v2860 = vsub.s32 0, %v2859
    %v2861 = vrot.slane %v2856, %v2860
    %v2863 = vmul.f32 %v2855, %v2861
    %v2864 = vsel %vm179, %v2863, 0.0
    %2865 = vadd.xlane.f32.xlu0 %v2864
    %v2866 = vpop.xlane.xlu0 %2865
    %v2867 = vld [vmem:[#allocation6] sm:$0x1]
    %v2869 = vlaneseq
    %v2870 = vshrl.u32 %v2869, 7
    %v2871 = vsub.s32 0, %v2870
    %v2872 = vrot.slane %v2867, %v2871
    %v2874 = vadd.f32 %v2866, %v2872
    %vm2875 = vcmask 7168
    %2876 = vst.msk [vmem:[%s9] sm:$0xff] %vm2875, %v2874
    // Predicated region
    $region50: #{tpu_custom_call.1} parent=1 // pred_check
      _
    $region51: #{tpu_custom_call.1} parent=1 // pred_check_branch
      %2878 = sbr.rel (0) target = $region53
    $region52: #{tpu_custom_call.1} parent=1 // pred_region
      _
    $region53: #{tpu_custom_call.1} parent=1 // pred_fallthru
      _
    // Predicated region
    $region54: #{tpu_custom_call.1} parent=1 // pred_check
      _
    $region55: #{tpu_custom_call.1} parent=1 // pred_check_branch
      %2880 = sbr.rel (0) target = $region57
    $region56: #{tpu_custom_call.1} parent=1 // pred_region
      _
    $region57: #{tpu_custom_call.1} parent=1 // pred_fallthru
      _
    %2881 = vsyncpa [#allocation8], 1
    %2882 = vsyncpa [#allocation10], 1

</llo_original>
